<compile_context>
chip_gen: v5e
topology: v5e:2x2
jax: 0.10.0
libtpu: 0.0.40
codegen_flags: <defaults>
</compile_context>

<pallas_src>
import math
from functools import partial

import jax
import jax.numpy as jnp
from jax import lax
from jax.experimental import pallas as pl
from jax.experimental.pallas import tpu as pltpu


# -----------------------------------------------------------------------------
# Fused kernel: one block of B batch elements (rows flattened to R = B*L)
# -----------------------------------------------------------------------------
def _encoder_layer_kernel(src_ref, pos_ref,
                          wqk_ref, bqk_ref, wv_ref, bv_ref, wo_ref, bo_ref,
                          g1_ref, bn1_ref,
                          w1_ref, b1_ref, w2_ref, b2_ref,
                          g2_ref, bn2_ref,
                          o_ref, *, nhead, seq_len):
    """src_ref/pos_ref/o_ref: (R, E) with R = B*L.  Weights arrive in bf16."""
    R, E = src_ref.shape
    L = seq_len
    B = R // L
    dh = E // nhead

    x = src_ref[...]                                     # (R, E) f32 residual / value input
    qk_in = (x + pos_ref[...]).astype(jnp.bfloat16)      # q = k = src + pos  (bf16 MXU operand)
    x16 = x.astype(jnp.bfloat16)

    # --- packed Q|K projection (one MXU push, scale folded into Q half) + V projection ---
    qk = jnp.dot(qk_in, wqk_ref[...], preferred_element_type=jnp.float32) + bqk_ref[...]  # (R, 2E)
    v = jnp.dot(x16, wv_ref[...], preferred_element_type=jnp.float32) + bv_ref[...]       # (R, E)
    qk16 = qk.astype(jnp.bfloat16)
    v16 = v.astype(jnp.bfloat16)

    # --- multi-head attention, statically unrolled over (batch-in-block, head) ---
    # Head outputs are concatenated so the output projection is ONE matmul.
    attn_rows = []
    for b in range(B):
        rs = slice(b * L, (b + 1) * L)                   # sublane-aligned static row window
        head_outs = []
        for h in range(nhead):
            q = qk16[rs, h * dh:(h + 1) * dh]            # 128-lane-aligned window (dh=128 demo)
            k = qk16[rs, E + h * dh:E + (h + 1) * dh]
            vh = v16[rs, h * dh:(h + 1) * dh]
            # scores (L, L) = q @ k^T (contract on dh, no explicit transpose)
            s = lax.dot_general(q, k, (((1,), (1,)), ((), ())),
                                preferred_element_type=jnp.float32)
            s = s - jnp.max(s, axis=-1, keepdims=True)
            p = jnp.exp(s)
            p = p * pl.reciprocal(jnp.sum(p, axis=-1, keepdims=True), approx=True)
            head_outs.append(jnp.dot(p.astype(jnp.bfloat16), vh,
                                     preferred_element_type=jnp.float32))     # (L, dh)
        attn_rows.append(jnp.concatenate(head_outs, axis=-1))                 # (L, E)
    cat = attn_rows[0] if B == 1 else jnp.concatenate(attn_rows, axis=0)      # (R, E)
    attn = jnp.dot(cat.astype(jnp.bfloat16), wo_ref[...],
                   preferred_element_type=jnp.float32) + bo_ref[...]          # single Wo push

    # --- add & LayerNorm 1 (f32) ---
    y = x + attn
    mu = jnp.mean(y, axis=-1, keepdims=True)
    var = jnp.mean((y - mu) * (y - mu), axis=-1, keepdims=True)
    y = (y - mu) * lax.rsqrt(var + 1e-5) * g1_ref[...] + bn1_ref[...]

    # --- feed-forward: relu(y @ W1 + b1) @ W2 + b2 (bf16 MXU operands) ---
    h1 = jnp.maximum(
        jnp.dot(y.astype(jnp.bfloat16), w1_ref[...],
                preferred_element_type=jnp.float32) + b1_ref[...], 0.0)
    ff = jnp.dot(h1.astype(jnp.bfloat16), w2_ref[...],
                 preferred_element_type=jnp.float32) + b2_ref[...]

    # --- add & LayerNorm 2 (f32); E is a multiple of 128 -> unmasked lane-dense store ---
    z = y + ff
    mu = jnp.mean(z, axis=-1, keepdims=True)
    var = jnp.mean((z - mu) * (z - mu), axis=-1, keepdims=True)
    o_ref[...] = (z - mu) * lax.rsqrt(var + 1e-5) * g2_ref[...] + bn2_ref[...]


# -----------------------------------------------------------------------------
# Wrapper: one pallas_call for the whole layer
# -----------------------------------------------------------------------------
def transformer_encoder_layer_forward(kparams, src, pos=None, grid_blocks=None):
    """forward_post semantics (normalize_before=False), eval mode.

    src: (L, N, E) seq-first like PyTorch; pos: (L, N, E) or None.
    grid_blocks: number of grid steps over the batch. Default min(N, 2)
      (2 keeps both v7x TensorCores busy; pass 1 on single-core v5e/v6e).
    """
    L, N, E = src.shape
    nhead = kparams["nhead"]
    Fff = kparams["w1"].shape[1]
    if pos is None:
        pos = jnp.zeros_like(src)
    if grid_blocks is None:
        grid_blocks = min(N, 2)
    assert N % grid_blocks == 0, "batch must divide grid_blocks"
    B = N // grid_blocks
    R = B * L          # rows per grid block (flattened across the batch slice)

    # batch-first, rows flattened -> lane-dense (rows, E) slabs for in/out
    src_r = jnp.transpose(src, (1, 0, 2)).reshape(N * L, E)
    pos_r = jnp.transpose(pos, (1, 0, 2)).reshape(N * L, E)

    rows = lambda i: (i, 0)
    fixed = lambda i: (0, 0)   # weights: constant index map -> DMA'd once, VMEM resident

    out = pl.pallas_call(
        partial(_encoder_layer_kernel, nhead=nhead, seq_len=L),
        out_shape=jax.ShapeDtypeStruct((N * L, E), jnp.float32),
        grid=(grid_blocks,),
        in_specs=[
            pl.BlockSpec((R, E), rows),              # src rows
            pl.BlockSpec((R, E), rows),              # pos rows
            pl.BlockSpec((E, 2 * E), fixed),         # Wq|Wk packed (bf16, scale folded)
            pl.BlockSpec((1, 2 * E), fixed),         # bq|bk packed (f32)
            pl.BlockSpec((E, E), fixed),             # Wv (bf16)
            pl.BlockSpec((1, E), fixed),             # bv
            pl.BlockSpec((E, E), fixed),             # Wo (bf16)
            pl.BlockSpec((1, E), fixed),             # bo
            pl.BlockSpec((1, E), fixed),             # norm1 gamma
            pl.BlockSpec((1, E), fixed),             # norm1 beta
            pl.BlockSpec((E, Fff), fixed),           # W1 (bf16)
            pl.BlockSpec((1, Fff), fixed),           # b1
            pl.BlockSpec((Fff, E), fixed),           # W2 (bf16)
            pl.BlockSpec((1, E), fixed),             # b2
            pl.BlockSpec((1, E), fixed),             # norm2 gamma
            pl.BlockSpec((1, E), fixed),             # norm2 beta
        ],
        out_specs=pl.BlockSpec((R, E), rows),
        compiler_params=pltpu.CompilerParams(
            dimension_semantics=("parallel",),
            vmem_limit_bytes=64 * 1024 * 1024),
    )(src_r, pos_r,
      kparams["wqk"], kparams["bqk"], kparams["wv"], kparams["bv"],
      kparams["wo"], kparams["bo"],
      kparams["norm1_g"], kparams["norm1_b"],
      kparams["w1"], kparams["b1"], kparams["w2"], kparams["b2"],
      kparams["norm2_g"], kparams["norm2_b"])

    return jnp.transpose(out.reshape(N, L, E), (1, 0, 2))   # back to (L, N, E)


# -----------------------------------------------------------------------------
# Parameters
# -----------------------------------------------------------------------------
def init_params(key, d_model, nhead, dim_feedforward):
    """Canonical (per-projection) f32 parameters; weights pre-transposed so y = x @ W + b."""
    ks = jax.random.split(key, 12)
    E, Fff = d_model, dim_feedforward

    def w(k, shape, scale=0.05):
        return jax.random.normal(k, shape, jnp.float32) * scale

    return dict(
        nhead=nhead,
        wq=w(ks[0], (E, E)), bq=w(ks[1], (1, E)),
        wk=w(ks[2], (E, E)), bk=w(ks[3], (1, E)),
        wv=w(ks[4], (E, E)), bv=w(ks[5], (1, E)),
        wo=w(ks[6], (E, E)), bo=w(ks[7], (1, E)),
        w1=w(ks[8], (E, Fff)), b1=w(jax.random.fold_in(ks[8], 1), (1, Fff)),
        w2=w(ks[9], (Fff, E)), b2=w(jax.random.fold_in(ks[9], 1), (1, E)),
        norm1_g=jnp.ones((1, E), jnp.float32) + w(ks[10], (1, E), 0.01),
        norm1_b=w(jax.random.fold_in(ks[10], 1), (1, E), 0.01),
        norm2_g=jnp.ones((1, E), jnp.float32) + w(ks[11], (1, E), 0.01),
        norm2_b=w(jax.random.fold_in(ks[11], 1), (1, E), 0.01),
    )


def pack_params(p, mxu_dtype=jnp.bfloat16):
    """Kernel-ready params: Q|K packed, 1/sqrt(dh) folded into Q, matmul weights in bf16."""
    E = p["wq"].shape[0]
    dh = E // p["nhead"]
    scale = 1.0 / math.sqrt(dh)
    cast = lambda w: w.astype(mxu_dtype)
    return dict(
        nhead=p["nhead"],
        wqk=cast(jnp.concatenate([p["wq"] * scale, p["wk"]], axis=1)),
        bqk=jnp.concatenate([p["bq"] * scale, p["bk"]], axis=1),
        wv=cast(p["wv"]), bv=p["bv"],
        wo=cast(p["wo"]), bo=p["bo"],
        norm1_g=p["norm1_g"], norm1_b=p["norm1_b"],
        w1=cast(p["w1"]), b1=p["b1"],
        w2=cast(p["w2"]), b2=p["b2"],
        norm2_g=p["norm2_g"], norm2_b=p["norm2_b"],
    )


# -----------------------------------------------------------------------------
# Pure-JAX f32 reference (for correctness check)
# -----------------------------------------------------------------------------
def _ln_ref(y, g, b):
    m = jnp.mean(y, axis=-1, keepdims=True)
    v = jnp.mean((y - m) ** 2, axis=-1, keepdims=True)
    return (y - m) * lax.rsqrt(v + 1e-5) * g + b


def reference_forward(params, src, pos):
    nhead = params["nhead"]
    L, N, E = src.shape
    dh = E // nhead
    x = jnp.transpose(src, (1, 0, 2))     # (N, L, E)
    pe = jnp.transpose(pos, (1, 0, 2))
    qk_in = x + pe
    q = qk_in @ params["wq"] + params["bq"]
    k = qk_in @ params["wk"] + params["bk"]
    v = x @ params["wv"] + params["bv"]
    qh = q.reshape(N, L, nhead, dh).transpose(0, 2, 1, 3)
    kh = k.reshape(N, L, nhead, dh).transpose(0, 2, 1, 3)
    vh = v.reshape(N, L, nhead, dh).transpose(0, 2, 1, 3)
    s = jnp.einsum("nhld,nhmd->nhlm", qh / math.sqrt(dh), kh)
    p = jax.nn.softmax(s, axis=-1)
    o = jnp.einsum("nhlm,nhmd->nhld", p, vh).transpose(0, 2, 1, 3).reshape(N, L, E)
    attn = o @ params["wo"] + params["bo"]
    y = _ln_ref(x + attn, params["norm1_g"], params["norm1_b"])
    ff = jnp.maximum(y @ params["w1"] + params["b1"], 0.0) @ params["w2"] + params["b2"]
    z = _ln_ref(y + ff, params["norm2_g"], params["norm2_b"])
    return jnp.transpose(z, (1, 0, 2))


# -----------------------------------------------------------------------------
# Main
# -----------------------------------------------------------------------------
if __name__ == "__main__":
    # Small but TPU-friendly config: E = 256 (lane-dense stores), dh = 128 (aligned
    # head slices / concat), tiny seq & batch.
    d_model, nhead, dim_ff = 256, 2, 512
    L, N = 16, 2

    key = jax.random.PRNGKey(0)
    kp, ksrc, kpos = jax.random.split(key, 3)
    params = init_params(kp, d_model, nhead, dim_ff)
    kparams = pack_params(params)

    src = jax.random.normal(ksrc, (L, N, d_model), jnp.float32)
    pos = jax.random.normal(kpos, (L, N, d_model), jnp.float32)

    out = jax.block_until_ready(transformer_encoder_layer_forward(kparams, src, pos))

    ref = jax.block_until_ready(reference_forward(params, src, pos))
    assert out.shape == (L, N, d_model)
    max_err = float(jnp.max(jnp.abs(out - ref)))
    # bf16 MXU operands + approx reciprocal -> tolerance loosened from 1e-4 to bf16 level.
    assert jnp.allclose(out, ref, rtol=5e-2, atol=5e-2), max_err

    print("KERNEL_OK")
</pallas_src>

<mosaic_0001>
module attributes {stable_mosaic.version = 11 : i64} {
  func.func @_encoder_layer_kernel(%arg0: i32, %arg1: memref<16x256xf32, #tpu.memory_space<vmem>>, %arg2: memref<16x256xf32, #tpu.memory_space<vmem>>, %arg3: memref<256x512xbf16, #tpu.memory_space<vmem>>, %arg4: memref<1x512xf32, #tpu.memory_space<vmem>>, %arg5: memref<256x256xbf16, #tpu.memory_space<vmem>>, %arg6: memref<1x256xf32, #tpu.memory_space<vmem>>, %arg7: memref<256x256xbf16, #tpu.memory_space<vmem>>, %arg8: memref<1x256xf32, #tpu.memory_space<vmem>>, %arg9: memref<1x256xf32, #tpu.memory_space<vmem>>, %arg10: memref<1x256xf32, #tpu.memory_space<vmem>>, %arg11: memref<256x512xbf16, #tpu.memory_space<vmem>>, %arg12: memref<1x512xf32, #tpu.memory_space<vmem>>, %arg13: memref<512x256xbf16, #tpu.memory_space<vmem>>, %arg14: memref<1x256xf32, #tpu.memory_space<vmem>>, %arg15: memref<1x256xf32, #tpu.memory_space<vmem>>, %arg16: memref<1x256xf32, #tpu.memory_space<vmem>>, %arg17: memref<16x256xf32, #tpu.memory_space<vmem>>) attributes {dimension_semantics = [#tpu.dimension_semantics<parallel>], iteration_bounds = array<i64: 2>, scalar_prefetch = 0 : i64, scratch_operands = 0 : i64, tpu.core_type = #tpu.core_type<tc>, window_params = [{transform_indices = @transform_0, window_bounds = array<i64: 16, 256>}, {transform_indices = @transform_1, window_bounds = array<i64: 16, 256>}, {pipeline_mode = #tpu.pipeline_mode<synchronous>, transform_indices = @transform_2, window_bounds = array<i64: 256, 512>}, {pipeline_mode = #tpu.pipeline_mode<synchronous>, transform_indices = @transform_3, window_bounds = array<i64: 1, 512>}, {pipeline_mode = #tpu.pipeline_mode<synchronous>, transform_indices = @transform_4, window_bounds = array<i64: 256, 256>}, {pipeline_mode = #tpu.pipeline_mode<synchronous>, transform_indices = @transform_5, window_bounds = array<i64: 1, 256>}, {pipeline_mode = #tpu.pipeline_mode<synchronous>, transform_indices = @transform_6, window_bounds = array<i64: 256, 256>}, {pipeline_mode = #tpu.pipeline_mode<synchronous>, transform_indices = @transform_7, window_bounds = array<i64: 1, 256>}, {pipeline_mode = #tpu.pipeline_mode<synchronous>, transform_indices = @transform_8, window_bounds = array<i64: 1, 256>}, {pipeline_mode = #tpu.pipeline_mode<synchronous>, transform_indices = @transform_9, window_bounds = array<i64: 1, 256>}, {pipeline_mode = #tpu.pipeline_mode<synchronous>, transform_indices = @transform_10, window_bounds = array<i64: 256, 512>}, {pipeline_mode = #tpu.pipeline_mode<synchronous>, transform_indices = @transform_11, window_bounds = array<i64: 1, 512>}, {pipeline_mode = #tpu.pipeline_mode<synchronous>, transform_indices = @transform_12, window_bounds = array<i64: 512, 256>}, {pipeline_mode = #tpu.pipeline_mode<synchronous>, transform_indices = @transform_13, window_bounds = array<i64: 1, 256>}, {pipeline_mode = #tpu.pipeline_mode<synchronous>, transform_indices = @transform_14, window_bounds = array<i64: 1, 256>}, {pipeline_mode = #tpu.pipeline_mode<synchronous>, transform_indices = @transform_15, window_bounds = array<i64: 1, 256>}, {transform_indices = @transform_16, window_bounds = array<i64: 16, 256>}]} {
    %c0 = arith.constant 0 : index
    %c0_0 = arith.constant 0 : index
    %0 = vector.load %arg1[%c0, %c0_0] : memref<16x256xf32, #tpu.memory_space<vmem>>, vector<16x256xf32>
    %c0_1 = arith.constant 0 : index
    %c0_2 = arith.constant 0 : index
    %1 = vector.load %arg2[%c0_1, %c0_2] : memref<16x256xf32, #tpu.memory_space<vmem>>, vector<16x256xf32>
    %2 = arith.addf %0, %1 : vector<16x256xf32>
    %3 = arith.truncf %2 : vector<16x256xf32> to vector<16x256xbf16>
    %4 = arith.truncf %0 : vector<16x256xf32> to vector<16x256xbf16>
    %c0_3 = arith.constant 0 : index
    %c0_4 = arith.constant 0 : index
    %5 = vector.load %arg3[%c0_3, %c0_4] : memref<256x512xbf16, #tpu.memory_space<vmem>>, vector<256x512xbf16>
    %cst = arith.constant dense<0.000000e+00> : vector<16x512xf32>
    %6 = tpu.matmul %3, %5, %cst {dimension_numbers = #tpu.dot_dimension_numbers<[1], [0], [0], [1], [0, 0, 1, 1], [], []>} : vector<16x256xbf16>, vector<256x512xbf16>, vector<16x512xf32> -> vector<16x512xf32>
    %c0_5 = arith.constant 0 : index
    %c0_6 = arith.constant 0 : index
    %7 = vector.load %arg4[%c0_5, %c0_6] : memref<1x512xf32, #tpu.memory_space<vmem>>, vector<1x512xf32>
    %8 = vector.broadcast %7 : vector<1x512xf32> to vector<16x512xf32>
    %9 = arith.addf %6, %8 : vector<16x512xf32>
    %c0_7 = arith.constant 0 : index
    %c0_8 = arith.constant 0 : index
    %10 = vector.load %arg5[%c0_7, %c0_8] : memref<256x256xbf16, #tpu.memory_space<vmem>>, vector<256x256xbf16>
    %cst_9 = arith.constant dense<0.000000e+00> : vector<16x256xf32>
    %11 = tpu.matmul %4, %10, %cst_9 {dimension_numbers = #tpu.dot_dimension_numbers<[1], [0], [0], [1], [0, 0, 1, 1], [], []>} : vector<16x256xbf16>, vector<256x256xbf16>, vector<16x256xf32> -> vector<16x256xf32>
    %c0_10 = arith.constant 0 : index
    %c0_11 = arith.constant 0 : index
    %12 = vector.load %arg6[%c0_10, %c0_11] : memref<1x256xf32, #tpu.memory_space<vmem>>, vector<1x256xf32>
    %13 = vector.broadcast %12 : vector<1x256xf32> to vector<16x256xf32>
    %14 = arith.addf %11, %13 : vector<16x256xf32>
    %15 = arith.truncf %9 : vector<16x512xf32> to vector<16x512xbf16>
    %16 = arith.truncf %14 : vector<16x256xf32> to vector<16x256xbf16>
    %17 = vector.extract_strided_slice %15 {offsets = [0, 0], sizes = [16, 128], strides = [1, 1]} : vector<16x512xbf16> to vector<16x128xbf16>
    %18 = vector.extract_strided_slice %15 {offsets = [0, 256], sizes = [16, 128], strides = [1, 1]} : vector<16x512xbf16> to vector<16x128xbf16>
    %19 = vector.extract_strided_slice %16 {offsets = [0, 0], sizes = [16, 128], strides = [1, 1]} : vector<16x256xbf16> to vector<16x128xbf16>
    %cst_12 = arith.constant dense<0.000000e+00> : vector<16x16xf32>
    %20 = tpu.matmul %17, %18, %cst_12 {dimension_numbers = #tpu.dot_dimension_numbers<[1], [1], [0], [0], [0, 0, 1, 0], [], []>} : vector<16x128xbf16>, vector<16x128xbf16>, vector<16x16xf32> -> vector<16x16xf32>
    %cst_13 = arith.constant dense<0xFF800000> : vector<16xf32>
    %21 = vector.multi_reduction <maximumf>, %20, %cst_13 [1] : vector<16x16xf32> to vector<16xf32>
    %22 = vector.shape_cast %21 : vector<16xf32> to vector<16x1xf32>
    %23 = vector.broadcast %22 : vector<16x1xf32> to vector<16x16xf32>
    %24 = arith.subf %20, %23 : vector<16x16xf32>
    %25 = math.exp %24 : vector<16x16xf32>
    %cst_14 = arith.constant dense<0.000000e+00> : vector<16xf32>
    %26 = vector.multi_reduction <add>, %25, %cst_14 [1] : vector<16x16xf32> to vector<16xf32>
    %27 = vector.shape_cast %26 : vector<16xf32> to vector<16x1xf32>
    %28 = tpu.reciprocal %27 {approx = true} : vector<16x1xf32> -> vector<16x1xf32>
    %29 = vector.broadcast %28 : vector<16x1xf32> to vector<16x16xf32>
    %30 = arith.mulf %25, %29 : vector<16x16xf32>
    %31 = arith.truncf %30 : vector<16x16xf32> to vector<16x16xbf16>
    %cst_15 = arith.constant dense<0.000000e+00> : vector<16x128xf32>
    %32 = tpu.matmul %31, %19, %cst_15 {dimension_numbers = #tpu.dot_dimension_numbers<[1], [0], [0], [1], [0, 0, 1, 1], [], []>} : vector<16x16xbf16>, vector<16x128xbf16>, vector<16x128xf32> -> vector<16x128xf32>
    %33 = vector.extract_strided_slice %15 {offsets = [0, 128], sizes = [16, 128], strides = [1, 1]} : vector<16x512xbf16> to vector<16x128xbf16>
    %34 = vector.extract_strided_slice %15 {offsets = [0, 384], sizes = [16, 128], strides = [1, 1]} : vector<16x512xbf16> to vector<16x128xbf16>
    %35 = vector.extract_strided_slice %16 {offsets = [0, 128], sizes = [16, 128], strides = [1, 1]} : vector<16x256xbf16> to vector<16x128xbf16>
    %cst_16 = arith.constant dense<0.000000e+00> : vector<16x16xf32>
    %36 = tpu.matmul %33, %34, %cst_16 {dimension_numbers = #tpu.dot_dimension_numbers<[1], [1], [0], [0], [0, 0, 1, 0], [], []>} : vector<16x128xbf16>, vector<16x128xbf16>, vector<16x16xf32> -> vector<16x16xf32>
    %cst_17 = arith.constant dense<0xFF800000> : vector<16xf32>
    %37 = vector.multi_reduction <maximumf>, %36, %cst_17 [1] : vector<16x16xf32> to vector<16xf32>
    %38 = vector.shape_cast %37 : vector<16xf32> to vector<16x1xf32>
    %39 = vector.broadcast %38 : vector<16x1xf32> to vector<16x16xf32>
    %40 = arith.subf %36, %39 : vector<16x16xf32>
    %41 = math.exp %40 : vector<16x16xf32>
    %cst_18 = arith.constant dense<0.000000e+00> : vector<16xf32>
    %42 = vector.multi_reduction <add>, %41, %cst_18 [1] : vector<16x16xf32> to vector<16xf32>
    %43 = vector.shape_cast %42 : vector<16xf32> to vector<16x1xf32>
    %44 = tpu.reciprocal %43 {approx = true} : vector<16x1xf32> -> vector<16x1xf32>
    %45 = vector.broadcast %44 : vector<16x1xf32> to vector<16x16xf32>
    %46 = arith.mulf %41, %45 : vector<16x16xf32>
    %47 = arith.truncf %46 : vector<16x16xf32> to vector<16x16xbf16>
    %cst_19 = arith.constant dense<0.000000e+00> : vector<16x128xf32>
    %48 = tpu.matmul %47, %35, %cst_19 {dimension_numbers = #tpu.dot_dimension_numbers<[1], [0], [0], [1], [0, 0, 1, 1], [], []>} : vector<16x16xbf16>, vector<16x128xbf16>, vector<16x128xf32> -> vector<16x128xf32>
    %49 = tpu.concatenate %32, %48 in 1 : vector<16x128xf32>, vector<16x128xf32> -> vector<16x256xf32>
    %50 = arith.truncf %49 : vector<16x256xf32> to vector<16x256xbf16>
    %c0_20 = arith.constant 0 : index
    %c0_21 = arith.constant 0 : index
    %51 = vector.load %arg7[%c0_20, %c0_21] : memref<256x256xbf16, #tpu.memory_space<vmem>>, vector<256x256xbf16>
    %cst_22 = arith.constant dense<0.000000e+00> : vector<16x256xf32>
    %52 = tpu.matmul %50, %51, %cst_22 {dimension_numbers = #tpu.dot_dimension_numbers<[1], [0], [0], [1], [0, 0, 1, 1], [], []>} : vector<16x256xbf16>, vector<256x256xbf16>, vector<16x256xf32> -> vector<16x256xf32>
    %c0_23 = arith.constant 0 : index
    %c0_24 = arith.constant 0 : index
    %53 = vector.load %arg8[%c0_23, %c0_24] : memref<1x256xf32, #tpu.memory_space<vmem>>, vector<1x256xf32>
    %54 = vector.broadcast %53 : vector<1x256xf32> to vector<16x256xf32>
    %55 = arith.addf %52, %54 : vector<16x256xf32>
    %56 = arith.addf %0, %55 : vector<16x256xf32>
    %cst_25 = arith.constant dense<0.000000e+00> : vector<16xf32>
    %57 = vector.multi_reduction <add>, %56, %cst_25 [1] : vector<16x256xf32> to vector<16xf32>
    %58 = vector.shape_cast %57 : vector<16xf32> to vector<16x1xf32>
    %cst_26 = arith.constant 2.560000e+02 : f32
    %59 = vector.broadcast %cst_26 : f32 to vector<16x1xf32>
    %60 = arith.divf %58, %59 : vector<16x1xf32>
    %61 = vector.broadcast %60 : vector<16x1xf32> to vector<16x256xf32>
    %62 = arith.subf %56, %61 : vector<16x256xf32>
    %63 = vector.broadcast %60 : vector<16x1xf32> to vector<16x256xf32>
    %64 = arith.subf %56, %63 : vector<16x256xf32>
    %65 = arith.mulf %62, %64 : vector<16x256xf32>
    %cst_27 = arith.constant dense<0.000000e+00> : vector<16xf32>
    %66 = vector.multi_reduction <add>, %65, %cst_27 [1] : vector<16x256xf32> to vector<16xf32>
    %67 = vector.shape_cast %66 : vector<16xf32> to vector<16x1xf32>
    %cst_28 = arith.constant 2.560000e+02 : f32
    %68 = vector.broadcast %cst_28 : f32 to vector<16x1xf32>
    %69 = arith.divf %67, %68 : vector<16x1xf32>
    %70 = vector.broadcast %60 : vector<16x1xf32> to vector<16x256xf32>
    %71 = arith.subf %56, %70 : vector<16x256xf32>
    %cst_29 = arith.constant 9.99999974E-6 : f32
    %72 = vector.broadcast %cst_29 : f32 to vector<16x1xf32>
    %73 = arith.addf %69, %72 : vector<16x1xf32>
    %74 = math.rsqrt %73 : vector<16x1xf32>
    %75 = vector.broadcast %74 : vector<16x1xf32> to vector<16x256xf32>
    %76 = arith.mulf %71, %75 : vector<16x256xf32>
    %c0_30 = arith.constant 0 : index
    %c0_31 = arith.constant 0 : index
    %77 = vector.load %arg9[%c0_30, %c0_31] : memref<1x256xf32, #tpu.memory_space<vmem>>, vector<1x256xf32>
    %78 = vector.broadcast %77 : vector<1x256xf32> to vector<16x256xf32>
    %79 = arith.mulf %76, %78 : vector<16x256xf32>
    %c0_32 = arith.constant 0 : index
    %c0_33 = arith.constant 0 : index
    %80 = vector.load %arg10[%c0_32, %c0_33] : memref<1x256xf32, #tpu.memory_space<vmem>>, vector<1x256xf32>
    %81 = vector.broadcast %80 : vector<1x256xf32> to vector<16x256xf32>
    %82 = arith.addf %79, %81 : vector<16x256xf32>
    %83 = arith.truncf %82 : vector<16x256xf32> to vector<16x256xbf16>
    %c0_34 = arith.constant 0 : index
    %c0_35 = arith.constant 0 : index
    %84 = vector.load %arg11[%c0_34, %c0_35] : memref<256x512xbf16, #tpu.memory_space<vmem>>, vector<256x512xbf16>
    %cst_36 = arith.constant dense<0.000000e+00> : vector<16x512xf32>
    %85 = tpu.matmul %83, %84, %cst_36 {dimension_numbers = #tpu.dot_dimension_numbers<[1], [0], [0], [1], [0, 0, 1, 1], [], []>} : vector<16x256xbf16>, vector<256x512xbf16>, vector<16x512xf32> -> vector<16x512xf32>
    %c0_37 = arith.constant 0 : index
    %c0_38 = arith.constant 0 : index
    %86 = vector.load %arg12[%c0_37, %c0_38] : memref<1x512xf32, #tpu.memory_space<vmem>>, vector<1x512xf32>
    %87 = vector.broadcast %86 : vector<1x512xf32> to vector<16x512xf32>
    %88 = arith.addf %85, %87 : vector<16x512xf32>
    %cst_39 = arith.constant 0.000000e+00 : f32
    %89 = vector.broadcast %cst_39 : f32 to vector<16x512xf32>
    %90 = arith.maximumf %88, %89 : vector<16x512xf32>
    %91 = arith.truncf %90 : vector<16x512xf32> to vector<16x512xbf16>
    %c0_40 = arith.constant 0 : index
    %c0_41 = arith.constant 0 : index
    %92 = vector.load %arg13[%c0_40, %c0_41] : memref<512x256xbf16, #tpu.memory_space<vmem>>, vector<512x256xbf16>
    %cst_42 = arith.constant dense<0.000000e+00> : vector<16x256xf32>
    %93 = tpu.matmul %91, %92, %cst_42 {dimension_numbers = #tpu.dot_dimension_numbers<[1], [0], [0], [1], [0, 0, 1, 1], [], []>} : vector<16x512xbf16>, vector<512x256xbf16>, vector<16x256xf32> -> vector<16x256xf32>
    %c0_43 = arith.constant 0 : index
    %c0_44 = arith.constant 0 : index
    %94 = vector.load %arg14[%c0_43, %c0_44] : memref<1x256xf32, #tpu.memory_space<vmem>>, vector<1x256xf32>
    %95 = vector.broadcast %94 : vector<1x256xf32> to vector<16x256xf32>
    %96 = arith.addf %93, %95 : vector<16x256xf32>
    %97 = arith.addf %82, %96 : vector<16x256xf32>
    %cst_45 = arith.constant dense<0.000000e+00> : vector<16xf32>
    %98 = vector.multi_reduction <add>, %97, %cst_45 [1] : vector<16x256xf32> to vector<16xf32>
    %99 = vector.shape_cast %98 : vector<16xf32> to vector<16x1xf32>
    %cst_46 = arith.constant 2.560000e+02 : f32
    %100 = vector.broadcast %cst_46 : f32 to vector<16x1xf32>
    %101 = arith.divf %99, %100 : vector<16x1xf32>
    %102 = vector.broadcast %101 : vector<16x1xf32> to vector<16x256xf32>
    %103 = arith.subf %97, %102 : vector<16x256xf32>
    %104 = vector.broadcast %101 : vector<16x1xf32> to vector<16x256xf32>
    %105 = arith.subf %97, %104 : vector<16x256xf32>
    %106 = arith.mulf %103, %105 : vector<16x256xf32>
    %cst_47 = arith.constant dense<0.000000e+00> : vector<16xf32>
    %107 = vector.multi_reduction <add>, %106, %cst_47 [1] : vector<16x256xf32> to vector<16xf32>
    %108 = vector.shape_cast %107 : vector<16xf32> to vector<16x1xf32>
    %cst_48 = arith.constant 2.560000e+02 : f32
    %109 = vector.broadcast %cst_48 : f32 to vector<16x1xf32>
    %110 = arith.divf %108, %109 : vector<16x1xf32>
    %111 = vector.broadcast %101 : vector<16x1xf32> to vector<16x256xf32>
    %112 = arith.subf %97, %111 : vector<16x256xf32>
    %cst_49 = arith.constant 9.99999974E-6 : f32
    %113 = vector.broadcast %cst_49 : f32 to vector<16x1xf32>
    %114 = arith.addf %110, %113 : vector<16x1xf32>
    %115 = math.rsqrt %114 : vector<16x1xf32>
    %116 = vector.broadcast %115 : vector<16x1xf32> to vector<16x256xf32>
    %117 = arith.mulf %112, %116 : vector<16x256xf32>
    %c0_50 = arith.constant 0 : index
    %c0_51 = arith.constant 0 : index
    %118 = vector.load %arg15[%c0_50, %c0_51] : memref<1x256xf32, #tpu.memory_space<vmem>>, vector<1x256xf32>
    %119 = vector.broadcast %118 : vector<1x256xf32> to vector<16x256xf32>
    %120 = arith.mulf %117, %119 : vector<16x256xf32>
    %c0_52 = arith.constant 0 : index
    %c0_53 = arith.constant 0 : index
    %121 = vector.load %arg16[%c0_52, %c0_53] : memref<1x256xf32, #tpu.memory_space<vmem>>, vector<1x256xf32>
    %122 = vector.broadcast %121 : vector<1x256xf32> to vector<16x256xf32>
    %123 = arith.addf %120, %122 : vector<16x256xf32>
    %c0_54 = arith.constant 0 : index
    %c0_55 = arith.constant 0 : index
    %124 = vector.load %arg17[%c0_54, %c0_55] : memref<16x256xf32, #tpu.memory_space<vmem>>, vector<16x256xf32>
    tpu.vector_store %arg17[%c0_54, %c0_55], %123 {strides = array<i32>} : memref<16x256xf32, #tpu.memory_space<vmem>>, vector<16x256xf32>,
    return
  }
  func.func @transform_0(%arg0: i32) -> (i32, i32) {
    %c0_i32 = arith.constant 0 : i32
    %c0_i32_0 = arith.constant 0 : i32
    return %arg0, %c0_i32 : i32, i32
  }
  func.func @transform_1(%arg0: i32) -> (i32, i32) {
    %c0_i32 = arith.constant 0 : i32
    %c0_i32_0 = arith.constant 0 : i32
    return %arg0, %c0_i32 : i32, i32
  }
  func.func @transform_2(%arg0: i32) -> (i32, i32) {
    %c0_i32 = arith.constant 0 : i32
    %c0_i32_0 = arith.constant 0 : i32
    %c0_i32_1 = arith.constant 0 : i32
    return %c0_i32, %c0_i32_0 : i32, i32
  }
  func.func @transform_3(%arg0: i32) -> (i32, i32) {
    %c0_i32 = arith.constant 0 : i32
    %c0_i32_0 = arith.constant 0 : i32
    %c0_i32_1 = arith.constant 0 : i32
    return %c0_i32, %c0_i32_0 : i32, i32
  }
  func.func @transform_4(%arg0: i32) -> (i32, i32) {
    %c0_i32 = arith.constant 0 : i32
    %c0_i32_0 = arith.constant 0 : i32
    %c0_i32_1 = arith.constant 0 : i32
    return %c0_i32, %c0_i32_0 : i32, i32
  }
  func.func @transform_5(%arg0: i32) -> (i32, i32) {
    %c0_i32 = arith.constant 0 : i32
    %c0_i32_0 = arith.constant 0 : i32
    %c0_i32_1 = arith.constant 0 : i32
    return %c0_i32, %c0_i32_0 : i32, i32
  }
  func.func @transform_6(%arg0: i32) -> (i32, i32) {
    %c0_i32 = arith.constant 0 : i32
    %c0_i32_0 = arith.constant 0 : i32
    %c0_i32_1 = arith.constant 0 : i32
    return %c0_i32, %c0_i32_0 : i32, i32
  }
  func.func @transform_7(%arg0: i32) -> (i32, i32) {
    %c0_i32 = arith.constant 0 : i32
    %c0_i32_0 = arith.constant 0 : i32
    %c0_i32_1 = arith.constant 0 : i32
    return %c0_i32, %c0_i32_0 : i32, i32
  }
  func.func @transform_8(%arg0: i32) -> (i32, i32) {
    %c0_i32 = arith.constant 0 : i32
    %c0_i32_0 = arith.constant 0 : i32
    %c0_i32_1 = arith.constant 0 : i32
    return %c0_i32, %c0_i32_0 : i32, i32
  }
  func.func @transform_9(%arg0: i32) -> (i32, i32) {
    %c0_i32 = arith.constant 0 : i32
    %c0_i32_0 = arith.constant 0 : i32
    %c0_i32_1 = arith.constant 0 : i32
    return %c0_i32, %c0_i32_0 : i32, i32
  }
  func.func @transform_10(%arg0: i32) -> (i32, i32) {
    %c0_i32 = arith.constant 0 : i32
    %c0_i32_0 = arith.constant 0 : i32
    %c0_i32_1 = arith.constant 0 : i32
    return %c0_i32, %c0_i32_0 : i32, i32
  }
  func.func @transform_11(%arg0: i32) -> (i32, i32) {
    %c0_i32 = arith.constant 0 : i32
    %c0_i32_0 = arith.constant 0 : i32
    %c0_i32_1 = arith.constant 0 : i32
    return %c0_i32, %c0_i32_0 : i32, i32
  }
  func.func @transform_12(%arg0: i32) -> (i32, i32) {
    %c0_i32 = arith.constant 0 : i32
    %c0_i32_0 = arith.constant 0 : i32
    %c0_i32_1 = arith.constant 0 : i32
    return %c0_i32, %c0_i32_0 : i32, i32
  }
  func.func @transform_13(%arg0: i32) -> (i32, i32) {
    %c0_i32 = arith.constant 0 : i32
    %c0_i32_0 = arith.constant 0 : i32
    %c0_i32_1 = arith.constant 0 : i32
    return %c0_i32, %c0_i32_0 : i32, i32
  }
  func.func @transform_14(%arg0: i32) -> (i32, i32) {
    %c0_i32 = arith.constant 0 : i32
    %c0_i32_0 = arith.constant 0 : i32
    %c0_i32_1 = arith.constant 0 : i32
    return %c0_i32, %c0_i32_0 : i32, i32
  }
  func.func @transform_15(%arg0: i32) -> (i32, i32) {
    %c0_i32 = arith.constant 0 : i32
    %c0_i32_0 = arith.constant 0 : i32
    %c0_i32_1 = arith.constant 0 : i32
    return %c0_i32, %c0_i32_0 : i32, i32
  }
  func.func @transform_16(%arg0: i32) -> (i32, i32) {
    %c0_i32 = arith.constant 0 : i32
    %c0_i32_0 = arith.constant 0 : i32
    return %arg0, %c0_i32 : i32, i32
  }
}

</mosaic_0001>

<llo_original>
// kernel: tpu_custom_call.1
$region0: #{tpu_custom_call.1}
  #allocation0 [shape = 'u32[]', space=smem, size = 0x4, offset = 0x4, fixed_abs, tag = 'smem constant byte address 0x4 - core index']
  #allocation1 [shape = 'u32[72,128]{1,0:T(1,128)}', space=vmem, size = 0x9000, scoped, tag = 'internal scratch']
  %s0 = inlined_call_operand.hbm [shape: f32[32,256], index: 0, kind: input, shape index: {}]
  %s1 = inlined_call_operand.hbm [shape: f32[32,256], index: 1, kind: input, shape index: {}]
  %s2 = inlined_call_operand.hbm [shape: bf16[256,512], index: 2, kind: input, shape index: {}]
  %s3 = inlined_call_operand.hbm [shape: f32[1,512], index: 3, kind: input, shape index: {}]
  %s4 = inlined_call_operand.hbm [shape: bf16[256,256], index: 4, kind: input, shape index: {}]
  %s5 = inlined_call_operand.vmem [shape: f32[1,256], index: 5, kind: input, shape index: {}]
  %s6 = inlined_call_operand.hbm [shape: bf16[256,256], index: 6, kind: input, shape index: {}]
  %s7 = inlined_call_operand.hbm [shape: f32[1,256], index: 7, kind: input, shape index: {}]
  %s8 = inlined_call_operand.hbm [shape: f32[1,256], index: 8, kind: input, shape index: {}]
  %s9 = inlined_call_operand.vmem [shape: f32[1,256], index: 9, kind: input, shape index: {}]
  %s10 = inlined_call_operand.hbm [shape: bf16[256,512], index: 10, kind: input, shape index: {}]
  %s11 = inlined_call_operand.vmem [shape: f32[1,512], index: 11, kind: input, shape index: {}]
  %s12 = inlined_call_operand.hbm [shape: bf16[512,256], index: 12, kind: input, shape index: {}]
  %s13 = inlined_call_operand.vmem [shape: f32[1,256], index: 13, kind: input, shape index: {}]
  %s14 = inlined_call_operand.vmem [shape: f32[1,256], index: 14, kind: input, shape index: {}]
  %s15 = inlined_call_operand.vmem [shape: f32[1,256], index: 15, kind: input, shape index: {}]
  %s16 = inlined_call_operand.hbm [shape: f32[32,256], index: 16, kind: output, shape index: {}]
  %s17 = sld [smem:[#allocation0]]
  $region137: #{tpu_custom_call.1} parent=0
    _
  %s19 = ssub.s32 1, %s17
  %s20 = scalar_select 0, %s19, %s17
  $region1: #{tpu_custom_call.1} parent=0
    #allocation2 [shape = 'u8[32768]{0}', space=vmem, size = 0x8000, scoped, tag = 'input window, operand 0']
    #allocation3 [shape = 's32[2]{0}', space=sflag, size = 0x8, scoped, tag = 'scoped memory for tpu_custom_call.1']
    #allocation4 [shape = 's32[2]{0}', space=sflag, size = 0x8, scoped, tag = 'scoped memory for tpu_custom_call.1']
    #allocation5 [shape = 'u8[32768]{0}', space=vmem, size = 0x8000, scoped, tag = 'input window, operand 1']
    #allocation6 [shape = 's32[2]{0}', space=sflag, size = 0x8, scoped, tag = 'scoped memory for tpu_custom_call.1']
    #allocation7 [shape = 'u8[262144]{0}', space=vmem, size = 0x40000, scoped, tag = 'input window, operand 2, single buffered']
    #allocation8 [shape = 'u8[2048]{0}', space=vmem, size = 0x800, scoped, tag = 'input window, operand 3, single buffered']
    #allocation9 [shape = 's32[1]{0}', space=sflag, size = 0x4, scoped, tag = 'scoped memory for tpu_custom_call.1']
    #allocation10 [shape = 'u8[131072]{0}', space=vmem, size = 0x20000, scoped, tag = 'input window, operand 4, single buffered']
    #allocation11 [shape = 'u8[131072]{0}', space=vmem, size = 0x20000, scoped, tag = 'input window, operand 6, single buffered']
    #allocation12 [shape = 's32[1]{0}', space=sflag, size = 0x4, scoped, tag = 'scoped memory for tpu_custom_call.1']
    #allocation13 [shape = 'u8[1024]{0}', space=vmem, size = 0x400, scoped, tag = 'input window, operand 7, single buffered']
    #allocation14 [shape = 'u8[1024]{0}', space=vmem, size = 0x400, scoped, tag = 'input window, operand 8, single buffered']
    #allocation15 [shape = 's32[1]{0}', space=sflag, size = 0x4, scoped, tag = 'scoped memory for tpu_custom_call.1']
    #allocation16 [shape = 'u8[262144]{0}', space=vmem, size = 0x40000, scoped, tag = 'input window, operand 10, single buffered']
    #allocation17 [shape = 'u8[262144]{0}', space=vmem, size = 0x40000, scoped, tag = 'input window, operand 12, single buffered']
    #allocation18 [shape = 's32[1]{0}', space=sflag, size = 0x4, scoped, tag = 'scoped memory for tpu_custom_call.1']
    #allocation19 [shape = 'u8[32768]{0}', space=vmem, size = 0x8000, scoped, tag = 'output window, operand 0']
    %21 = vsyncpa [#allocation3], 0
    %s22 = scalar_lea.sflag [#allocation3], 1
    %23 = vsyncpa %s22, 0
    %24 = vsyncpa [#allocation6], 0
    %s25 = scalar_lea.sflag [#allocation6], 1
    %26 = vsyncpa %s25, 0
    %27 = vsyncpa [#allocation9], 0
    %28 = vsyncpa [#allocation12], 0
    %29 = vsyncpa [#allocation15], 0
    %30 = vsyncpa [#allocation18], 0
    %31 = vsyncpa [#allocation4], 0
    %s32 = scalar_lea.sflag [#allocation4], 1
    %33 = vsyncpa %s32, 0
    loop: start=0, step=1, limit=4
    $region2: #{tpu_custom_call.1} parent=1 // loop_pre_header
      _
    $region3: #{tpu_custom_call.1} parent=1 // loop_header
      %s35 = sphi 0, %s39
      %p36 = scmp.ge.s32.totalorder %s35, 4
      %s45 = sphi 0, %s47
      %s48 = sphi 0, %s45
      %s49 = sphi 0, %s48
      %s65 = sphi 0, %s49
      %s71 = sphi 0, %s73
      %s74 = sphi 0, %s71
      %s75 = sphi 0, %s74
      %s91 = sphi 0, %s75
      %s95 = sphi 0, %s95
      %s97 = sphi 0, %s95
      %s98 = sphi 0, %s97
      %s112 = sphi 0, %s98
      %s116 = sphi 0, %s116
      %s118 = sphi 0, %s116
      %s119 = sphi 0, %s118
      %s133 = sphi 0, %s119
      %s137 = sphi 0, %s137
      %s139 = sphi 0, %s137
      %s140 = sphi 0, %s139
      %s154 = sphi 0, %s140
      %s158 = sphi 0, %s158
      %s160 = sphi 0, %s158
      %s161 = sphi 0, %s160
      %s175 = sphi 0, %s161
      %s179 = sphi 0, %s179
      %s181 = sphi 0, %s179
      %s182 = sphi 0, %s181
      %s196 = sphi 0, %s182
      %s200 = sphi 0, %s200
      %s202 = sphi 0, %s200
      %s203 = sphi 0, %s202
      %s217 = sphi 0, %s203
      %s221 = sphi 0, %s221
      %s223 = sphi 0, %s221
      %s224 = sphi 0, %s223
      %s238 = sphi 0, %s224
      %s242 = sphi 0, %s242
      %s244 = sphi 0, %s242
      %s245 = sphi 0, %s244
      %s259 = sphi 0, %s245
      %s263 = sphi 0, %s263
      %s265 = sphi 0, %s263
      %s266 = sphi 0, %s265
      %s280 = sphi 0, %s266
      %s284 = sphi 0, %s284
      %s286 = sphi 0, %s284
      %s287 = sphi 0, %s286
      %s301 = sphi 0, %s287
      %s305 = sphi 0, %s305
      %s307 = sphi 0, %s305
      %s308 = sphi 0, %s307
      %s322 = sphi 0, %s308
      %s326 = sphi 0, %s326
      %s328 = sphi 0, %s326
      %s329 = sphi 0, %s328
      %s343 = sphi 0, %s329
      %s347 = sphi 0, %s347
      %s349 = sphi 0, %s347
      %s350 = sphi 0, %s349
      %s364 = sphi 0, %s350
      %s368 = sphi 0, %s368
      %s370 = sphi 0, %s368
      %s371 = sphi 0, %s370
      %s385 = sphi 0, %s371
      %s391 = sphi 0, %s393
      %s394 = sphi 0, %s391
      %s395 = sphi 0, %s394
      %s411 = sphi 0, %s395
    $region4: #{tpu_custom_call.1} parent=1 // loop_header_branch
      %38 = sbr.rel (%p36) target = $region8
    $region5: #{tpu_custom_call.1} parent=1 // loop_body
      %s40 = ssub.s32 %s35, 1
      %s41 = ssub.s32 %s35, 2
      %s42 = sadd.s32 %s35, 1
      %s43 = ssub.s32 %s35, %s42
      %p44 = scmp.eq.s32.totalorder %s43, 0
      %s46 = sadd.s32 %s45, 1
      %s47 = scalar_select %p44, %s45, %s46
      %p50 = pneg %p44
      %p51 = scmp.eq.s32.totalorder %s35, 1
      %p52 = por %p50, %p51
      %p53 = scmp.ne.s32.totalorder %s45, %s48
      %p54 = scmp.eq.s32.totalorder %s35, 0
      %p55 = por %p53, %p54
      %p56 = scmp.ne.s32.totalorder %s45, %s48
      %p57 = scmp.eq.s32.totalorder %s40, 1
      %p58 = por %p56, %p57
      %p59 = scmp.ne.s32.totalorder %s48, %s49
      %p60 = scmp.eq.s32.totalorder %s40, 0
      %p61 = por %p59, %p60
      %p62 = scmp.ne.s32.totalorder %s48, %s49
      %p63 = scmp.eq.s32.totalorder %s41, 1
      %p64 = por %p62, %p63
      %p66 = scmp.ne.s32.totalorder %s49, %s65
      %p67 = scmp.eq.s32.totalorder %s41, 0
      %p68 = por %p66, %p67
      %s69 = ssub.s32 %s35, %s42
      %p70 = scmp.eq.s32.totalorder %s69, 0
      %s72 = sadd.s32 %s71, 1
      %s73 = scalar_select %p70, %s71, %s72
      %p76 = pneg %p70
      %p77 = scmp.eq.s32.totalorder %s35, 1
      %p78 = por %p76, %p77
      %p79 = scmp.ne.s32.totalorder %s71, %s74
      %p80 = scmp.eq.s32.totalorder %s35, 0
      %p81 = por %p79, %p80
      %p82 = scmp.ne.s32.totalorder %s71, %s74
      %p83 = scmp.eq.s32.totalorder %s40, 1
      %p84 = por %p82, %p83
      %p85 = scmp.ne.s32.totalorder %s74, %s75
      %p86 = scmp.eq.s32.totalorder %s40, 0
      %p87 = por %p85, %p86
      %p88 = scmp.ne.s32.totalorder %s74, %s75
      %p89 = scmp.eq.s32.totalorder %s41, 1
      %p90 = por %p88, %p89
      %p92 = scmp.ne.s32.totalorder %s75, %s91
      %p93 = scmp.eq.s32.totalorder %s41, 0
      %p94 = por %p92, %p93
      %s96 = sadd.s32 %s95, 1
      %p99 = scmp.eq.s32.totalorder %s35, 1
      %p100 = scmp.ne.s32.totalorder %s95, %s97
      %p101 = scmp.eq.s32.totalorder %s35, 0
      %p102 = por %p100, %p101
      %p103 = scmp.ne.s32.totalorder %s95, %s97
      %p104 = scmp.eq.s32.totalorder %s40, 1
      %p105 = por %p103, %p104
      %p106 = scmp.ne.s32.totalorder %s97, %s98
      %p107 = scmp.eq.s32.totalorder %s40, 0
      %p108 = por %p106, %p107
      %p109 = scmp.ne.s32.totalorder %s97, %s98
      %p110 = scmp.eq.s32.totalorder %s41, 1
      %p111 = por %p109, %p110
      %p113 = scmp.ne.s32.totalorder %s98, %s112
      %p114 = scmp.eq.s32.totalorder %s41, 0
      %p115 = por %p113, %p114
      %s117 = sadd.s32 %s116, 1
      %p120 = scmp.eq.s32.totalorder %s35, 1
      %p121 = scmp.ne.s32.totalorder %s116, %s118
      %p122 = scmp.eq.s32.totalorder %s35, 0
      %p123 = por %p121, %p122
      %p124 = scmp.ne.s32.totalorder %s116, %s118
      %p125 = scmp.eq.s32.totalorder %s40, 1
      %p126 = por %p124, %p125
      %p127 = scmp.ne.s32.totalorder %s118, %s119
      %p128 = scmp.eq.s32.totalorder %s40, 0
      %p129 = por %p127, %p128
      %p130 = scmp.ne.s32.totalorder %s118, %s119
      %p131 = scmp.eq.s32.totalorder %s41, 1
      %p132 = por %p130, %p131
      %p134 = scmp.ne.s32.totalorder %s119, %s133
      %p135 = scmp.eq.s32.totalorder %s41, 0
      %p136 = por %p134, %p135
      %s138 = sadd.s32 %s137, 1
      %p141 = scmp.eq.s32.totalorder %s35, 1
      %p142 = scmp.ne.s32.totalorder %s137, %s139
      %p143 = scmp.eq.s32.totalorder %s35, 0
      %p144 = por %p142, %p143
      %p145 = scmp.ne.s32.totalorder %s137, %s139
      %p146 = scmp.eq.s32.totalorder %s40, 1
      %p147 = por %p145, %p146
      %p148 = scmp.ne.s32.totalorder %s139, %s140
      %p149 = scmp.eq.s32.totalorder %s40, 0
      %p150 = por %p148, %p149
      %p151 = scmp.ne.s32.totalorder %s139, %s140
      %p152 = scmp.eq.s32.totalorder %s41, 1
      %p153 = por %p151, %p152
      %p155 = scmp.ne.s32.totalorder %s140, %s154
      %p156 = scmp.eq.s32.totalorder %s41, 0
      %p157 = por %p155, %p156
      %s159 = sadd.s32 %s158, 1
      %p162 = scmp.eq.s32.totalorder %s35, 1
      %p163 = scmp.ne.s32.totalorder %s158, %s160
      %p164 = scmp.eq.s32.totalorder %s35, 0
      %p165 = por %p163, %p164
      %p166 = scmp.ne.s32.totalorder %s158, %s160
      %p167 = scmp.eq.s32.totalorder %s40, 1
      %p168 = por %p166, %p167
      %p169 = scmp.ne.s32.totalorder %s160, %s161
      %p170 = scmp.eq.s32.totalorder %s40, 0
      %p171 = por %p169, %p170
      %p172 = scmp.ne.s32.totalorder %s160, %s161
      %p173 = scmp.eq.s32.totalorder %s41, 1
      %p174 = por %p172, %p173
      %p176 = scmp.ne.s32.totalorder %s161, %s175
      %p177 = scmp.eq.s32.totalorder %s41, 0
      %p178 = por %p176, %p177
      %s180 = sadd.s32 %s179, 1
      %p183 = scmp.eq.s32.totalorder %s35, 1
      %p184 = scmp.ne.s32.totalorder %s179, %s181
      %p185 = scmp.eq.s32.totalorder %s35, 0
      %p186 = por %p184, %p185
      %p187 = scmp.ne.s32.totalorder %s179, %s181
      %p188 = scmp.eq.s32.totalorder %s40, 1
      %p189 = por %p187, %p188
      %p190 = scmp.ne.s32.totalorder %s181, %s182
      %p191 = scmp.eq.s32.totalorder %s40, 0
      %p192 = por %p190, %p191
      %p193 = scmp.ne.s32.totalorder %s181, %s182
      %p194 = scmp.eq.s32.totalorder %s41, 1
      %p195 = por %p193, %p194
      %p197 = scmp.ne.s32.totalorder %s182, %s196
      %p198 = scmp.eq.s32.totalorder %s41, 0
      %p199 = por %p197, %p198
      %s201 = sadd.s32 %s200, 1
      %p204 = scmp.eq.s32.totalorder %s35, 1
      %p205 = scmp.ne.s32.totalorder %s200, %s202
      %p206 = scmp.eq.s32.totalorder %s35, 0
      %p207 = por %p205, %p206
      %p208 = scmp.ne.s32.totalorder %s200, %s202
      %p209 = scmp.eq.s32.totalorder %s40, 1
      %p210 = por %p208, %p209
      %p211 = scmp.ne.s32.totalorder %s202, %s203
      %p212 = scmp.eq.s32.totalorder %s40, 0
      %p213 = por %p211, %p212
      %p214 = scmp.ne.s32.totalorder %s202, %s203
      %p215 = scmp.eq.s32.totalorder %s41, 1
      %p216 = por %p214, %p215
      %p218 = scmp.ne.s32.totalorder %s203, %s217
      %p219 = scmp.eq.s32.totalorder %s41, 0
      %p220 = por %p218, %p219
      %s222 = sadd.s32 %s221, 1
      %p225 = scmp.eq.s32.totalorder %s35, 1
      %p226 = scmp.ne.s32.totalorder %s221, %s223
      %p227 = scmp.eq.s32.totalorder %s35, 0
      %p228 = por %p226, %p227
      %p229 = scmp.ne.s32.totalorder %s221, %s223
      %p230 = scmp.eq.s32.totalorder %s40, 1
      %p231 = por %p229, %p230
      %p232 = scmp.ne.s32.totalorder %s223, %s224
      %p233 = scmp.eq.s32.totalorder %s40, 0
      %p234 = por %p232, %p233
      %p235 = scmp.ne.s32.totalorder %s223, %s224
      %p236 = scmp.eq.s32.totalorder %s41, 1
      %p237 = por %p235, %p236
      %p239 = scmp.ne.s32.totalorder %s224, %s238
      %p240 = scmp.eq.s32.totalorder %s41, 0
      %p241 = por %p239, %p240
      %s243 = sadd.s32 %s242, 1
      %p246 = scmp.eq.s32.totalorder %s35, 1
      %p247 = scmp.ne.s32.totalorder %s242, %s244
      %p248 = scmp.eq.s32.totalorder %s35, 0
      %p249 = por %p247, %p248
      %p250 = scmp.ne.s32.totalorder %s242, %s244
      %p251 = scmp.eq.s32.totalorder %s40, 1
      %p252 = por %p250, %p251
      %p253 = scmp.ne.s32.totalorder %s244, %s245
      %p254 = scmp.eq.s32.totalorder %s40, 0
      %p255 = por %p253, %p254
      %p256 = scmp.ne.s32.totalorder %s244, %s245
      %p257 = scmp.eq.s32.totalorder %s41, 1
      %p258 = por %p256, %p257
      %p260 = scmp.ne.s32.totalorder %s245, %s259
      %p261 = scmp.eq.s32.totalorder %s41, 0
      %p262 = por %p260, %p261
      %s264 = sadd.s32 %s263, 1
      %p267 = scmp.eq.s32.totalorder %s35, 1
      %p268 = scmp.ne.s32.totalorder %s263, %s265
      %p269 = scmp.eq.s32.totalorder %s35, 0
      %p270 = por %p268, %p269
      %p271 = scmp.ne.s32.totalorder %s263, %s265
      %p272 = scmp.eq.s32.totalorder %s40, 1
      %p273 = por %p271, %p272
      %p274 = scmp.ne.s32.totalorder %s265, %s266
      %p275 = scmp.eq.s32.totalorder %s40, 0
      %p276 = por %p274, %p275
      %p277 = scmp.ne.s32.totalorder %s265, %s266
      %p278 = scmp.eq.s32.totalorder %s41, 1
      %p279 = por %p277, %p278
      %p281 = scmp.ne.s32.totalorder %s266, %s280
      %p282 = scmp.eq.s32.totalorder %s41, 0
      %p283 = por %p281, %p282
      %s285 = sadd.s32 %s284, 1
      %p288 = scmp.eq.s32.totalorder %s35, 1
      %p289 = scmp.ne.s32.totalorder %s284, %s286
      %p290 = scmp.eq.s32.totalorder %s35, 0
      %p291 = por %p289, %p290
      %p292 = scmp.ne.s32.totalorder %s284, %s286
      %p293 = scmp.eq.s32.totalorder %s40, 1
      %p294 = por %p292, %p293
      %p295 = scmp.ne.s32.totalorder %s286, %s287
      %p296 = scmp.eq.s32.totalorder %s40, 0
      %p297 = por %p295, %p296
      %p298 = scmp.ne.s32.totalorder %s286, %s287
      %p299 = scmp.eq.s32.totalorder %s41, 1
      %p300 = por %p298, %p299
      %p302 = scmp.ne.s32.totalorder %s287, %s301
      %p303 = scmp.eq.s32.totalorder %s41, 0
      %p304 = por %p302, %p303
      %s306 = sadd.s32 %s305, 1
      %p309 = scmp.eq.s32.totalorder %s35, 1
      %p310 = scmp.ne.s32.totalorder %s305, %s307
      %p311 = scmp.eq.s32.totalorder %s35, 0
      %p312 = por %p310, %p311
      %p313 = scmp.ne.s32.totalorder %s305, %s307
      %p314 = scmp.eq.s32.totalorder %s40, 1
      %p315 = por %p313, %p314
      %p316 = scmp.ne.s32.totalorder %s307, %s308
      %p317 = scmp.eq.s32.totalorder %s40, 0
      %p318 = por %p316, %p317
      %p319 = scmp.ne.s32.totalorder %s307, %s308
      %p320 = scmp.eq.s32.totalorder %s41, 1
      %p321 = por %p319, %p320
      %p323 = scmp.ne.s32.totalorder %s308, %s322
      %p324 = scmp.eq.s32.totalorder %s41, 0
      %p325 = por %p323, %p324
      %s327 = sadd.s32 %s326, 1
      %p330 = scmp.eq.s32.totalorder %s35, 1
      %p331 = scmp.ne.s32.totalorder %s326, %s328
      %p332 = scmp.eq.s32.totalorder %s35, 0
      %p333 = por %p331, %p332
      %p334 = scmp.ne.s32.totalorder %s326, %s328
      %p335 = scmp.eq.s32.totalorder %s40, 1
      %p336 = por %p334, %p335
      %p337 = scmp.ne.s32.totalorder %s328, %s329
      %p338 = scmp.eq.s32.totalorder %s40, 0
      %p339 = por %p337, %p338
      %p340 = scmp.ne.s32.totalorder %s328, %s329
      %p341 = scmp.eq.s32.totalorder %s41, 1
      %p342 = por %p340, %p341
      %p344 = scmp.ne.s32.totalorder %s329, %s343
      %p345 = scmp.eq.s32.totalorder %s41, 0
      %p346 = por %p344, %p345
      %s348 = sadd.s32 %s347, 1
      %p351 = scmp.eq.s32.totalorder %s35, 1
      %p352 = scmp.ne.s32.totalorder %s347, %s349
      %p353 = scmp.eq.s32.totalorder %s35, 0
      %p354 = por %p352, %p353
      %p355 = scmp.ne.s32.totalorder %s347, %s349
      %p356 = scmp.eq.s32.totalorder %s40, 1
      %p357 = por %p355, %p356
      %p358 = scmp.ne.s32.totalorder %s349, %s350
      %p359 = scmp.eq.s32.totalorder %s40, 0
      %p360 = por %p358, %p359
      %p361 = scmp.ne.s32.totalorder %s349, %s350
      %p362 = scmp.eq.s32.totalorder %s41, 1
      %p363 = por %p361, %p362
      %p365 = scmp.ne.s32.totalorder %s350, %s364
      %p366 = scmp.eq.s32.totalorder %s41, 0
      %p367 = por %p365, %p366
      %s369 = sadd.s32 %s368, 1
      %p372 = scmp.eq.s32.totalorder %s35, 1
      %p373 = scmp.ne.s32.totalorder %s368, %s370
      %p374 = scmp.eq.s32.totalorder %s35, 0
      %p375 = por %p373, %p374
      %p376 = scmp.ne.s32.totalorder %s368, %s370
      %p377 = scmp.eq.s32.totalorder %s40, 1
      %p378 = por %p376, %p377
      %p379 = scmp.ne.s32.totalorder %s370, %s371
      %p380 = scmp.eq.s32.totalorder %s40, 0
      %p381 = por %p379, %p380
      %p382 = scmp.ne.s32.totalorder %s370, %s371
      %p383 = scmp.eq.s32.totalorder %s41, 1
      %p384 = por %p382, %p383
      %p386 = scmp.ne.s32.totalorder %s371, %s385
      %p387 = scmp.eq.s32.totalorder %s41, 0
      %p388 = por %p386, %p387
      %s389 = ssub.s32 %s35, %s42
      %p390 = scmp.eq.s32.totalorder %s389, 0
      %s392 = sadd.s32 %s391, 1
      %s393 = scalar_select %p390, %s391, %s392
      %p396 = pneg %p390
      %p397 = scmp.eq.s32.totalorder %s35, 1
      %p398 = por %p396, %p397
      %p399 = scmp.ne.s32.totalorder %s391, %s394
      %p400 = scmp.eq.s32.totalorder %s35, 0
      %p401 = por %p399, %p400
      %p402 = scmp.ne.s32.totalorder %s391, %s394
      %p403 = scmp.eq.s32.totalorder %s40, 1
      %p404 = por %p402, %p403
      %p405 = scmp.ne.s32.totalorder %s394, %s395
      %p406 = scmp.eq.s32.totalorder %s40, 0
      %p407 = por %p405, %p406
      %p408 = scmp.ne.s32.totalorder %s394, %s395
      %p409 = scmp.eq.s32.totalorder %s41, 1
      %p410 = por %p408, %p409
      %p412 = scmp.ne.s32.totalorder %s395, %s411
      %p413 = scmp.eq.s32.totalorder %s41, 0
      %p414 = por %p412, %p413
      %p415 = scmp.le.s32.totalorder 1, %s35
      %p416 = scmp.lt.s32.totalorder %s35, 3
      %p417 = pnand %p415, %p416
      %p418 = pneg %p417
      // Predicated region
      $region9: #{tpu_custom_call.1} parent=5 // pred_check
        _
      $region10: #{tpu_custom_call.1} parent=5 // pred_check_branch
        %420 = sbr.rel (%p417) target = $region12
      $region11: #{tpu_custom_call.1} parent=5 // pred_region
        %s421 = ssub.s32 %s35, 1
        // Predicated region
        $region13: #{tpu_custom_call.1} parent=11 // pred_check
          %p422 = pneg %p108
        $region14: #{tpu_custom_call.1} parent=11 // pred_check_branch
          %424 = sbr.rel (%p422) target = $region16
        $region15: #{tpu_custom_call.1} parent=11 // pred_region
          %426 = vsyncadd [#allocation6], 0
          %s427 = sshll.u32 %s2, 4
          %s428 = int_to_ptr.hbm [resolvable:$true] %s427
          %s429 = sshll.u32 [#allocation7], 4
          %s430 = int_to_ptr.vmem [resolvable:$true] %s429
          %435 = dma.hbm_to_vmem [thread:$0]  %s428, 8192, %s430, [#allocation6], 256, 256, 16
        $region16: #{tpu_custom_call.1} parent=11 // pred_fallthru
          _
        // Predicated region
        $region17: #{tpu_custom_call.1} parent=11 // pred_check
          %p436 = pneg %p129
        $region18: #{tpu_custom_call.1} parent=11 // pred_check_branch
          %438 = sbr.rel (%p436) target = $region20
        $region19: #{tpu_custom_call.1} parent=11 // pred_region
          %440 = vsyncadd [#allocation9], 0
          %s442 = sshll.u32 %s3, 4
          %s443 = int_to_ptr.hbm [resolvable:$true] %s442
          %s444 = sshll.u32 [#allocation8], 4
          %s445 = int_to_ptr.vmem [resolvable:$true] %s444
          %447 = dma.hbm_to_vmem [thread:$0]  %s443, 64, %s445, [#allocation9]
        $region20: #{tpu_custom_call.1} parent=11 // pred_fallthru
          _
        // Predicated region
        $region21: #{tpu_custom_call.1} parent=11 // pred_check
          %p448 = pneg %p150
        $region22: #{tpu_custom_call.1} parent=11 // pred_check_branch
          %450 = sbr.rel (%p448) target = $region24
        $region23: #{tpu_custom_call.1} parent=11 // pred_region
          %452 = vsyncadd [#allocation9], 0
          %s453 = sshll.u32 %s4, 4
          %s454 = int_to_ptr.hbm [resolvable:$true] %s453
          %s455 = sshll.u32 [#allocation10], 4
          %s456 = int_to_ptr.vmem [resolvable:$true] %s455
          %461 = dma.hbm_to_vmem [thread:$0]  %s454, 4096, %s456, [#allocation9], 128, 128, 8
        $region24: #{tpu_custom_call.1} parent=11 // pred_fallthru
          _
        // Predicated region
        $region25: #{tpu_custom_call.1} parent=11 // pred_check
          %p462 = pneg %p171
        $region26: #{tpu_custom_call.1} parent=11 // pred_check_branch
          %464 = sbr.rel (%p462) target = $region28
        $region27: #{tpu_custom_call.1} parent=11 // pred_region
          _
        $region28: #{tpu_custom_call.1} parent=11 // pred_fallthru
          _
        // Predicated region
        $region29: #{tpu_custom_call.1} parent=11 // pred_check
          %p465 = pneg %p192
        $region30: #{tpu_custom_call.1} parent=11 // pred_check_branch
          %467 = sbr.rel (%p465) target = $region32
        $region31: #{tpu_custom_call.1} parent=11 // pred_region
          %469 = vsyncadd [#allocation12], 0
          %s470 = sshll.u32 %s6, 4
          %s471 = int_to_ptr.hbm [resolvable:$true] %s470
          %s472 = sshll.u32 [#allocation11], 4
          %s473 = int_to_ptr.vmem [resolvable:$true] %s472
          %478 = dma.hbm_to_vmem [thread:$0]  %s471, 4096, %s473, [#allocation12], 128, 128, 8
        $region32: #{tpu_custom_call.1} parent=11 // pred_fallthru
          _
        // Predicated region
        $region33: #{tpu_custom_call.1} parent=11 // pred_check
          %p479 = pneg %p213
        $region34: #{tpu_custom_call.1} parent=11 // pred_check_branch
          %481 = sbr.rel (%p479) target = $region36
        $region35: #{tpu_custom_call.1} parent=11 // pred_region
          %483 = vsyncadd [#allocation12], 0
          %s485 = sshll.u32 %s7, 4
          %s486 = int_to_ptr.hbm [resolvable:$true] %s485
          %s487 = sshll.u32 [#allocation13], 4
          %s488 = int_to_ptr.vmem [resolvable:$true] %s487
          %490 = dma.hbm_to_vmem [thread:$0]  %s486, 32, %s488, [#allocation12]
        $region36: #{tpu_custom_call.1} parent=11 // pred_fallthru
          _
        // Predicated region
        $region37: #{tpu_custom_call.1} parent=11 // pred_check
          %p491 = pneg %p234
        $region38: #{tpu_custom_call.1} parent=11 // pred_check_branch
          %493 = sbr.rel (%p491) target = $region40
        $region39: #{tpu_custom_call.1} parent=11 // pred_region
          %495 = vsyncadd [#allocation15], 0
          %s497 = sshll.u32 %s8, 4
          %s498 = int_to_ptr.hbm [resolvable:$true] %s497
          %s499 = sshll.u32 [#allocation14], 4
          %s500 = int_to_ptr.vmem [resolvable:$true] %s499
          %502 = dma.hbm_to_vmem [thread:$0]  %s498, 32, %s500, [#allocation15]
        $region40: #{tpu_custom_call.1} parent=11 // pred_fallthru
          _
        // Predicated region
        $region41: #{tpu_custom_call.1} parent=11 // pred_check
          %p503 = pneg %p255
        $region42: #{tpu_custom_call.1} parent=11 // pred_check_branch
          %505 = sbr.rel (%p503) target = $region44
        $region43: #{tpu_custom_call.1} parent=11 // pred_region
          _
        $region44: #{tpu_custom_call.1} parent=11 // pred_fallthru
          _
        // Predicated region
        $region45: #{tpu_custom_call.1} parent=11 // pred_check
          %p506 = pneg %p276
        $region46: #{tpu_custom_call.1} parent=11 // pred_check_branch
          %508 = sbr.rel (%p506) target = $region48
        $region47: #{tpu_custom_call.1} parent=11 // pred_region
          %510 = vsyncadd [#allocation15], 0
          %s511 = sshll.u32 %s10, 4
          %s512 = int_to_ptr.hbm [resolvable:$true] %s511
          %s513 = sshll.u32 [#allocation16], 4
          %s514 = int_to_ptr.vmem [resolvable:$true] %s513
          %519 = dma.hbm_to_vmem [thread:$0]  %s512, 8192, %s514, [#allocation15], 256, 256, 16
        $region48: #{tpu_custom_call.1} parent=11 // pred_fallthru
          _
        // Predicated region
        $region49: #{tpu_custom_call.1} parent=11 // pred_check
          %p520 = pneg %p297
        $region50: #{tpu_custom_call.1} parent=11 // pred_check_branch
          %522 = sbr.rel (%p520) target = $region52
        $region51: #{tpu_custom_call.1} parent=11 // pred_region
          _
        $region52: #{tpu_custom_call.1} parent=11 // pred_fallthru
          _
        // Predicated region
        $region53: #{tpu_custom_call.1} parent=11 // pred_check
          %p523 = pneg %p318
        $region54: #{tpu_custom_call.1} parent=11 // pred_check_branch
          %525 = sbr.rel (%p523) target = $region56
        $region55: #{tpu_custom_call.1} parent=11 // pred_region
          %527 = vsyncadd [#allocation18], 0
          %s528 = sshll.u32 %s12, 4
          %s529 = int_to_ptr.hbm [resolvable:$true] %s528
          %s530 = sshll.u32 [#allocation17], 4
          %s531 = int_to_ptr.vmem [resolvable:$true] %s530
          %536 = dma.hbm_to_vmem [thread:$0]  %s529, 8192, %s531, [#allocation18], 128, 128, 8
        $region56: #{tpu_custom_call.1} parent=11 // pred_fallthru
          _
        // Predicated region
        $region57: #{tpu_custom_call.1} parent=11 // pred_check
          %p537 = pneg %p339
        $region58: #{tpu_custom_call.1} parent=11 // pred_check_branch
          %539 = sbr.rel (%p537) target = $region60
        $region59: #{tpu_custom_call.1} parent=11 // pred_region
          _
        $region60: #{tpu_custom_call.1} parent=11 // pred_fallthru
          _
        // Predicated region
        $region61: #{tpu_custom_call.1} parent=11 // pred_check
          %p540 = pneg %p360
        $region62: #{tpu_custom_call.1} parent=11 // pred_check_branch
          %542 = sbr.rel (%p540) target = $region64
        $region63: #{tpu_custom_call.1} parent=11 // pred_region
          _
        $region64: #{tpu_custom_call.1} parent=11 // pred_fallthru
          _
        // Predicated region
        $region65: #{tpu_custom_call.1} parent=11 // pred_check
          %p543 = pneg %p381
        $region66: #{tpu_custom_call.1} parent=11 // pred_check_branch
          %545 = sbr.rel (%p543) target = $region68
        $region67: #{tpu_custom_call.1} parent=11 // pred_region
          _
        $region68: #{tpu_custom_call.1} parent=11 // pred_fallthru
          _
      $region12: #{tpu_custom_call.1} parent=5 // pred_fallthru
        _
      %p546 = scmp.lt.s32.totalorder %s35, 2
      // Predicated region
      $region69: #{tpu_custom_call.1} parent=5 // pred_check
        %p547 = pneg %p546
      $region70: #{tpu_custom_call.1} parent=5 // pred_check_branch
        %549 = sbr.rel (%p547) target = $region72
      $region71: #{tpu_custom_call.1} parent=5 // pred_region
        // Predicated region
        $region73: #{tpu_custom_call.1} parent=71 // pred_check
          %p550 = pneg %p55
        $region74: #{tpu_custom_call.1} parent=71 // pred_check_branch
          %552 = sbr.rel (%p550) target = $region76
        $region75: #{tpu_custom_call.1} parent=71 // pred_region
          %s553 = sand.u32 %s45, 1
          %s554 = scalar_lea.sflag [#allocation3], %s553
          %s555 = sand.u32 %s45, 1
          %s556 = smul.addr %s555, 32
          %s557 = scalar_lea.vmem [#allocation2], %s556
          %s558 = smul.u32 2, %s35
          %560 = vsyncadd %s554, 0
          %s561 = smul.addr %s558, 2
          %s562 = smul.addr %s561, 8
          %s563 = scalar_lea.hbm %s0, %s562
          %s564 = sshll.u32 %s563, 4
          %s565 = int_to_ptr.hbm [resolvable:$true] %s564
          %s566 = sshll.u32 %s557, 4
          %s567 = int_to_ptr.vmem [resolvable:$true] %s566
          %572 = dma.hbm_to_vmem [thread:$0]  %s565, 512, %s567, %s554, 256, 256, 16
        $region76: #{tpu_custom_call.1} parent=71 // pred_fallthru
          _
        // Predicated region
        $region77: #{tpu_custom_call.1} parent=71 // pred_check
          %p573 = pneg %p81
        $region78: #{tpu_custom_call.1} parent=71 // pred_check_branch
          %575 = sbr.rel (%p573) target = $region80
        $region79: #{tpu_custom_call.1} parent=71 // pred_region
          %s576 = sand.u32 %s35, 1
          %s577 = scalar_lea.sflag [#allocation6], %s576
          %s578 = sand.u32 %s71, 1
          %s579 = smul.addr %s578, 32
          %s580 = scalar_lea.vmem [#allocation5], %s579
          %s581 = smul.u32 2, %s35
          %583 = vsyncadd %s577, 0
          %s584 = smul.addr %s581, 2
          %s585 = smul.addr %s584, 8
          %s586 = scalar_lea.hbm %s1, %s585
          %s587 = sshll.u32 %s586, 4
          %s588 = int_to_ptr.hbm [resolvable:$true] %s587
          %s589 = sshll.u32 %s580, 4
          %s590 = int_to_ptr.vmem [resolvable:$true] %s589
          %595 = dma.hbm_to_vmem [thread:$0]  %s588, 512, %s590, %s577, 256, 256, 16
        $region80: #{tpu_custom_call.1} parent=71 // pred_fallthru
          _
      $region72: #{tpu_custom_call.1} parent=5 // pred_fallthru
        _
      %p596 = scmp.le.s32.totalorder 1, %s35
      %p597 = scmp.lt.s32.totalorder %s35, 3
      %p598 = pnand %p596, %p597
      %p599 = pneg %p598
      // Predicated region
      $region81: #{tpu_custom_call.1} parent=5 // pred_check
        _
      $region82: #{tpu_custom_call.1} parent=5 // pred_check_branch
        %601 = sbr.rel (%p598) target = $region84
      $region83: #{tpu_custom_call.1} parent=5 // pred_region
        %s602 = ssub.s32 %s35, 1
        %s603 = sand.u32 %s48, 1
        %s604 = scalar_lea.sflag [#allocation3], %s603
        %s605 = sand.u32 %s48, 1
        %s606 = smul.addr %s605, 32
        %s607 = scalar_lea.vmem [#allocation2], %s606
        // Predicated region
        $region85: #{tpu_custom_call.1} parent=83 // pred_check
          %p608 = pneg %p61
        $region86: #{tpu_custom_call.1} parent=83 // pred_check_branch
          %610 = sbr.rel (%p608) target = $region88
        $region87: #{tpu_custom_call.1} parent=83 // pred_region
          %612 = dma.done %s604, 512
        $region88: #{tpu_custom_call.1} parent=83 // pred_fallthru
          _
        %s613 = sand.u32 %s40, 1
        %s614 = scalar_lea.sflag [#allocation6], %s613
        %s615 = sand.u32 %s74, 1
        %s616 = smul.addr %s615, 32
        %s617 = scalar_lea.vmem [#allocation5], %s616
        // Predicated region
        $region89: #{tpu_custom_call.1} parent=83 // pred_check
          %p618 = pneg %p87
        $region90: #{tpu_custom_call.1} parent=83 // pred_check_branch
          %620 = sbr.rel (%p618) target = $region92
        $region91: #{tpu_custom_call.1} parent=83 // pred_region
          %622 = dma.done %s614, 512
        $region92: #{tpu_custom_call.1} parent=83 // pred_fallthru
          _
        // Predicated region
        $region93: #{tpu_custom_call.1} parent=83 // pred_check
          %p623 = pneg %p108
        $region94: #{tpu_custom_call.1} parent=83 // pred_check_branch
          %625 = sbr.rel (%p623) target = $region96
        $region95: #{tpu_custom_call.1} parent=83 // pred_region
          %627 = dma.done [#allocation6], 8192
        $region96: #{tpu_custom_call.1} parent=83 // pred_fallthru
          _
        // Predicated region
        $region97: #{tpu_custom_call.1} parent=83 // pred_check
          %p628 = pneg %p129
        $region98: #{tpu_custom_call.1} parent=83 // pred_check_branch
          %630 = sbr.rel (%p628) target = $region100
        $region99: #{tpu_custom_call.1} parent=83 // pred_region
          %632 = dma.done [#allocation9], 64
        $region100: #{tpu_custom_call.1} parent=83 // pred_fallthru
          _
        // Predicated region
        $region101: #{tpu_custom_call.1} parent=83 // pred_check
          %p633 = pneg %p150
        $region102: #{tpu_custom_call.1} parent=83 // pred_check_branch
          %635 = sbr.rel (%p633) target = $region104
        $region103: #{tpu_custom_call.1} parent=83 // pred_region
          %637 = dma.done [#allocation9], 4096
        $region104: #{tpu_custom_call.1} parent=83 // pred_fallthru
          _
        // Predicated region
        $region105: #{tpu_custom_call.1} parent=83 // pred_check
          %p638 = pneg %p192
        $region106: #{tpu_custom_call.1} parent=83 // pred_check_branch
          %640 = sbr.rel (%p638) target = $region108
        $region107: #{tpu_custom_call.1} parent=83 // pred_region
          %642 = dma.done [#allocation12], 4096
        $region108: #{tpu_custom_call.1} parent=83 // pred_fallthru
          _
        // Predicated region
        $region109: #{tpu_custom_call.1} parent=83 // pred_check
          %p643 = pneg %p213
        $region110: #{tpu_custom_call.1} parent=83 // pred_check_branch
          %645 = sbr.rel (%p643) target = $region112
        $region111: #{tpu_custom_call.1} parent=83 // pred_region
          %647 = dma.done [#allocation12], 32
        $region112: #{tpu_custom_call.1} parent=83 // pred_fallthru
          _
        // Predicated region
        $region113: #{tpu_custom_call.1} parent=83 // pred_check
          %p648 = pneg %p234
        $region114: #{tpu_custom_call.1} parent=83 // pred_check_branch
          %650 = sbr.rel (%p648) target = $region116
        $region115: #{tpu_custom_call.1} parent=83 // pred_region
          %652 = dma.done [#allocation15], 32
        $region116: #{tpu_custom_call.1} parent=83 // pred_fallthru
          _
        // Predicated region
        $region117: #{tpu_custom_call.1} parent=83 // pred_check
          %p653 = pneg %p276
        $region118: #{tpu_custom_call.1} parent=83 // pred_check_branch
          %655 = sbr.rel (%p653) target = $region120
        $region119: #{tpu_custom_call.1} parent=83 // pred_region
          %657 = dma.done [#allocation15], 8192
        $region120: #{tpu_custom_call.1} parent=83 // pred_fallthru
          _
        // Predicated region
        $region121: #{tpu_custom_call.1} parent=83 // pred_check
          %p658 = pneg %p318
        $region122: #{tpu_custom_call.1} parent=83 // pred_check_branch
          %660 = sbr.rel (%p658) target = $region124
        $region123: #{tpu_custom_call.1} parent=83 // pred_region
          %662 = dma.done [#allocation18], 8192
        $region124: #{tpu_custom_call.1} parent=83 // pred_fallthru
          _
        %s663 = sand.u32 %s48, 1
        %s664 = scalar_lea.sflag [#allocation3], %s663
        %s665 = sand.u32 %s48, 1
        %s666 = smul.addr %s665, 32
        %s667 = scalar_lea.vmem [#allocation2], %s666
        %p668 = pneg %p61
        %p669 = pneg %p58
        %s670 = sand.u32 %s40, 1
        %s671 = scalar_lea.sflag [#allocation6], %s670
        %s672 = sand.u32 %s74, 1
        %s673 = smul.addr %s672, 32
        %s674 = scalar_lea.vmem [#allocation5], %s673
        %p675 = pneg %p87
        %p676 = pneg %p84
        %p677 = pneg %p108
        %p678 = pneg %p105
        %p679 = pneg %p129
        %p680 = pneg %p126
        %p681 = pneg %p150
        %p682 = pneg %p147
        %p683 = pneg %p171
        %p684 = pneg %p168
        %p685 = pneg %p192
        %p686 = pneg %p189
        %p687 = pneg %p213
        %p688 = pneg %p210
        %p689 = pneg %p234
        %p690 = pneg %p231
        %p691 = pneg %p255
        %p692 = pneg %p252
        %p693 = pneg %p276
        %p694 = pneg %p273
        %p695 = pneg %p297
        %p696 = pneg %p294
        %p697 = pneg %p318
        %p698 = pneg %p315
        %p699 = pneg %p339
        %p700 = pneg %p336
        %p701 = pneg %p360
        %p702 = pneg %p357
        %p703 = pneg %p381
        %p704 = pneg %p378
        %p705 = pneg %p407
        %p706 = pneg %p404
        %s707 = sand.u32 %s394, 1
        %s708 = scalar_lea.sflag [#allocation4], %s707
        %s709 = sand.u32 %s394, 1
        %s710 = smul.addr %s709, 32
        %s711 = scalar_lea.vmem [#allocation19], %s710
        %s712 = smul.u32 2, %s40
        %s713 = smul.u32 2, %s40
        %s714 = smul.u32 2, %s40
        %v716 = vld [vmem:[%s607] sm:$0xff]
        %v717 = vld [vmem:[%s607 + $0x8] sm:$0xff]
        %v718 = vld [vmem:[%s607 + $0x10] sm:$0xff]
        %v719 = vld [vmem:[%s607 + $0x18] sm:$0xff]
        %v720 = vld [vmem:[%s617] sm:$0xff]
        %v721 = vld [vmem:[%s617 + $0x8] sm:$0xff]
        %v722 = vld [vmem:[%s617 + $0x10] sm:$0xff]
        %v723 = vld [vmem:[%s617 + $0x18] sm:$0xff]
        %v724 = vadd.f32 %v716, %v720
        %v725 = vadd.f32 %v717, %v721
        %v726 = vadd.f32 %v718, %v722
        %v727 = vadd.f32 %v719, %v723
        %v728 = vpack.c.bf16 %v726, %v724
        %v729 = vpack.c.bf16 %v727, %v725
        %v730 = vpack.c.bf16 %v718, %v716
        %v731 = vpack.c.bf16 %v719, %v717
        %v732 = vld [vmem:[#allocation7] sm:$0xff]
        %v733 = vld [vmem:[#allocation7 + $0x8] sm:$0xff]
        %v734 = vld [vmem:[#allocation7 + $0x10] sm:$0xff]
        %v735 = vld [vmem:[#allocation7 + $0x18] sm:$0xff]
        %v736 = vld [vmem:[#allocation7 + $0x20] sm:$0xff]
        %v737 = vld [vmem:[#allocation7 + $0x28] sm:$0xff]
        %v738 = vld [vmem:[#allocation7 + $0x30] sm:$0xff]
        %v739 = vld [vmem:[#allocation7 + $0x38] sm:$0xff]
        %v740 = vld [vmem:[#allocation7 + $0x40] sm:$0xff]
        %v741 = vld [vmem:[#allocation7 + $0x48] sm:$0xff]
        %v742 = vld [vmem:[#allocation7 + $0x50] sm:$0xff]
        %v743 = vld [vmem:[#allocation7 + $0x58] sm:$0xff]
        %v744 = vld [vmem:[#allocation7 + $0x60] sm:$0xff]
        %v745 = vld [vmem:[#allocation7 + $0x68] sm:$0xff]
        %v746 = vld [vmem:[#allocation7 + $0x70] sm:$0xff]
        %v747 = vld [vmem:[#allocation7 + $0x78] sm:$0xff]
        %v748 = vld [vmem:[#allocation7 + $0x80] sm:$0xff]
        %v749 = vld [vmem:[#allocation7 + $0x88] sm:$0xff]
        %v750 = vld [vmem:[#allocation7 + $0x90] sm:$0xff]
        %v751 = vld [vmem:[#allocation7 + $0x98] sm:$0xff]
        %v752 = vld [vmem:[#allocation7 + $0xa0] sm:$0xff]
        %v753 = vld [vmem:[#allocation7 + $0xa8] sm:$0xff]
        %v754 = vld [vmem:[#allocation7 + $0xb0] sm:$0xff]
        %v755 = vld [vmem:[#allocation7 + $0xb8] sm:$0xff]
        %v756 = vld [vmem:[#allocation7 + $0xc0] sm:$0xff]
        %v757 = vld [vmem:[#allocation7 + $0xc8] sm:$0xff]
        %v758 = vld [vmem:[#allocation7 + $0xd0] sm:$0xff]
        %v759 = vld [vmem:[#allocation7 + $0xd8] sm:$0xff]
        %v760 = vld [vmem:[#allocation7 + $0xe0] sm:$0xff]
        %v761 = vld [vmem:[#allocation7 + $0xe8] sm:$0xff]
        %v762 = vld [vmem:[#allocation7 + $0xf0] sm:$0xff]
        %v763 = vld [vmem:[#allocation7 + $0xf8] sm:$0xff]
        %v764 = vld [vmem:[#allocation7 + $0x100] sm:$0xff]
        %v765 = vld [vmem:[#allocation7 + $0x108] sm:$0xff]
        %v766 = vld [vmem:[#allocation7 + $0x110] sm:$0xff]
        %v767 = vld [vmem:[#allocation7 + $0x118] sm:$0xff]
        %v768 = vld [vmem:[#allocation7 + $0x120] sm:$0xff]
        %v769 = vld [vmem:[#allocation7 + $0x128] sm:$0xff]
        %v770 = vld [vmem:[#allocation7 + $0x130] sm:$0xff]
        %v771 = vld [vmem:[#allocation7 + $0x138] sm:$0xff]
        %v772 = vld [vmem:[#allocation7 + $0x140] sm:$0xff]
        %v773 = vld [vmem:[#allocation7 + $0x148] sm:$0xff]
        %v774 = vld [vmem:[#allocation7 + $0x150] sm:$0xff]
        %v775 = vld [vmem:[#allocation7 + $0x158] sm:$0xff]
        %v776 = vld [vmem:[#allocation7 + $0x160] sm:$0xff]
        %v777 = vld [vmem:[#allocation7 + $0x168] sm:$0xff]
        %v778 = vld [vmem:[#allocation7 + $0x170] sm:$0xff]
        %v779 = vld [vmem:[#allocation7 + $0x178] sm:$0xff]
        %v780 = vld [vmem:[#allocation7 + $0x180] sm:$0xff]
        %v781 = vld [vmem:[#allocation7 + $0x188] sm:$0xff]
        %v782 = vld [vmem:[#allocation7 + $0x190] sm:$0xff]
        %v783 = vld [vmem:[#allocation7 + $0x198] sm:$0xff]
        %v784 = vld [vmem:[#allocation7 + $0x1a0] sm:$0xff]
        %v785 = vld [vmem:[#allocation7 + $0x1a8] sm:$0xff]
        %v786 = vld [vmem:[#allocation7 + $0x1b0] sm:$0xff]
        %v787 = vld [vmem:[#allocation7 + $0x1b8] sm:$0xff]
        %v788 = vld [vmem:[#allocation7 + $0x1c0] sm:$0xff]
        %v789 = vld [vmem:[#allocation7 + $0x1c8] sm:$0xff]
        %v790 = vld [vmem:[#allocation7 + $0x1d0] sm:$0xff]
        %v791 = vld [vmem:[#allocation7 + $0x1d8] sm:$0xff]
        %v792 = vld [vmem:[#allocation7 + $0x1e0] sm:$0xff]
        %v793 = vld [vmem:[#allocation7 + $0x1e8] sm:$0xff]
        %v794 = vld [vmem:[#allocation7 + $0x1f0] sm:$0xff]
        %v795 = vld [vmem:[#allocation7 + $0x1f8] sm:$0xff]
        %v796 = vld [vmem:[#allocation8] sm:$0xf]
        %v798 = vperm.slane %v796, 0
        %v799 = vperm.slane %v796, 1
        %v800 = vperm.slane %v796, 2
        %v801 = vperm.slane %v796, 3
        %v870 = vunpack.c.l.b16 %v732
        %v871 = vunpack.c.h.b16 %v732
        %v872 = vunpack.c.l.b16 %v733
        %v873 = vunpack.c.h.b16 %v733
        %v874 = vunpack.c.l.b16 %v734
        %v875 = vunpack.c.h.b16 %v734
        %v876 = vunpack.c.l.b16 %v735
        %v877 = vunpack.c.h.b16 %v735
        %v878 = vunpack.c.l.b16 %v736
        %v879 = vunpack.c.h.b16 %v736
        %v880 = vunpack.c.l.b16 %v737
        %v881 = vunpack.c.h.b16 %v737
        %v882 = vunpack.c.l.b16 %v738
        %v883 = vunpack.c.h.b16 %v738
        %v884 = vunpack.c.l.b16 %v739
        %v885 = vunpack.c.h.b16 %v739
        %v886 = vunpack.c.l.b16 %v740
        %v887 = vunpack.c.h.b16 %v740
        %v888 = vunpack.c.l.b16 %v741
        %v889 = vunpack.c.h.b16 %v741
        %v890 = vunpack.c.l.b16 %v742
        %v891 = vunpack.c.h.b16 %v742
        %v892 = vunpack.c.l.b16 %v743
        %v893 = vunpack.c.h.b16 %v743
        %v894 = vunpack.c.l.b16 %v744
        %v895 = vunpack.c.h.b16 %v744
        %v896 = vunpack.c.l.b16 %v745
        %v897 = vunpack.c.h.b16 %v745
        %v898 = vunpack.c.l.b16 %v746
        %v899 = vunpack.c.h.b16 %v746
        %v900 = vunpack.c.l.b16 %v747
        %v901 = vunpack.c.h.b16 %v747
        %v902 = vunpack.c.l.b16 %v748
        %v903 = vunpack.c.h.b16 %v748
        %v904 = vunpack.c.l.b16 %v749
        %v905 = vunpack.c.h.b16 %v749
        %v906 = vunpack.c.l.b16 %v750
        %v907 = vunpack.c.h.b16 %v750
        %v908 = vunpack.c.l.b16 %v751
        %v909 = vunpack.c.h.b16 %v751
        %v910 = vunpack.c.l.b16 %v752
        %v911 = vunpack.c.h.b16 %v752
        %v912 = vunpack.c.l.b16 %v753
        %v913 = vunpack.c.h.b16 %v753
        %v914 = vunpack.c.l.b16 %v754
        %v915 = vunpack.c.h.b16 %v754
        %v916 = vunpack.c.l.b16 %v755
        %v917 = vunpack.c.h.b16 %v755
        %v918 = vunpack.c.l.b16 %v756
        %v919 = vunpack.c.h.b16 %v756
        %v920 = vunpack.c.l.b16 %v757
        %v921 = vunpack.c.h.b16 %v757
        %v922 = vunpack.c.l.b16 %v758
        %v923 = vunpack.c.h.b16 %v758
        %v924 = vunpack.c.l.b16 %v759
        %v925 = vunpack.c.h.b16 %v759
        %v926 = vunpack.c.l.b16 %v760
        %v927 = vunpack.c.h.b16 %v760
        %v928 = vunpack.c.l.b16 %v761
        %v929 = vunpack.c.h.b16 %v761
        %v930 = vunpack.c.l.b16 %v762
        %v931 = vunpack.c.h.b16 %v762
        %v932 = vunpack.c.l.b16 %v763
        %v933 = vunpack.c.h.b16 %v763
        %v934 = vunpack.c.l.b16 %v764
        %v935 = vunpack.c.h.b16 %v764
        %v936 = vunpack.c.l.b16 %v765
        %v937 = vunpack.c.h.b16 %v765
        %v938 = vunpack.c.l.b16 %v766
        %v939 = vunpack.c.h.b16 %v766
        %v940 = vunpack.c.l.b16 %v767
        %v941 = vunpack.c.h.b16 %v767
        %v942 = vunpack.c.l.b16 %v768
        %v943 = vunpack.c.h.b16 %v768
        %v944 = vunpack.c.l.b16 %v769
        %v945 = vunpack.c.h.b16 %v769
        %v946 = vunpack.c.l.b16 %v770
        %v947 = vunpack.c.h.b16 %v770
        %v948 = vunpack.c.l.b16 %v771
        %v949 = vunpack.c.h.b16 %v771
        %v950 = vunpack.c.l.b16 %v772
        %v951 = vunpack.c.h.b16 %v772
        %v952 = vunpack.c.l.b16 %v773
        %v953 = vunpack.c.h.b16 %v773
        %v954 = vunpack.c.l.b16 %v774
        %v955 = vunpack.c.h.b16 %v774
        %v956 = vunpack.c.l.b16 %v775
        %v957 = vunpack.c.h.b16 %v775
        %v958 = vunpack.c.l.b16 %v776
        %v959 = vunpack.c.h.b16 %v776
        %v960 = vunpack.c.l.b16 %v777
        %v961 = vunpack.c.h.b16 %v777
        %v962 = vunpack.c.l.b16 %v778
        %v963 = vunpack.c.h.b16 %v778
        %v964 = vunpack.c.l.b16 %v779
        %v965 = vunpack.c.h.b16 %v779
        %v966 = vunpack.c.l.b16 %v780
        %v967 = vunpack.c.h.b16 %v780
        %v968 = vunpack.c.l.b16 %v781
        %v969 = vunpack.c.h.b16 %v781
        %v970 = vunpack.c.l.b16 %v782
        %v971 = vunpack.c.h.b16 %v782
        %v972 = vunpack.c.l.b16 %v783
        %v973 = vunpack.c.h.b16 %v783
        %v974 = vunpack.c.l.b16 %v784
        %v975 = vunpack.c.h.b16 %v784
        %v976 = vunpack.c.l.b16 %v785
        %v977 = vunpack.c.h.b16 %v785
        %v978 = vunpack.c.l.b16 %v786
        %v979 = vunpack.c.h.b16 %v786
        %v980 = vunpack.c.l.b16 %v787
        %v981 = vunpack.c.h.b16 %v787
        %v982 = vunpack.c.l.b16 %v788
        %v983 = vunpack.c.h.b16 %v788
        %v984 = vunpack.c.l.b16 %v789
        %v985 = vunpack.c.h.b16 %v789
        %v986 = vunpack.c.l.b16 %v790
        %v987 = vunpack.c.h.b16 %v790
        %v988 = vunpack.c.l.b16 %v791
        %v989 = vunpack.c.h.b16 %v791
        %v990 = vunpack.c.l.b16 %v792
        %v991 = vunpack.c.h.b16 %v792
        %v992 = vunpack.c.l.b16 %v793
        %v993 = vunpack.c.h.b16 %v793
        %v994 = vunpack.c.l.b16 %v794
        %v995 = vunpack.c.h.b16 %v794
        %v996 = vunpack.c.l.b16 %v795
        %v997 = vunpack.c.h.b16 %v795
        %v998 = vpack.c.b16 %v874, %v870
        %v999 = vpack.c.b16 %v875, %v871
        %v1000 = vpack.c.b16 %v876, %v872
        %v1001 = vpack.c.b16 %v877, %v873
        %v1002 = vpack.c.b16 %v882, %v878
        %v1003 = vpack.c.b16 %v883, %v879
        %v1004 = vpack.c.b16 %v884, %v880
        %v1005 = vpack.c.b16 %v885, %v881
        %v1006 = vpack.c.b16 %v890, %v886
        %v1007 = vpack.c.b16 %v891, %v887
        %v1008 = vpack.c.b16 %v892, %v888
        %v1009 = vpack.c.b16 %v893, %v889
        %v1010 = vpack.c.b16 %v898, %v894
        %v1011 = vpack.c.b16 %v899, %v895
        %v1012 = vpack.c.b16 %v900, %v896
        %v1013 = vpack.c.b16 %v901, %v897
        %v1014 = vpack.c.b16 %v906, %v902
        %v1015 = vpack.c.b16 %v907, %v903
        %v1016 = vpack.c.b16 %v908, %v904
        %v1017 = vpack.c.b16 %v909, %v905
        %v1018 = vpack.c.b16 %v914, %v910
        %v1019 = vpack.c.b16 %v915, %v911
        %v1020 = vpack.c.b16 %v916, %v912
        %v1021 = vpack.c.b16 %v917, %v913
        %v1022 = vpack.c.b16 %v922, %v918
        %v1023 = vpack.c.b16 %v923, %v919
        %v1024 = vpack.c.b16 %v924, %v920
        %v1025 = vpack.c.b16 %v925, %v921
        %v1026 = vpack.c.b16 %v930, %v926
        %v1027 = vpack.c.b16 %v931, %v927
        %v1028 = vpack.c.b16 %v932, %v928
        %v1029 = vpack.c.b16 %v933, %v929
        %v1030 = vpack.c.b16 %v938, %v934
        %v1031 = vpack.c.b16 %v939, %v935
        %v1032 = vpack.c.b16 %v940, %v936
        %v1033 = vpack.c.b16 %v941, %v937
        %v1034 = vpack.c.b16 %v946, %v942
        %v1035 = vpack.c.b16 %v947, %v943
        %v1036 = vpack.c.b16 %v948, %v944
        %v1037 = vpack.c.b16 %v949, %v945
        %v1038 = vpack.c.b16 %v954, %v950
        %v1039 = vpack.c.b16 %v955, %v951
        %v1040 = vpack.c.b16 %v956, %v952
        %v1041 = vpack.c.b16 %v957, %v953
        %v1042 = vpack.c.b16 %v962, %v958
        %v1043 = vpack.c.b16 %v963, %v959
        %v1044 = vpack.c.b16 %v964, %v960
        %v1045 = vpack.c.b16 %v965, %v961
        %v1046 = vpack.c.b16 %v970, %v966
        %v1047 = vpack.c.b16 %v971, %v967
        %v1048 = vpack.c.b16 %v972, %v968
        %v1049 = vpack.c.b16 %v973, %v969
        %v1050 = vpack.c.b16 %v978, %v974
        %v1051 = vpack.c.b16 %v979, %v975
        %v1052 = vpack.c.b16 %v980, %v976
        %v1053 = vpack.c.b16 %v981, %v977
        %v1054 = vpack.c.b16 %v986, %v982
        %v1055 = vpack.c.b16 %v987, %v983
        %v1056 = vpack.c.b16 %v988, %v984
        %v1057 = vpack.c.b16 %v989, %v985
        %v1058 = vpack.c.b16 %v994, %v990
        %v1059 = vpack.c.b16 %v995, %v991
        %v1060 = vpack.c.b16 %v996, %v992
        %v1061 = vpack.c.b16 %v997, %v993
        %1126 = vmatpush.bf16.msra.mxu0 %v1026
        %1127 = vmatpush.bf16.msra.mxu0 %v1022
        %1128 = vmatpush.bf16.msra.mxu0 %v1018
        %1129 = vmatpush.bf16.msra.mxu0 %v1014
        %1130 = vmatpush.bf16.msra.mxu0 %v1010
        %1131 = vmatpush.bf16.msra.mxu0 %v1006
        %1132 = vmatpush.bf16.msra.mxu0 %v1002
        %1133 = vmatpush.bf16.msra.mxu0 %v998
        %1134 = vmatmul.bf16.gmra.mxu0 %v728
        %v1135 = vpop.f32.mrf.mxu0
        %v1136 = vadd.f32 %v798, %v1135
        %v1137 = vpop.f32.mrf.mxu0
        %v1138 = vadd.f32 %v798, %v1137
        %1139 = vdwg.mxu0
        %1140 = vmatpush.bf16.msra.mxu0 %v1058
        %1141 = vmatpush.bf16.msra.mxu0 %v1054
        %1142 = vmatpush.bf16.msra.mxu0 %v1050
        %1143 = vmatpush.bf16.msra.mxu0 %v1046
        %1144 = vmatpush.bf16.msra.mxu0 %v1042
        %1145 = vmatpush.bf16.msra.mxu0 %v1038
        %1146 = vmatpush.bf16.msra.mxu0 %v1034
        %1147 = vmatpush.bf16.msra.mxu0 %v1030
        %1148 = vmatmul.bf16.gmra.mxu0 %v729
        %v1149 = vpop.f32.mrf.mxu0
        %v1150 = vadd.f32 %v1136, %v1149
        %v1151 = vpop.f32.mrf.mxu0
        %v1152 = vadd.f32 %v1138, %v1151
        %1153 = vdwg.mxu0
        %1154 = vmatpush.bf16.msra.mxu0 %v1027
        %1155 = vmatpush.bf16.msra.mxu0 %v1023
        %1156 = vmatpush.bf16.msra.mxu0 %v1019
        %1157 = vmatpush.bf16.msra.mxu0 %v1015
        %1158 = vmatpush.bf16.msra.mxu0 %v1011
        %1159 = vmatpush.bf16.msra.mxu0 %v1007
        %1160 = vmatpush.bf16.msra.mxu0 %v1003
        %1161 = vmatpush.bf16.msra.mxu0 %v999
        %1162 = vmatmul.bf16.gmra.mxu0 %v728
        %v1163 = vpop.f32.mrf.mxu0
        %v1164 = vadd.f32 %v799, %v1163
        %v1165 = vpop.f32.mrf.mxu0
        %v1166 = vadd.f32 %v799, %v1165
        %1167 = vdwg.mxu0
        %1168 = vmatpush.bf16.msra.mxu0 %v1059
        %1169 = vmatpush.bf16.msra.mxu0 %v1055
        %1170 = vmatpush.bf16.msra.mxu0 %v1051
        %1171 = vmatpush.bf16.msra.mxu0 %v1047
        %1172 = vmatpush.bf16.msra.mxu0 %v1043
        %1173 = vmatpush.bf16.msra.mxu0 %v1039
        %1174 = vmatpush.bf16.msra.mxu0 %v1035
        %1175 = vmatpush.bf16.msra.mxu0 %v1031
        %1176 = vmatmul.bf16.gmra.mxu0 %v729
        %v1177 = vpop.f32.mrf.mxu0
        %v1178 = vadd.f32 %v1164, %v1177
        %v1179 = vpop.f32.mrf.mxu0
        %v1180 = vadd.f32 %v1166, %v1179
        %1181 = vdwg.mxu0
        %1182 = vmatpush.bf16.msra.mxu0 %v1028
        %1183 = vmatpush.bf16.msra.mxu0 %v1024
        %1184 = vmatpush.bf16.msra.mxu0 %v1020
        %1185 = vmatpush.bf16.msra.mxu0 %v1016
        %1186 = vmatpush.bf16.msra.mxu0 %v1012
        %1187 = vmatpush.bf16.msra.mxu0 %v1008
        %1188 = vmatpush.bf16.msra.mxu0 %v1004
        %1189 = vmatpush.bf16.msra.mxu0 %v1000
        %1190 = vmatmul.bf16.gmra.mxu0 %v728
        %v1191 = vpop.f32.mrf.mxu0
        %v1192 = vadd.f32 %v800, %v1191
        %v1193 = vpop.f32.mrf.mxu0
        %v1194 = vadd.f32 %v800, %v1193
        %1195 = vdwg.mxu0
        %1196 = vmatpush.bf16.msra.mxu0 %v1060
        %1197 = vmatpush.bf16.msra.mxu0 %v1056
        %1198 = vmatpush.bf16.msra.mxu0 %v1052
        %1199 = vmatpush.bf16.msra.mxu0 %v1048
        %1200 = vmatpush.bf16.msra.mxu0 %v1044
        %1201 = vmatpush.bf16.msra.mxu0 %v1040
        %1202 = vmatpush.bf16.msra.mxu0 %v1036
        %1203 = vmatpush.bf16.msra.mxu0 %v1032
        %1204 = vmatmul.bf16.gmra.mxu0 %v729
        %v1205 = vpop.f32.mrf.mxu0
        %v1206 = vadd.f32 %v1192, %v1205
        %v1207 = vpop.f32.mrf.mxu0
        %v1208 = vadd.f32 %v1194, %v1207
        %1209 = vdwg.mxu0
        %1210 = vmatpush.bf16.msra.mxu0 %v1029
        %1211 = vmatpush.bf16.msra.mxu0 %v1025
        %1212 = vmatpush.bf16.msra.mxu0 %v1021
        %1213 = vmatpush.bf16.msra.mxu0 %v1017
        %1214 = vmatpush.bf16.msra.mxu0 %v1013
        %1215 = vmatpush.bf16.msra.mxu0 %v1009
        %1216 = vmatpush.bf16.msra.mxu0 %v1005
        %1217 = vmatpush.bf16.msra.mxu0 %v1001
        %1218 = vmatmul.bf16.gmra.mxu0 %v728
        %v1219 = vpop.f32.mrf.mxu0
        %v1220 = vadd.f32 %v801, %v1219
        %v1221 = vpop.f32.mrf.mxu0
        %v1222 = vadd.f32 %v801, %v1221
        %1223 = vdwg.mxu0
        %1224 = vmatpush.bf16.msra.mxu0 %v1061
        %1225 = vmatpush.bf16.msra.mxu0 %v1057
        %1226 = vmatpush.bf16.msra.mxu0 %v1053
        %1227 = vmatpush.bf16.msra.mxu0 %v1049
        %1228 = vmatpush.bf16.msra.mxu0 %v1045
        %1229 = vmatpush.bf16.msra.mxu0 %v1041
        %1230 = vmatpush.bf16.msra.mxu0 %v1037
        %1231 = vmatpush.bf16.msra.mxu0 %v1033
        %1232 = vmatmul.bf16.gmra.mxu0 %v729
        %v1233 = vpop.f32.mrf.mxu0
        %v1234 = vadd.f32 %v1220, %v1233
        %v1235 = vpop.f32.mrf.mxu0
        %v1236 = vadd.f32 %v1222, %v1235
        %1237 = vdwg.mxu0
        %v1238 = vld [vmem:[#allocation10] sm:$0xff]
        %v1239 = vld [vmem:[#allocation10 + $0x8] sm:$0xff]
        %v1240 = vld [vmem:[#allocation10 + $0x10] sm:$0xff]
        %v1241 = vld [vmem:[#allocation10 + $0x18] sm:$0xff]
        %v1242 = vld [vmem:[#allocation10 + $0x20] sm:$0xff]
        %v1243 = vld [vmem:[#allocation10 + $0x28] sm:$0xff]
        %v1244 = vld [vmem:[#allocation10 + $0x30] sm:$0xff]
        %v1245 = vld [vmem:[#allocation10 + $0x38] sm:$0xff]
        %v1246 = vld [vmem:[#allocation10 + $0x40] sm:$0xff]
        %v1247 = vld [vmem:[#allocation10 + $0x48] sm:$0xff]
        %v1248 = vld [vmem:[#allocation10 + $0x50] sm:$0xff]
        %v1249 = vld [vmem:[#allocation10 + $0x58] sm:$0xff]
        %v1250 = vld [vmem:[#allocation10 + $0x60] sm:$0xff]
        %v1251 = vld [vmem:[#allocation10 + $0x68] sm:$0xff]
        %v1252 = vld [vmem:[#allocation10 + $0x70] sm:$0xff]
        %v1253 = vld [vmem:[#allocation10 + $0x78] sm:$0xff]
        %v1254 = vld [vmem:[#allocation10 + $0x80] sm:$0xff]
        %v1255 = vld [vmem:[#allocation10 + $0x88] sm:$0xff]
        %v1256 = vld [vmem:[#allocation10 + $0x90] sm:$0xff]
        %v1257 = vld [vmem:[#allocation10 + $0x98] sm:$0xff]
        %v1258 = vld [vmem:[#allocation10 + $0xa0] sm:$0xff]
        %v1259 = vld [vmem:[#allocation10 + $0xa8] sm:$0xff]
        %v1260 = vld [vmem:[#allocation10 + $0xb0] sm:$0xff]
        %v1261 = vld [vmem:[#allocation10 + $0xb8] sm:$0xff]
        %v1262 = vld [vmem:[#allocation10 + $0xc0] sm:$0xff]
        %v1263 = vld [vmem:[#allocation10 + $0xc8] sm:$0xff]
        %v1264 = vld [vmem:[#allocation10 + $0xd0] sm:$0xff]
        %v1265 = vld [vmem:[#allocation10 + $0xd8] sm:$0xff]
        %v1266 = vld [vmem:[#allocation10 + $0xe0] sm:$0xff]
        %v1267 = vld [vmem:[#allocation10 + $0xe8] sm:$0xff]
        %v1268 = vld [vmem:[#allocation10 + $0xf0] sm:$0xff]
        %v1269 = vld [vmem:[#allocation10 + $0xf8] sm:$0xff]
        %v1270 = vld [vmem:[%s5] sm:$0x3]
        %v1272 = vperm.slane %v1270, 0
        %v1273 = vperm.slane %v1270, 1
        %v1308 = vunpack.c.l.b16 %v1238
        %v1309 = vunpack.c.h.b16 %v1238
        %v1310 = vunpack.c.l.b16 %v1239
        %v1311 = vunpack.c.h.b16 %v1239
        %v1312 = vunpack.c.l.b16 %v1240
        %v1313 = vunpack.c.h.b16 %v1240
        %v1314 = vunpack.c.l.b16 %v1241
        %v1315 = vunpack.c.h.b16 %v1241
        %v1316 = vunpack.c.l.b16 %v1242
        %v1317 = vunpack.c.h.b16 %v1242
        %v1318 = vunpack.c.l.b16 %v1243
        %v1319 = vunpack.c.h.b16 %v1243
        %v1320 = vunpack.c.l.b16 %v1244
        %v1321 = vunpack.c.h.b16 %v1244
        %v1322 = vunpack.c.l.b16 %v1245
        %v1323 = vunpack.c.h.b16 %v1245
        %v1324 = vunpack.c.l.b16 %v1246
        %v1325 = vunpack.c.h.b16 %v1246
        %v1326 = vunpack.c.l.b16 %v1247
        %v1327 = vunpack.c.h.b16 %v1247
        %v1328 = vunpack.c.l.b16 %v1248
        %v1329 = vunpack.c.h.b16 %v1248
        %v1330 = vunpack.c.l.b16 %v1249
        %v1331 = vunpack.c.h.b16 %v1249
        %v1332 = vunpack.c.l.b16 %v1250
        %v1333 = vunpack.c.h.b16 %v1250
        %v1334 = vunpack.c.l.b16 %v1251
        %v1335 = vunpack.c.h.b16 %v1251
        %v1336 = vunpack.c.l.b16 %v1252
        %v1337 = vunpack.c.h.b16 %v1252
        %v1338 = vunpack.c.l.b16 %v1253
        %v1339 = vunpack.c.h.b16 %v1253
        %v1340 = vunpack.c.l.b16 %v1254
        %v1341 = vunpack.c.h.b16 %v1254
        %v1342 = vunpack.c.l.b16 %v1255
        %v1343 = vunpack.c.h.b16 %v1255
        %v1344 = vunpack.c.l.b16 %v1256
        %v1345 = vunpack.c.h.b16 %v1256
        %v1346 = vunpack.c.l.b16 %v1257
        %v1347 = vunpack.c.h.b16 %v1257
        %v1348 = vunpack.c.l.b16 %v1258
        %v1349 = vunpack.c.h.b16 %v1258
        %v1350 = vunpack.c.l.b16 %v1259
        %v1351 = vunpack.c.h.b16 %v1259
        %v1352 = vunpack.c.l.b16 %v1260
        %v1353 = vunpack.c.h.b16 %v1260
        %v1354 = vunpack.c.l.b16 %v1261
        %v1355 = vunpack.c.h.b16 %v1261
        %v1356 = vunpack.c.l.b16 %v1262
        %v1357 = vunpack.c.h.b16 %v1262
        %v1358 = vunpack.c.l.b16 %v1263
        %v1359 = vunpack.c.h.b16 %v1263
        %v1360 = vunpack.c.l.b16 %v1264
        %v1361 = vunpack.c.h.b16 %v1264
        %v1362 = vunpack.c.l.b16 %v1265
        %v1363 = vunpack.c.h.b16 %v1265
        %v1364 = vunpack.c.l.b16 %v1266
        %v1365 = vunpack.c.h.b16 %v1266
        %v1366 = vunpack.c.l.b16 %v1267
        %v1367 = vunpack.c.h.b16 %v1267
        %v1368 = vunpack.c.l.b16 %v1268
        %v1369 = vunpack.c.h.b16 %v1268
        %v1370 = vunpack.c.l.b16 %v1269
        %v1371 = vunpack.c.h.b16 %v1269
        %v1372 = vpack.c.b16 %v1310, %v1308
        %v1373 = vpack.c.b16 %v1311, %v1309
        %v1374 = vpack.c.b16 %v1314, %v1312
        %v1375 = vpack.c.b16 %v1315, %v1313
        %v1376 = vpack.c.b16 %v1318, %v1316
        %v1377 = vpack.c.b16 %v1319, %v1317
        %v1378 = vpack.c.b16 %v1322, %v1320
        %v1379 = vpack.c.b16 %v1323, %v1321
        %v1380 = vpack.c.b16 %v1326, %v1324
        %v1381 = vpack.c.b16 %v1327, %v1325
        %v1382 = vpack.c.b16 %v1330, %v1328
        %v1383 = vpack.c.b16 %v1331, %v1329
        %v1384 = vpack.c.b16 %v1334, %v1332
        %v1385 = vpack.c.b16 %v1335, %v1333
        %v1386 = vpack.c.b16 %v1338, %v1336
        %v1387 = vpack.c.b16 %v1339, %v1337
        %v1388 = vpack.c.b16 %v1342, %v1340
        %v1389 = vpack.c.b16 %v1343, %v1341
        %v1390 = vpack.c.b16 %v1346, %v1344
        %v1391 = vpack.c.b16 %v1347, %v1345
        %v1392 = vpack.c.b16 %v1350, %v1348
        %v1393 = vpack.c.b16 %v1351, %v1349
        %v1394 = vpack.c.b16 %v1354, %v1352
        %v1395 = vpack.c.b16 %v1355, %v1353
        %v1396 = vpack.c.b16 %v1358, %v1356
        %v1397 = vpack.c.b16 %v1359, %v1357
        %v1398 = vpack.c.b16 %v1362, %v1360
        %v1399 = vpack.c.b16 %v1363, %v1361
        %v1400 = vpack.c.b16 %v1366, %v1364
        %v1401 = vpack.c.b16 %v1367, %v1365
        %v1402 = vpack.c.b16 %v1370, %v1368
        %v1403 = vpack.c.b16 %v1371, %v1369
        %1436 = vmatpush.bf16.msra.mxu0 %v1386
        %1437 = vmatpush.bf16.msra.mxu0 %v1384
        %1438 = vmatpush.bf16.msra.mxu0 %v1382
        %1439 = vmatpush.bf16.msra.mxu0 %v1380
        %1440 = vmatpush.bf16.msra.mxu0 %v1378
        %1441 = vmatpush.bf16.msra.mxu0 %v1376
        %1442 = vmatpush.bf16.msra.mxu0 %v1374
        %1443 = vmatpush.bf16.msra.mxu0 %v1372
        %1444 = vmatmul.bf16.gmra.mxu0 %v730
        %v1445 = vpop.f32.mrf.mxu0
        %v1446 = vadd.f32 %v1272, %v1445
        %v1447 = vpop.f32.mrf.mxu0
        %v1448 = vadd.f32 %v1272, %v1447
        %1449 = vdwg.mxu0
        %1450 = vmatpush.bf16.msra.mxu0 %v1402
        %1451 = vmatpush.bf16.msra.mxu0 %v1400
        %1452 = vmatpush.bf16.msra.mxu0 %v1398
        %1453 = vmatpush.bf16.msra.mxu0 %v1396
        %1454 = vmatpush.bf16.msra.mxu0 %v1394
        %1455 = vmatpush.bf16.msra.mxu0 %v1392
        %1456 = vmatpush.bf16.msra.mxu0 %v1390
        %1457 = vmatpush.bf16.msra.mxu0 %v1388
        %1458 = vmatmul.bf16.gmra.mxu0 %v731
        %v1459 = vpop.f32.mrf.mxu0
        %v1460 = vadd.f32 %v1446, %v1459
        %v1461 = vpop.f32.mrf.mxu0
        %v1462 = vadd.f32 %v1448, %v1461
        %1463 = vdwg.mxu0
        %1464 = vmatpush.bf16.msra.mxu0 %v1387
        %1465 = vmatpush.bf16.msra.mxu0 %v1385
        %1466 = vmatpush.bf16.msra.mxu0 %v1383
        %1467 = vmatpush.bf16.msra.mxu0 %v1381
        %1468 = vmatpush.bf16.msra.mxu0 %v1379
        %1469 = vmatpush.bf16.msra.mxu0 %v1377
        %1470 = vmatpush.bf16.msra.mxu0 %v1375
        %1471 = vmatpush.bf16.msra.mxu0 %v1373
        %1472 = vmatmul.bf16.gmra.mxu0 %v730
        %v1473 = vpop.f32.mrf.mxu0
        %v1474 = vadd.f32 %v1273, %v1473
        %v1475 = vpop.f32.mrf.mxu0
        %v1476 = vadd.f32 %v1273, %v1475
        %1477 = vdwg.mxu0
        %1478 = vmatpush.bf16.msra.mxu0 %v1403
        %1479 = vmatpush.bf16.msra.mxu0 %v1401
        %1480 = vmatpush.bf16.msra.mxu0 %v1399
        %1481 = vmatpush.bf16.msra.mxu0 %v1397
        %1482 = vmatpush.bf16.msra.mxu0 %v1395
        %1483 = vmatpush.bf16.msra.mxu0 %v1393
        %1484 = vmatpush.bf16.msra.mxu0 %v1391
        %1485 = vmatpush.bf16.msra.mxu0 %v1389
        %1486 = vmatmul.bf16.gmra.mxu0 %v731
        %v1487 = vpop.f32.mrf.mxu0
        %v1488 = vadd.f32 %v1474, %v1487
        %v1489 = vpop.f32.mrf.mxu0
        %v1490 = vadd.f32 %v1476, %v1489
        %1491 = vdwg.mxu0
        %v1492 = vpack.c.bf16 %v1178, %v1150
        %v1493 = vpack.c.bf16 %v1234, %v1206
        %v1494 = vpack.c.bf16 %v1180, %v1152
        %v1495 = vpack.c.bf16 %v1236, %v1208
        %v1496 = vpack.c.bf16 %v1488, %v1460
        %v1497 = vpack.c.bf16 %v1490, %v1462
        %v1500 = vunpack.c.l.b16 %v1492
        %v1501 = vunpack.c.l.b16 %v1494
        %v1502 = vpack.c.b16 %v1501, %v1500
        %v1506 = vunpack.c.l.b16 %v1493
        %v1507 = vunpack.c.l.b16 %v1495
        %v1508 = vpack.c.b16 %v1507, %v1506
        %1510 = vmatpush.bf16.xpose.msra.mxu0 0
        %1511 = vmatpush.bf16.xpose.msra.mxu0 0
        %1512 = vmatpush.bf16.xpose.msra.mxu0 0
        %1513 = vmatpush.bf16.xpose.msra.mxu0 0
        %1514 = vmatpush.bf16.xpose.msra.mxu0 0
        %1515 = vmatpush.bf16.xpose.msra.mxu0 0
        %1516 = vmatpush.bf16.xpose.msra.mxu0 0
        %1517 = vmatpush.bf16.xpose.msra.mxu0 %v1508
        %1518 = vmatmul.bf16.gmra.mxu0 %v1502
        %v1519 = vpop.f32.mrf.mxu0
        %v1520 = vadd.f32 0.0, %v1519
        %v1521 = vpop.f32.mrf.mxu0
        %v1522 = vadd.f32 0.0, %v1521
        %1523 = vdwg.mxu0
        %vm1524 = vcmask 130048
        %v1525 = vsel %vm1524, %v1520, -inf
        %1526 = vmax.xlane.f32.xlu0 %v1525
        %v1527 = vpop.xlane.xlu0 %1526
        %v1528 = vsel %vm1524, %v1522, -inf
        %1529 = vmax.xlane.f32.xlu0 %v1528
        %v1530 = vpop.xlane.xlu0 %1529
        %v1531 = vsub.f32 %v1520, %v1527
        %v1532 = vsub.f32 %v1522, %v1530
        %v1533 = vmul.f32 %v1531, 1.442695
        %v1534 = vpow.pop %v1533
        %v1535 = vmul.f32 %v1532, 1.442695
        %v1536 = vpow.pop %v1535
        %v1537 = vsel %vm1524, %v1534, 0.0
        %1538 = vadd.xlane.f32.xlu0 %v1537
        %v1539 = vpop.xlane.xlu0 %1538
        %v1540 = vsel %vm1524, %v1536, 0.0
        %1541 = vadd.xlane.f32.xlu0 %v1540
        %v1542 = vpop.xlane.xlu0 %1541
        %v1543 = vrcp.pop %v1539
        %v1544 = vrcp.pop %v1542
        %v1545 = vmul.f32 %v1534, %v1543
        %v1546 = vmul.f32 %v1536, %v1544
        %v1547 = vpack.c.bf16 %v1546, %v1545
        %v1550 = vunpack.c.l.b16 %v1496
        %v1551 = vunpack.c.l.b16 %v1497
        %v1552 = vpack.c.b16 %v1551, %v1550
        %v1555 = vsel %vm1524, %v1547, 0
        %1557 = vmatpush.bf16.msra.mxu0 0
        %1558 = vmatpush.bf16.msra.mxu0 0
        %1559 = vmatpush.bf16.msra.mxu0 0
        %1560 = vmatpush.bf16.msra.mxu0 0
        %1561 = vmatpush.bf16.msra.mxu0 0
        %1562 = vmatpush.bf16.msra.mxu0 0
        %1563 = vmatpush.bf16.msra.mxu0 0
        %1564 = vmatpush.bf16.msra.mxu0 %v1552
        %1565 = vmatmul.bf16.gmra.mxu0 %v1555
        %v1566 = vpop.f32.mrf.mxu0
        %v1567 = vadd.f32 0.0, %v1566
        %v1568 = vpop.f32.mrf.mxu0
        %v1569 = vadd.f32 0.0, %v1568
        %1570 = vdwg.mxu0
        %v1571 = vunpack.c.h.b16 %v1492
        %v1572 = vunpack.c.h.b16 %v1494
        %v1573 = vpack.c.b16 %v1572, %v1571
        %v1575 = vunpack.c.h.b16 %v1493
        %v1576 = vunpack.c.h.b16 %v1495
        %v1577 = vpack.c.b16 %v1576, %v1575
        %1579 = vmatpush.bf16.xpose.msra.mxu0 0
        %1580 = vmatpush.bf16.xpose.msra.mxu0 0
        %1581 = vmatpush.bf16.xpose.msra.mxu0 0
        %1582 = vmatpush.bf16.xpose.msra.mxu0 0
        %1583 = vmatpush.bf16.xpose.msra.mxu0 0
        %1584 = vmatpush.bf16.xpose.msra.mxu0 0
        %1585 = vmatpush.bf16.xpose.msra.mxu0 0
        %1586 = vmatpush.bf16.xpose.msra.mxu0 %v1577
        %1587 = vmatmul.bf16.gmra.mxu0 %v1573
        %v1588 = vpop.f32.mrf.mxu0
        %v1589 = vadd.f32 0.0, %v1588
        %v1590 = vpop.f32.mrf.mxu0
        %v1591 = vadd.f32 0.0, %v1590
        %1592 = vdwg.mxu0
        %v1593 = vsel %vm1524, %v1589, -inf
        %1594 = vmax.xlane.f32.xlu0 %v1593
        %v1595 = vpop.xlane.xlu0 %1594
        %v1596 = vsel %vm1524, %v1591, -inf
        %1597 = vmax.xlane.f32.xlu0 %v1596
        %v1598 = vpop.xlane.xlu0 %1597
        %v1599 = vsub.f32 %v1589, %v1595
        %v1600 = vsub.f32 %v1591, %v1598
        %v1601 = vmul.f32 %v1599, 1.442695
        %v1602 = vpow.pop %v1601
        %v1603 = vmul.f32 %v1600, 1.442695
        %v1604 = vpow.pop %v1603
        %v1605 = vsel %vm1524, %v1602, 0.0
        %1606 = vadd.xlane.f32.xlu0 %v1605
        %v1607 = vpop.xlane.xlu0 %1606
        %v1608 = vsel %vm1524, %v1604, 0.0
        %1609 = vadd.xlane.f32.xlu0 %v1608
        %v1610 = vpop.xlane.xlu0 %1609
        %v1611 = vrcp.pop %v1607
        %v1612 = vrcp.pop %v1610
        %v1613 = vmul.f32 %v1602, %v1611
        %v1614 = vmul.f32 %v1604, %v1612
        %v1615 = vpack.c.bf16 %v1614, %v1613
        %v1616 = vunpack.c.h.b16 %v1496
        %v1617 = vunpack.c.h.b16 %v1497
        %v1618 = vpack.c.b16 %v1617, %v1616
        %v1621 = vsel %vm1524, %v1615, 0
        %1623 = vmatpush.bf16.msra.mxu0 0
        %1624 = vmatpush.bf16.msra.mxu0 0
        %1625 = vmatpush.bf16.msra.mxu0 0
        %1626 = vmatpush.bf16.msra.mxu0 0
        %1627 = vmatpush.bf16.msra.mxu0 0
        %1628 = vmatpush.bf16.msra.mxu0 0
        %1629 = vmatpush.bf16.msra.mxu0 0
        %1630 = vmatpush.bf16.msra.mxu0 %v1618
        %1631 = vmatmul.bf16.gmra.mxu0 %v1621
        %v1632 = vpop.f32.mrf.mxu0
        %v1633 = vadd.f32 0.0, %v1632
        %v1634 = vpop.f32.mrf.mxu0
        %v1635 = vadd.f32 0.0, %v1634
        %1636 = vdwg.mxu0
        %v1637 = vpack.c.bf16 %v1569, %v1567
        %v1638 = vpack.c.bf16 %v1635, %v1633
        %v1639 = vld [vmem:[#allocation11] sm:$0xff]
        %v1640 = vld [vmem:[#allocation11 + $0x8] sm:$0xff]
        %v1641 = vld [vmem:[#allocation11 + $0x10] sm:$0xff]
        %v1642 = vld [vmem:[#allocation11 + $0x18] sm:$0xff]
        %v1643 = vld [vmem:[#allocation11 + $0x20] sm:$0xff]
        %v1644 = vld [vmem:[#allocation11 + $0x28] sm:$0xff]
        %v1645 = vld [vmem:[#allocation11 + $0x30] sm:$0xff]
        %v1646 = vld [vmem:[#allocation11 + $0x38] sm:$0xff]
        %v1647 = vld [vmem:[#allocation11 + $0x40] sm:$0xff]
        %v1648 = vld [vmem:[#allocation11 + $0x48] sm:$0xff]
        %v1649 = vld [vmem:[#allocation11 + $0x50] sm:$0xff]
        %v1650 = vld [vmem:[#allocation11 + $0x58] sm:$0xff]
        %v1651 = vld [vmem:[#allocation11 + $0x60] sm:$0xff]
        %v1652 = vld [vmem:[#allocation11 + $0x68] sm:$0xff]
        %v1653 = vld [vmem:[#allocation11 + $0x70] sm:$0xff]
        %v1654 = vld [vmem:[#allocation11 + $0x78] sm:$0xff]
        %v1655 = vld [vmem:[#allocation11 + $0x80] sm:$0xff]
        %v1656 = vld [vmem:[#allocation11 + $0x88] sm:$0xff]
        %v1657 = vld [vmem:[#allocation11 + $0x90] sm:$0xff]
        %v1658 = vld [vmem:[#allocation11 + $0x98] sm:$0xff]
        %v1659 = vld [vmem:[#allocation11 + $0xa0] sm:$0xff]
        %v1660 = vld [vmem:[#allocation11 + $0xa8] sm:$0xff]
        %v1661 = vld [vmem:[#allocation11 + $0xb0] sm:$0xff]
        %v1662 = vld [vmem:[#allocation11 + $0xb8] sm:$0xff]
        %v1663 = vld [vmem:[#allocation11 + $0xc0] sm:$0xff]
        %v1664 = vld [vmem:[#allocation11 + $0xc8] sm:$0xff]
        %v1665 = vld [vmem:[#allocation11 + $0xd0] sm:$0xff]
        %v1666 = vld [vmem:[#allocation11 + $0xd8] sm:$0xff]
        %v1667 = vld [vmem:[#allocation11 + $0xe0] sm:$0xff]
        %v1668 = vld [vmem:[#allocation11 + $0xe8] sm:$0xff]
        %v1669 = vld [vmem:[#allocation11 + $0xf0] sm:$0xff]
        %v1670 = vld [vmem:[#allocation11 + $0xf8] sm:$0xff]
        %v1671 = vld [vmem:[#allocation13] sm:$0x3]
        %v1673 = vperm.slane %v1671, 0
        %v1674 = vperm.slane %v1671, 1
        %v1709 = vunpack.c.l.b16 %v1639
        %v1710 = vunpack.c.h.b16 %v1639
        %v1711 = vunpack.c.l.b16 %v1640
        %v1712 = vunpack.c.h.b16 %v1640
        %v1713 = vunpack.c.l.b16 %v1641
        %v1714 = vunpack.c.h.b16 %v1641
        %v1715 = vunpack.c.l.b16 %v1642
        %v1716 = vunpack.c.h.b16 %v1642
        %v1717 = vunpack.c.l.b16 %v1643
        %v1718 = vunpack.c.h.b16 %v1643
        %v1719 = vunpack.c.l.b16 %v1644
        %v1720 = vunpack.c.h.b16 %v1644
        %v1721 = vunpack.c.l.b16 %v1645
        %v1722 = vunpack.c.h.b16 %v1645
        %v1723 = vunpack.c.l.b16 %v1646
        %v1724 = vunpack.c.h.b16 %v1646
        %v1725 = vunpack.c.l.b16 %v1647
        %v1726 = vunpack.c.h.b16 %v1647
        %v1727 = vunpack.c.l.b16 %v1648
        %v1728 = vunpack.c.h.b16 %v1648
        %v1729 = vunpack.c.l.b16 %v1649
        %v1730 = vunpack.c.h.b16 %v1649
        %v1731 = vunpack.c.l.b16 %v1650
        %v1732 = vunpack.c.h.b16 %v1650
        %v1733 = vunpack.c.l.b16 %v1651
        %v1734 = vunpack.c.h.b16 %v1651
        %v1735 = vunpack.c.l.b16 %v1652
        %v1736 = vunpack.c.h.b16 %v1652
        %v1737 = vunpack.c.l.b16 %v1653
        %v1738 = vunpack.c.h.b16 %v1653
        %v1739 = vunpack.c.l.b16 %v1654
        %v1740 = vunpack.c.h.b16 %v1654
        %v1741 = vunpack.c.l.b16 %v1655
        %v1742 = vunpack.c.h.b16 %v1655
        %v1743 = vunpack.c.l.b16 %v1656
        %v1744 = vunpack.c.h.b16 %v1656
        %v1745 = vunpack.c.l.b16 %v1657
        %v1746 = vunpack.c.h.b16 %v1657
        %v1747 = vunpack.c.l.b16 %v1658
        %v1748 = vunpack.c.h.b16 %v1658
        %v1749 = vunpack.c.l.b16 %v1659
        %v1750 = vunpack.c.h.b16 %v1659
        %v1751 = vunpack.c.l.b16 %v1660
        %v1752 = vunpack.c.h.b16 %v1660
        %v1753 = vunpack.c.l.b16 %v1661
        %v1754 = vunpack.c.h.b16 %v1661
        %v1755 = vunpack.c.l.b16 %v1662
        %v1756 = vunpack.c.h.b16 %v1662
        %v1757 = vunpack.c.l.b16 %v1663
        %v1758 = vunpack.c.h.b16 %v1663
        %v1759 = vunpack.c.l.b16 %v1664
        %v1760 = vunpack.c.h.b16 %v1664
        %v1761 = vunpack.c.l.b16 %v1665
        %v1762 = vunpack.c.h.b16 %v1665
        %v1763 = vunpack.c.l.b16 %v1666
        %v1764 = vunpack.c.h.b16 %v1666
        %v1765 = vunpack.c.l.b16 %v1667
        %v1766 = vunpack.c.h.b16 %v1667
        %v1767 = vunpack.c.l.b16 %v1668
        %v1768 = vunpack.c.h.b16 %v1668
        %v1769 = vunpack.c.l.b16 %v1669
        %v1770 = vunpack.c.h.b16 %v1669
        %v1771 = vunpack.c.l.b16 %v1670
        %v1772 = vunpack.c.h.b16 %v1670
        %v1773 = vpack.c.b16 %v1711, %v1709
        %v1774 = vpack.c.b16 %v1712, %v1710
        %v1775 = vpack.c.b16 %v1715, %v1713
        %v1776 = vpack.c.b16 %v1716, %v1714
        %v1777 = vpack.c.b16 %v1719, %v1717
        %v1778 = vpack.c.b16 %v1720, %v1718
        %v1779 = vpack.c.b16 %v1723, %v1721
        %v1780 = vpack.c.b16 %v1724, %v1722
        %v1781 = vpack.c.b16 %v1727, %v1725
        %v1782 = vpack.c.b16 %v1728, %v1726
        %v1783 = vpack.c.b16 %v1731, %v1729
        %v1784 = vpack.c.b16 %v1732, %v1730
        %v1785 = vpack.c.b16 %v1735, %v1733
        %v1786 = vpack.c.b16 %v1736, %v1734
        %v1787 = vpack.c.b16 %v1739, %v1737
        %v1788 = vpack.c.b16 %v1740, %v1738
        %v1789 = vpack.c.b16 %v1743, %v1741
        %v1790 = vpack.c.b16 %v1744, %v1742
        %v1791 = vpack.c.b16 %v1747, %v1745
        %v1792 = vpack.c.b16 %v1748, %v1746
        %v1793 = vpack.c.b16 %v1751, %v1749
        %v1794 = vpack.c.b16 %v1752, %v1750
        %v1795 = vpack.c.b16 %v1755, %v1753
        %v1796 = vpack.c.b16 %v1756, %v1754
        %v1797 = vpack.c.b16 %v1759, %v1757
        %v1798 = vpack.c.b16 %v1760, %v1758
        %v1799 = vpack.c.b16 %v1763, %v1761
        %v1800 = vpack.c.b16 %v1764, %v1762
        %v1801 = vpack.c.b16 %v1767, %v1765
        %v1802 = vpack.c.b16 %v1768, %v1766
        %v1803 = vpack.c.b16 %v1771, %v1769
        %v1804 = vpack.c.b16 %v1772, %v1770
        %1837 = vmatpush.bf16.msra.mxu0 %v1787
        %1838 = vmatpush.bf16.msra.mxu0 %v1785
        %1839 = vmatpush.bf16.msra.mxu0 %v1783
        %1840 = vmatpush.bf16.msra.mxu0 %v1781
        %1841 = vmatpush.bf16.msra.mxu0 %v1779
        %1842 = vmatpush.bf16.msra.mxu0 %v1777
        %1843 = vmatpush.bf16.msra.mxu0 %v1775
        %1844 = vmatpush.bf16.msra.mxu0 %v1773
        %1845 = vmatmul.bf16.gmra.mxu0 %v1637
        %v1846 = vpop.f32.mrf.mxu0
        %v1847 = vadd.f32 %v1673, %v1846
        %v1848 = vpop.f32.mrf.mxu0
        %v1849 = vadd.f32 %v1673, %v1848
        %1850 = vdwg.mxu0
        %1851 = vmatpush.bf16.msra.mxu0 %v1803
        %1852 = vmatpush.bf16.msra.mxu0 %v1801
        %1853 = vmatpush.bf16.msra.mxu0 %v1799
        %1854 = vmatpush.bf16.msra.mxu0 %v1797
        %1855 = vmatpush.bf16.msra.mxu0 %v1795
        %1856 = vmatpush.bf16.msra.mxu0 %v1793
        %1857 = vmatpush.bf16.msra.mxu0 %v1791
        %1858 = vmatpush.bf16.msra.mxu0 %v1789
        %1859 = vmatmul.bf16.gmra.mxu0 %v1638
        %v1860 = vpop.f32.mrf.mxu0
        %v1861 = vadd.f32 %v1847, %v1860
        %v1862 = vpop.f32.mrf.mxu0
        %v1863 = vadd.f32 %v1849, %v1862
        %1864 = vdwg.mxu0
        %1865 = vmatpush.bf16.msra.mxu0 %v1788
        %1866 = vmatpush.bf16.msra.mxu0 %v1786
        %1867 = vmatpush.bf16.msra.mxu0 %v1784
        %1868 = vmatpush.bf16.msra.mxu0 %v1782
        %1869 = vmatpush.bf16.msra.mxu0 %v1780
        %1870 = vmatpush.bf16.msra.mxu0 %v1778
        %1871 = vmatpush.bf16.msra.mxu0 %v1776
        %1872 = vmatpush.bf16.msra.mxu0 %v1774
        %1873 = vmatmul.bf16.gmra.mxu0 %v1637
        %v1874 = vpop.f32.mrf.mxu0
        %v1875 = vadd.f32 %v1674, %v1874
        %v1876 = vpop.f32.mrf.mxu0
        %v1877 = vadd.f32 %v1674, %v1876
        %1878 = vdwg.mxu0
        %1879 = vmatpush.bf16.msra.mxu0 %v1804
        %1880 = vmatpush.bf16.msra.mxu0 %v1802
        %1881 = vmatpush.bf16.msra.mxu0 %v1800
        %1882 = vmatpush.bf16.msra.mxu0 %v1798
        %1883 = vmatpush.bf16.msra.mxu0 %v1796
        %1884 = vmatpush.bf16.msra.mxu0 %v1794
        %1885 = vmatpush.bf16.msra.mxu0 %v1792
        %1886 = vmatpush.bf16.msra.mxu0 %v1790
        %1887 = vmatmul.bf16.gmra.mxu0 %v1638
        %v1888 = vpop.f32.mrf.mxu0
        %v1889 = vadd.f32 %v1875, %v1888
        %v1890 = vpop.f32.mrf.mxu0
        %v1891 = vadd.f32 %v1877, %v1890
        %1892 = vdwg.mxu0
        %v1893 = vadd.f32 %v716, %v1861
        %v1894 = vadd.f32 %v717, %v1889
        %v1895 = vadd.f32 %v718, %v1863
        %v1896 = vadd.f32 %v719, %v1891
        %v1897 = vadd.f32 %v1893, %v1894
        %1898 = vadd.xlane.f32.xlu0 %v1897
        %v1899 = vpop.xlane.xlu0 %1898
        %v1900 = vadd.f32 %v1895, %v1896
        %1901 = vadd.xlane.f32.xlu0 %v1900
        %v1902 = vpop.xlane.xlu0 %1901
        %v1903 = vrcp.pop 256.0
        %v1904 = vmul.f32 256.0, %v1903
        %v1905 = vsub.f32 1.0, %v1904
        %v1906 = vmul.f32 %v1903, %v1905
        %v1907 = vadd.f32 %v1903, %v1906
        %vm1908 = vweird.f32 %v1903
        %v1909 = vsel %vm1908, %v1903, %v1907
        %v1910 = vmul.f32 %v1899, %v1909
        %v1911 = vmul.f32 %v1902, %v1909
        %v1912 = vsub.f32 %v1893, %v1910
        %v1913 = vsub.f32 %v1894, %v1910
        %v1914 = vsub.f32 %v1895, %v1911
        %v1915 = vsub.f32 %v1896, %v1911
        %v1916 = vmul.f32 %v1912, %v1912
        %v1917 = vmul.f32 %v1913, %v1913
        %v1918 = vmul.f32 %v1914, %v1914
        %v1919 = vmul.f32 %v1915, %v1915
        %v1920 = vadd.f32 %v1916, %v1917
        %1921 = vadd.xlane.f32.xlu0 %v1920
        %v1922 = vpop.xlane.xlu0 %1921
        %v1923 = vadd.f32 %v1918, %v1919
        %1924 = vadd.xlane.f32.xlu0 %v1923
        %v1925 = vpop.xlane.xlu0 %1924
        %v1926 = vmul.f32 %v1922, %v1909
        %v1927 = vmul.f32 %v1925, %v1909
        %v1928 = vadd.f32 %v1926, 1e-05
        %v1929 = vadd.f32 %v1927, 1e-05
        %v1930 = vrsqrt.pop %v1928
        %v1931 = vmul.f32 %v1930, %v1928
        %v1932 = vmul.f32 %v1931, %v1930
        %v1933 = vmul.f32 0.5, %v1932
        %v1934 = vsub.f32 1.5, %v1933
        %v1935 = vmul.f32 %v1930, %v1934
        %vm1936 = vweird.f32 %v1928
        %vm1937 = vweird.f32 %v1930
        %vm1938 = vmor %vm1936, %vm1937
        %v1939 = vsel %vm1938, %v1930, %v1935
        %v1940 = vrsqrt.pop %v1929
        %v1941 = vmul.f32 %v1940, %v1929
        %v1942 = vmul.f32 %v1941, %v1940
        %v1943 = vmul.f32 0.5, %v1942
        %v1944 = vsub.f32 1.5, %v1943
        %v1945 = vmul.f32 %v1940, %v1944
        %vm1946 = vweird.f32 %v1929
        %vm1947 = vweird.f32 %v1940
        %vm1948 = vmor %vm1946, %vm1947
        %v1949 = vsel %vm1948, %v1940, %v1945
        %v1950 = vmul.f32 %v1912, %v1939
        %v1951 = vmul.f32 %v1913, %v1939
        %v1952 = vmul.f32 %v1914, %v1949
        %v1953 = vmul.f32 %v1915, %v1949
        %v1954 = vld [vmem:[#allocation14] sm:$0x3]
        %v1956 = vperm.slane %v1954, 0
        %v1957 = vperm.slane %v1954, 1
        %v1960 = vmul.f32 %v1950, %v1956
        %v1961 = vmul.f32 %v1951, %v1957
        %v1962 = vmul.f32 %v1952, %v1956
        %v1963 = vmul.f32 %v1953, %v1957
        %v1964 = vld [vmem:[%s9] sm:$0x3]
        %v1966 = vperm.slane %v1964, 0
        %v1967 = vperm.slane %v1964, 1
        %v1970 = vadd.f32 %v1960, %v1966
        %v1971 = vadd.f32 %v1961, %v1967
        %v1972 = vadd.f32 %v1962, %v1966
        %v1973 = vadd.f32 %v1963, %v1967
        %v1974 = vpack.c.bf16 %v1972, %v1970
        %v1975 = vpack.c.bf16 %v1973, %v1971
        %v1976 = vld [vmem:[#allocation16] sm:$0xff]
        %v1977 = vld [vmem:[#allocation16 + $0x8] sm:$0xff]
        %v1978 = vld [vmem:[#allocation16 + $0x10] sm:$0xff]
        %v1979 = vld [vmem:[#allocation16 + $0x18] sm:$0xff]
        %v1980 = vld [vmem:[#allocation16 + $0x20] sm:$0xff]
        %v1981 = vld [vmem:[#allocation16 + $0x28] sm:$0xff]
        %v1982 = vld [vmem:[#allocation16 + $0x30] sm:$0xff]
        %v1983 = vld [vmem:[#allocation16 + $0x38] sm:$0xff]
        %v1984 = vld [vmem:[#allocation16 + $0x40] sm:$0xff]
        %v1985 = vld [vmem:[#allocation16 + $0x48] sm:$0xff]
        %v1986 = vld [vmem:[#allocation16 + $0x50] sm:$0xff]
        %v1987 = vld [vmem:[#allocation16 + $0x58] sm:$0xff]
        %v1988 = vld [vmem:[#allocation16 + $0x60] sm:$0xff]
        %v1989 = vld [vmem:[#allocation16 + $0x68] sm:$0xff]
        %v1990 = vld [vmem:[#allocation16 + $0x70] sm:$0xff]
        %v1991 = vld [vmem:[#allocation16 + $0x78] sm:$0xff]
        %v1992 = vld [vmem:[#allocation16 + $0x80] sm:$0xff]
        %v1993 = vld [vmem:[#allocation16 + $0x88] sm:$0xff]
        %v1994 = vld [vmem:[#allocation16 + $0x90] sm:$0xff]
        %v1995 = vld [vmem:[#allocation16 + $0x98] sm:$0xff]
        %v1996 = vld [vmem:[#allocation16 + $0xa0] sm:$0xff]
        %v1997 = vld [vmem:[#allocation16 + $0xa8] sm:$0xff]
        %v1998 = vld [vmem:[#allocation16 + $0xb0] sm:$0xff]
        %v1999 = vld [vmem:[#allocation16 + $0xb8] sm:$0xff]
        %v2000 = vld [vmem:[#allocation16 + $0xc0] sm:$0xff]
        %v2001 = vld [vmem:[#allocation16 + $0xc8] sm:$0xff]
        %v2002 = vld [vmem:[#allocation16 + $0xd0] sm:$0xff]
        %v2003 = vld [vmem:[#allocation16 + $0xd8] sm:$0xff]
        %v2004 = vld [vmem:[#allocation16 + $0xe0] sm:$0xff]
        %v2005 = vld [vmem:[#allocation16 + $0xe8] sm:$0xff]
        %v2006 = vld [vmem:[#allocation16 + $0xf0] sm:$0xff]
        %v2007 = vld [vmem:[#allocation16 + $0xf8] sm:$0xff]
        %v2008 = vld [vmem:[#allocation16 + $0x100] sm:$0xff]
        %v2009 = vld [vmem:[#allocation16 + $0x108] sm:$0xff]
        %v2010 = vld [vmem:[#allocation16 + $0x110] sm:$0xff]
        %v2011 = vld [vmem:[#allocation16 + $0x118] sm:$0xff]
        %v2012 = vld [vmem:[#allocation16 + $0x120] sm:$0xff]
        %v2013 = vld [vmem:[#allocation16 + $0x128] sm:$0xff]
        %v2014 = vld [vmem:[#allocation16 + $0x130] sm:$0xff]
        %v2015 = vld [vmem:[#allocation16 + $0x138] sm:$0xff]
        %v2016 = vld [vmem:[#allocation16 + $0x140] sm:$0xff]
        %v2017 = vld [vmem:[#allocation16 + $0x148] sm:$0xff]
        %v2018 = vld [vmem:[#allocation16 + $0x150] sm:$0xff]
        %v2019 = vld [vmem:[#allocation16 + $0x158] sm:$0xff]
        %v2020 = vld [vmem:[#allocation16 + $0x160] sm:$0xff]
        %v2021 = vld [vmem:[#allocation16 + $0x168] sm:$0xff]
        %v2022 = vld [vmem:[#allocation16 + $0x170] sm:$0xff]
        %v2023 = vld [vmem:[#allocation16 + $0x178] sm:$0xff]
        %v2024 = vld [vmem:[#allocation16 + $0x180] sm:$0xff]
        %v2025 = vld [vmem:[#allocation16 + $0x188] sm:$0xff]
        %v2026 = vld [vmem:[#allocation16 + $0x190] sm:$0xff]
        %v2027 = vld [vmem:[#allocation16 + $0x198] sm:$0xff]
        %v2028 = vld [vmem:[#allocation16 + $0x1a0] sm:$0xff]
        %v2029 = vld [vmem:[#allocation16 + $0x1a8] sm:$0xff]
        %v2030 = vld [vmem:[#allocation16 + $0x1b0] sm:$0xff]
        %v2031 = vld [vmem:[#allocation16 + $0x1b8] sm:$0xff]
        %v2032 = vld [vmem:[#allocation16 + $0x1c0] sm:$0xff]
        %v2033 = vld [vmem:[#allocation16 + $0x1c8] sm:$0xff]
        %v2034 = vld [vmem:[#allocation16 + $0x1d0] sm:$0xff]
        %v2035 = vld [vmem:[#allocation16 + $0x1d8] sm:$0xff]
        %v2036 = vld [vmem:[#allocation16 + $0x1e0] sm:$0xff]
        %v2037 = vld [vmem:[#allocation16 + $0x1e8] sm:$0xff]
        %v2038 = vld [vmem:[#allocation16 + $0x1f0] sm:$0xff]
        %v2039 = vld [vmem:[#allocation16 + $0x1f8] sm:$0xff]
        %v2040 = vld [vmem:[%s11] sm:$0xf]
        %v2042 = vperm.slane %v2040, 0
        %v2043 = vperm.slane %v2040, 1
        %v2044 = vperm.slane %v2040, 2
        %v2045 = vperm.slane %v2040, 3
        %v2114 = vunpack.c.l.b16 %v1976
        %v2115 = vunpack.c.h.b16 %v1976
        %v2116 = vunpack.c.l.b16 %v1977
        %v2117 = vunpack.c.h.b16 %v1977
        %v2118 = vunpack.c.l.b16 %v1978
        %v2119 = vunpack.c.h.b16 %v1978
        %v2120 = vunpack.c.l.b16 %v1979
        %v2121 = vunpack.c.h.b16 %v1979
        %v2122 = vunpack.c.l.b16 %v1980
        %v2123 = vunpack.c.h.b16 %v1980
        %v2124 = vunpack.c.l.b16 %v1981
        %v2125 = vunpack.c.h.b16 %v1981
        %v2126 = vunpack.c.l.b16 %v1982
        %v2127 = vunpack.c.h.b16 %v1982
        %v2128 = vunpack.c.l.b16 %v1983
        %v2129 = vunpack.c.h.b16 %v1983
        %v2130 = vunpack.c.l.b16 %v1984
        %v2131 = vunpack.c.h.b16 %v1984
        %v2132 = vunpack.c.l.b16 %v1985
        %v2133 = vunpack.c.h.b16 %v1985
        %v2134 = vunpack.c.l.b16 %v1986
        %v2135 = vunpack.c.h.b16 %v1986
        %v2136 = vunpack.c.l.b16 %v1987
        %v2137 = vunpack.c.h.b16 %v1987
        %v2138 = vunpack.c.l.b16 %v1988
        %v2139 = vunpack.c.h.b16 %v1988
        %v2140 = vunpack.c.l.b16 %v1989
        %v2141 = vunpack.c.h.b16 %v1989
        %v2142 = vunpack.c.l.b16 %v1990
        %v2143 = vunpack.c.h.b16 %v1990
        %v2144 = vunpack.c.l.b16 %v1991
        %v2145 = vunpack.c.h.b16 %v1991
        %v2146 = vunpack.c.l.b16 %v1992
        %v2147 = vunpack.c.h.b16 %v1992
        %v2148 = vunpack.c.l.b16 %v1993
        %v2149 = vunpack.c.h.b16 %v1993
        %v2150 = vunpack.c.l.b16 %v1994
        %v2151 = vunpack.c.h.b16 %v1994
        %v2152 = vunpack.c.l.b16 %v1995
        %v2153 = vunpack.c.h.b16 %v1995
        %v2154 = vunpack.c.l.b16 %v1996
        %v2155 = vunpack.c.h.b16 %v1996
        %v2156 = vunpack.c.l.b16 %v1997
        %v2157 = vunpack.c.h.b16 %v1997
        %v2158 = vunpack.c.l.b16 %v1998
        %v2159 = vunpack.c.h.b16 %v1998
        %v2160 = vunpack.c.l.b16 %v1999
        %v2161 = vunpack.c.h.b16 %v1999
        %v2162 = vunpack.c.l.b16 %v2000
        %v2163 = vunpack.c.h.b16 %v2000
        %v2164 = vunpack.c.l.b16 %v2001
        %v2165 = vunpack.c.h.b16 %v2001
        %v2166 = vunpack.c.l.b16 %v2002
        %v2167 = vunpack.c.h.b16 %v2002
        %v2168 = vunpack.c.l.b16 %v2003
        %v2169 = vunpack.c.h.b16 %v2003
        %v2170 = vunpack.c.l.b16 %v2004
        %v2171 = vunpack.c.h.b16 %v2004
        %v2172 = vunpack.c.l.b16 %v2005
        %v2173 = vunpack.c.h.b16 %v2005
        %v2174 = vunpack.c.l.b16 %v2006
        %v2175 = vunpack.c.h.b16 %v2006
        %v2176 = vunpack.c.l.b16 %v2007
        %v2177 = vunpack.c.h.b16 %v2007
        %v2178 = vunpack.c.l.b16 %v2008
        %v2179 = vunpack.c.h.b16 %v2008
        %v2180 = vunpack.c.l.b16 %v2009
        %v2181 = vunpack.c.h.b16 %v2009
        %v2182 = vunpack.c.l.b16 %v2010
        %v2183 = vunpack.c.h.b16 %v2010
        %v2184 = vunpack.c.l.b16 %v2011
        %v2185 = vunpack.c.h.b16 %v2011
        %v2186 = vunpack.c.l.b16 %v2012
        %v2187 = vunpack.c.h.b16 %v2012
        %v2188 = vunpack.c.l.b16 %v2013
        %v2189 = vunpack.c.h.b16 %v2013
        %v2190 = vunpack.c.l.b16 %v2014
        %v2191 = vunpack.c.h.b16 %v2014
        %v2192 = vunpack.c.l.b16 %v2015
        %v2193 = vunpack.c.h.b16 %v2015
        %v2194 = vunpack.c.l.b16 %v2016
        %v2195 = vunpack.c.h.b16 %v2016
        %v2196 = vunpack.c.l.b16 %v2017
        %v2197 = vunpack.c.h.b16 %v2017
        %v2198 = vunpack.c.l.b16 %v2018
        %v2199 = vunpack.c.h.b16 %v2018
        %v2200 = vunpack.c.l.b16 %v2019
        %v2201 = vunpack.c.h.b16 %v2019
        %v2202 = vunpack.c.l.b16 %v2020
        %v2203 = vunpack.c.h.b16 %v2020
        %v2204 = vunpack.c.l.b16 %v2021
        %v2205 = vunpack.c.h.b16 %v2021
        %v2206 = vunpack.c.l.b16 %v2022
        %v2207 = vunpack.c.h.b16 %v2022
        %v2208 = vunpack.c.l.b16 %v2023
        %v2209 = vunpack.c.h.b16 %v2023
        %v2210 = vunpack.c.l.b16 %v2024
        %v2211 = vunpack.c.h.b16 %v2024
        %v2212 = vunpack.c.l.b16 %v2025
        %v2213 = vunpack.c.h.b16 %v2025
        %v2214 = vunpack.c.l.b16 %v2026
        %v2215 = vunpack.c.h.b16 %v2026
        %v2216 = vunpack.c.l.b16 %v2027
        %v2217 = vunpack.c.h.b16 %v2027
        %v2218 = vunpack.c.l.b16 %v2028
        %v2219 = vunpack.c.h.b16 %v2028
        %v2220 = vunpack.c.l.b16 %v2029
        %v2221 = vunpack.c.h.b16 %v2029
        %v2222 = vunpack.c.l.b16 %v2030
        %v2223 = vunpack.c.h.b16 %v2030
        %v2224 = vunpack.c.l.b16 %v2031
        %v2225 = vunpack.c.h.b16 %v2031
        %v2226 = vunpack.c.l.b16 %v2032
        %v2227 = vunpack.c.h.b16 %v2032
        %v2228 = vunpack.c.l.b16 %v2033
        %v2229 = vunpack.c.h.b16 %v2033
        %v2230 = vunpack.c.l.b16 %v2034
        %v2231 = vunpack.c.h.b16 %v2034
        %v2232 = vunpack.c.l.b16 %v2035
        %v2233 = vunpack.c.h.b16 %v2035
        %v2234 = vunpack.c.l.b16 %v2036
        %v2235 = vunpack.c.h.b16 %v2036
        %v2236 = vunpack.c.l.b16 %v2037
        %v2237 = vunpack.c.h.b16 %v2037
        %v2238 = vunpack.c.l.b16 %v2038
        %v2239 = vunpack.c.h.b16 %v2038
        %v2240 = vunpack.c.l.b16 %v2039
        %v2241 = vunpack.c.h.b16 %v2039
        %v2242 = vpack.c.b16 %v2118, %v2114
        %v2243 = vpack.c.b16 %v2119, %v2115
        %v2244 = vpack.c.b16 %v2120, %v2116
        %v2245 = vpack.c.b16 %v2121, %v2117
        %v2246 = vpack.c.b16 %v2126, %v2122
        %v2247 = vpack.c.b16 %v2127, %v2123
        %v2248 = vpack.c.b16 %v2128, %v2124
        %v2249 = vpack.c.b16 %v2129, %v2125
        %v2250 = vpack.c.b16 %v2134, %v2130
        %v2251 = vpack.c.b16 %v2135, %v2131
        %v2252 = vpack.c.b16 %v2136, %v2132
        %v2253 = vpack.c.b16 %v2137, %v2133
        %v2254 = vpack.c.b16 %v2142, %v2138
        %v2255 = vpack.c.b16 %v2143, %v2139
        %v2256 = vpack.c.b16 %v2144, %v2140
        %v2257 = vpack.c.b16 %v2145, %v2141
        %v2258 = vpack.c.b16 %v2150, %v2146
        %v2259 = vpack.c.b16 %v2151, %v2147
        %v2260 = vpack.c.b16 %v2152, %v2148
        %v2261 = vpack.c.b16 %v2153, %v2149
        %v2262 = vpack.c.b16 %v2158, %v2154
        %v2263 = vpack.c.b16 %v2159, %v2155
        %v2264 = vpack.c.b16 %v2160, %v2156
        %v2265 = vpack.c.b16 %v2161, %v2157
        %v2266 = vpack.c.b16 %v2166, %v2162
        %v2267 = vpack.c.b16 %v2167, %v2163
        %v2268 = vpack.c.b16 %v2168, %v2164
        %v2269 = vpack.c.b16 %v2169, %v2165
        %v2270 = vpack.c.b16 %v2174, %v2170
        %v2271 = vpack.c.b16 %v2175, %v2171
        %v2272 = vpack.c.b16 %v2176, %v2172
        %v2273 = vpack.c.b16 %v2177, %v2173
        %v2274 = vpack.c.b16 %v2182, %v2178
        %v2275 = vpack.c.b16 %v2183, %v2179
        %v2276 = vpack.c.b16 %v2184, %v2180
        %v2277 = vpack.c.b16 %v2185, %v2181
        %v2278 = vpack.c.b16 %v2190, %v2186
        %v2279 = vpack.c.b16 %v2191, %v2187
        %v2280 = vpack.c.b16 %v2192, %v2188
        %v2281 = vpack.c.b16 %v2193, %v2189
        %v2282 = vpack.c.b16 %v2198, %v2194
        %v2283 = vpack.c.b16 %v2199, %v2195
        %v2284 = vpack.c.b16 %v2200, %v2196
        %v2285 = vpack.c.b16 %v2201, %v2197
        %v2286 = vpack.c.b16 %v2206, %v2202
        %v2287 = vpack.c.b16 %v2207, %v2203
        %v2288 = vpack.c.b16 %v2208, %v2204
        %v2289 = vpack.c.b16 %v2209, %v2205
        %v2290 = vpack.c.b16 %v2214, %v2210
        %v2291 = vpack.c.b16 %v2215, %v2211
        %v2292 = vpack.c.b16 %v2216, %v2212
        %v2293 = vpack.c.b16 %v2217, %v2213
        %v2294 = vpack.c.b16 %v2222, %v2218
        %v2295 = vpack.c.b16 %v2223, %v2219
        %v2296 = vpack.c.b16 %v2224, %v2220
        %v2297 = vpack.c.b16 %v2225, %v2221
        %v2298 = vpack.c.b16 %v2230, %v2226
        %v2299 = vpack.c.b16 %v2231, %v2227
        %v2300 = vpack.c.b16 %v2232, %v2228
        %v2301 = vpack.c.b16 %v2233, %v2229
        %v2302 = vpack.c.b16 %v2238, %v2234
        %v2303 = vpack.c.b16 %v2239, %v2235
        %v2304 = vpack.c.b16 %v2240, %v2236
        %v2305 = vpack.c.b16 %v2241, %v2237
        %2370 = vmatpush.bf16.msra.mxu0 %v2270
        %2371 = vmatpush.bf16.msra.mxu0 %v2266
        %2372 = vmatpush.bf16.msra.mxu0 %v2262
        %2373 = vmatpush.bf16.msra.mxu0 %v2258
        %2374 = vmatpush.bf16.msra.mxu0 %v2254
        %2375 = vmatpush.bf16.msra.mxu0 %v2250
        %2376 = vmatpush.bf16.msra.mxu0 %v2246
        %2377 = vmatpush.bf16.msra.mxu0 %v2242
        %2378 = vmatmul.bf16.gmra.mxu0 %v1974
        %v2379 = vpop.f32.mrf.mxu0
        %v2380 = vadd.f32 %v2042, %v2379
        %v2381 = vpop.f32.mrf.mxu0
        %v2382 = vadd.f32 %v2042, %v2381
        %2383 = vdwg.mxu0
        %2384 = vmatpush.bf16.msra.mxu0 %v2302
        %2385 = vmatpush.bf16.msra.mxu0 %v2298
        %2386 = vmatpush.bf16.msra.mxu0 %v2294
        %2387 = vmatpush.bf16.msra.mxu0 %v2290
        %2388 = vmatpush.bf16.msra.mxu0 %v2286
        %2389 = vmatpush.bf16.msra.mxu0 %v2282
        %2390 = vmatpush.bf16.msra.mxu0 %v2278
        %2391 = vmatpush.bf16.msra.mxu0 %v2274
        %2392 = vmatmul.bf16.gmra.mxu0 %v1975
        %v2393 = vpop.f32.mrf.mxu0
        %v2394 = vadd.f32 %v2380, %v2393
        %v2395 = vpop.f32.mrf.mxu0
        %v2396 = vadd.f32 %v2382, %v2395
        %2397 = vdwg.mxu0
        %2398 = vmatpush.bf16.msra.mxu0 %v2271
        %2399 = vmatpush.bf16.msra.mxu0 %v2267
        %2400 = vmatpush.bf16.msra.mxu0 %v2263
        %2401 = vmatpush.bf16.msra.mxu0 %v2259
        %2402 = vmatpush.bf16.msra.mxu0 %v2255
        %2403 = vmatpush.bf16.msra.mxu0 %v2251
        %2404 = vmatpush.bf16.msra.mxu0 %v2247
        %2405 = vmatpush.bf16.msra.mxu0 %v2243
        %2406 = vmatmul.bf16.gmra.mxu0 %v1974
        %v2407 = vpop.f32.mrf.mxu0
        %v2408 = vadd.f32 %v2043, %v2407
        %v2409 = vpop.f32.mrf.mxu0
        %v2410 = vadd.f32 %v2043, %v2409
        %2411 = vdwg.mxu0
        %2412 = vmatpush.bf16.msra.mxu0 %v2303
        %2413 = vmatpush.bf16.msra.mxu0 %v2299
        %2414 = vmatpush.bf16.msra.mxu0 %v2295
        %2415 = vmatpush.bf16.msra.mxu0 %v2291
        %2416 = vmatpush.bf16.msra.mxu0 %v2287
        %2417 = vmatpush.bf16.msra.mxu0 %v2283
        %2418 = vmatpush.bf16.msra.mxu0 %v2279
        %2419 = vmatpush.bf16.msra.mxu0 %v2275
        %2420 = vmatmul.bf16.gmra.mxu0 %v1975
        %v2421 = vpop.f32.mrf.mxu0
        %v2422 = vadd.f32 %v2408, %v2421
        %v2423 = vpop.f32.mrf.mxu0
        %v2424 = vadd.f32 %v2410, %v2423
        %2425 = vdwg.mxu0
        %2426 = vmatpush.bf16.msra.mxu0 %v2272
        %2427 = vmatpush.bf16.msra.mxu0 %v2268
        %2428 = vmatpush.bf16.msra.mxu0 %v2264
        %2429 = vmatpush.bf16.msra.mxu0 %v2260
        %2430 = vmatpush.bf16.msra.mxu0 %v2256
        %2431 = vmatpush.bf16.msra.mxu0 %v2252
        %2432 = vmatpush.bf16.msra.mxu0 %v2248
        %2433 = vmatpush.bf16.msra.mxu0 %v2244
        %2434 = vmatmul.bf16.gmra.mxu0 %v1974
        %v2435 = vpop.f32.mrf.mxu0
        %v2436 = vadd.f32 %v2044, %v2435
        %v2437 = vpop.f32.mrf.mxu0
        %v2438 = vadd.f32 %v2044, %v2437
        %2439 = vdwg.mxu0
        %2440 = vmatpush.bf16.msra.mxu0 %v2304
        %2441 = vmatpush.bf16.msra.mxu0 %v2300
        %2442 = vmatpush.bf16.msra.mxu0 %v2296
        %2443 = vmatpush.bf16.msra.mxu0 %v2292
        %2444 = vmatpush.bf16.msra.mxu0 %v2288
        %2445 = vmatpush.bf16.msra.mxu0 %v2284
        %2446 = vmatpush.bf16.msra.mxu0 %v2280
        %2447 = vmatpush.bf16.msra.mxu0 %v2276
        %2448 = vmatmul.bf16.gmra.mxu0 %v1975
        %v2449 = vpop.f32.mrf.mxu0
        %v2450 = vadd.f32 %v2436, %v2449
        %v2451 = vpop.f32.mrf.mxu0
        %v2452 = vadd.f32 %v2438, %v2451
        %2453 = vdwg.mxu0
        %2454 = vmatpush.bf16.msra.mxu0 %v2273
        %2455 = vmatpush.bf16.msra.mxu0 %v2269
        %2456 = vmatpush.bf16.msra.mxu0 %v2265
        %2457 = vmatpush.bf16.msra.mxu0 %v2261
        %2458 = vmatpush.bf16.msra.mxu0 %v2257
        %2459 = vmatpush.bf16.msra.mxu0 %v2253
        %2460 = vmatpush.bf16.msra.mxu0 %v2249
        %2461 = vmatpush.bf16.msra.mxu0 %v2245
        %2462 = vmatmul.bf16.gmra.mxu0 %v1974
        %v2463 = vpop.f32.mrf.mxu0
        %v2464 = vadd.f32 %v2045, %v2463
        %v2465 = vpop.f32.mrf.mxu0
        %v2466 = vadd.f32 %v2045, %v2465
        %2467 = vdwg.mxu0
        %2468 = vmatpush.bf16.msra.mxu0 %v2305
        %2469 = vmatpush.bf16.msra.mxu0 %v2301
        %2470 = vmatpush.bf16.msra.mxu0 %v2297
        %2471 = vmatpush.bf16.msra.mxu0 %v2293
        %2472 = vmatpush.bf16.msra.mxu0 %v2289
        %2473 = vmatpush.bf16.msra.mxu0 %v2285
        %2474 = vmatpush.bf16.msra.mxu0 %v2281
        %2475 = vmatpush.bf16.msra.mxu0 %v2277
        %2476 = vmatmul.bf16.gmra.mxu0 %v1975
        %v2477 = vpop.f32.mrf.mxu0
        %v2478 = vadd.f32 %v2464, %v2477
        %v2479 = vpop.f32.mrf.mxu0
        %v2480 = vadd.f32 %v2466, %v2479
        %2481 = vdwg.mxu0
        %v2482 = vmax.f32 %v2394, 0.0
        %v2483 = vmax.f32 %v2422, 0.0
        %v2484 = vmax.f32 %v2450, 0.0
        %v2485 = vmax.f32 %v2478, 0.0
        %v2486 = vmax.f32 %v2396, 0.0
        %v2487 = vmax.f32 %v2424, 0.0
        %v2488 = vmax.f32 %v2452, 0.0
        %v2489 = vmax.f32 %v2480, 0.0
        %v2490 = vpack.c.bf16 %v2486, %v2482
        %v2491 = vpack.c.bf16 %v2487, %v2483
        %v2492 = vpack.c.bf16 %v2488, %v2484
        %v2493 = vpack.c.bf16 %v2489, %v2485
        %v2494 = vld [vmem:[#allocation17] sm:$0xff]
        %v2495 = vld [vmem:[#allocation17 + $0x8] sm:$0xff]
        %v2496 = vld [vmem:[#allocation17 + $0x10] sm:$0xff]
        %v2497 = vld [vmem:[#allocation17 + $0x18] sm:$0xff]
        %v2498 = vld [vmem:[#allocation17 + $0x20] sm:$0xff]
        %v2499 = vld [vmem:[#allocation17 + $0x28] sm:$0xff]
        %v2500 = vld [vmem:[#allocation17 + $0x30] sm:$0xff]
        %v2501 = vld [vmem:[#allocation17 + $0x38] sm:$0xff]
        %v2502 = vld [vmem:[#allocation17 + $0x40] sm:$0xff]
        %v2503 = vld [vmem:[#allocation17 + $0x48] sm:$0xff]
        %v2504 = vld [vmem:[#allocation17 + $0x50] sm:$0xff]
        %v2505 = vld [vmem:[#allocation17 + $0x58] sm:$0xff]
        %v2506 = vld [vmem:[#allocation17 + $0x60] sm:$0xff]
        %v2507 = vld [vmem:[#allocation17 + $0x68] sm:$0xff]
        %v2508 = vld [vmem:[#allocation17 + $0x70] sm:$0xff]
        %v2509 = vld [vmem:[#allocation17 + $0x78] sm:$0xff]
        %v2510 = vld [vmem:[#allocation17 + $0x80] sm:$0xff]
        %v2511 = vld [vmem:[#allocation17 + $0x88] sm:$0xff]
        %v2512 = vld [vmem:[#allocation17 + $0x90] sm:$0xff]
        %v2513 = vld [vmem:[#allocation17 + $0x98] sm:$0xff]
        %v2514 = vld [vmem:[#allocation17 + $0xa0] sm:$0xff]
        %v2515 = vld [vmem:[#allocation17 + $0xa8] sm:$0xff]
        %v2516 = vld [vmem:[#allocation17 + $0xb0] sm:$0xff]
        %v2517 = vld [vmem:[#allocation17 + $0xb8] sm:$0xff]
        %v2518 = vld [vmem:[#allocation17 + $0xc0] sm:$0xff]
        %v2519 = vld [vmem:[#allocation17 + $0xc8] sm:$0xff]
        %v2520 = vld [vmem:[#allocation17 + $0xd0] sm:$0xff]
        %v2521 = vld [vmem:[#allocation17 + $0xd8] sm:$0xff]
        %v2522 = vld [vmem:[#allocation17 + $0xe0] sm:$0xff]
        %v2523 = vld [vmem:[#allocation17 + $0xe8] sm:$0xff]
        %v2524 = vld [vmem:[#allocation17 + $0xf0] sm:$0xff]
        %v2525 = vld [vmem:[#allocation17 + $0xf8] sm:$0xff]
        %v2526 = vld [vmem:[#allocation17 + $0x100] sm:$0xff]
        %v2527 = vld [vmem:[#allocation17 + $0x108] sm:$0xff]
        %v2528 = vld [vmem:[#allocation17 + $0x110] sm:$0xff]
        %v2529 = vld [vmem:[#allocation17 + $0x118] sm:$0xff]
        %v2530 = vld [vmem:[#allocation17 + $0x120] sm:$0xff]
        %v2531 = vld [vmem:[#allocation17 + $0x128] sm:$0xff]
        %v2532 = vld [vmem:[#allocation17 + $0x130] sm:$0xff]
        %v2533 = vld [vmem:[#allocation17 + $0x138] sm:$0xff]
        %v2534 = vld [vmem:[#allocation17 + $0x140] sm:$0xff]
        %v2535 = vld [vmem:[#allocation17 + $0x148] sm:$0xff]
        %v2536 = vld [vmem:[#allocation17 + $0x150] sm:$0xff]
        %v2537 = vld [vmem:[#allocation17 + $0x158] sm:$0xff]
        %v2538 = vld [vmem:[#allocation17 + $0x160] sm:$0xff]
        %v2539 = vld [vmem:[#allocation17 + $0x168] sm:$0xff]
        %v2540 = vld [vmem:[#allocation17 + $0x170] sm:$0xff]
        %v2541 = vld [vmem:[#allocation17 + $0x178] sm:$0xff]
        %v2542 = vld [vmem:[#allocation17 + $0x180] sm:$0xff]
        %v2543 = vld [vmem:[#allocation17 + $0x188] sm:$0xff]
        %v2544 = vld [vmem:[#allocation17 + $0x190] sm:$0xff]
        %v2545 = vld [vmem:[#allocation17 + $0x198] sm:$0xff]
        %v2546 = vld [vmem:[#allocation17 + $0x1a0] sm:$0xff]
        %v2547 = vld [vmem:[#allocation17 + $0x1a8] sm:$0xff]
        %v2548 = vld [vmem:[#allocation17 + $0x1b0] sm:$0xff]
        %v2549 = vld [vmem:[#allocation17 + $0x1b8] sm:$0xff]
        %v2550 = vld [vmem:[#allocation17 + $0x1c0] sm:$0xff]
        %v2551 = vld [vmem:[#allocation17 + $0x1c8] sm:$0xff]
        %v2552 = vld [vmem:[#allocation17 + $0x1d0] sm:$0xff]
        %v2553 = vld [vmem:[#allocation17 + $0x1d8] sm:$0xff]
        %v2554 = vld [vmem:[#allocation17 + $0x1e0] sm:$0xff]
        %v2555 = vld [vmem:[#allocation17 + $0x1e8] sm:$0xff]
        %v2556 = vld [vmem:[#allocation17 + $0x1f0] sm:$0xff]
        %v2557 = vld [vmem:[#allocation17 + $0x1f8] sm:$0xff]
        %v2558 = vld [vmem:[%s13] sm:$0x3]
        %v2560 = vperm.slane %v2558, 0
        %v2561 = vperm.slane %v2558, 1
        %v2628 = vunpack.c.l.b16 %v2494
        %v2629 = vunpack.c.h.b16 %v2494
        %v2630 = vunpack.c.l.b16 %v2495
        %v2631 = vunpack.c.h.b16 %v2495
        %v2632 = vunpack.c.l.b16 %v2496
        %v2633 = vunpack.c.h.b16 %v2496
        %v2634 = vunpack.c.l.b16 %v2497
        %v2635 = vunpack.c.h.b16 %v2497
        %v2636 = vunpack.c.l.b16 %v2498
        %v2637 = vunpack.c.h.b16 %v2498
        %v2638 = vunpack.c.l.b16 %v2499
        %v2639 = vunpack.c.h.b16 %v2499
        %v2640 = vunpack.c.l.b16 %v2500
        %v2641 = vunpack.c.h.b16 %v2500
        %v2642 = vunpack.c.l.b16 %v2501
        %v2643 = vunpack.c.h.b16 %v2501
        %v2644 = vunpack.c.l.b16 %v2502
        %v2645 = vunpack.c.h.b16 %v2502
        %v2646 = vunpack.c.l.b16 %v2503
        %v2647 = vunpack.c.h.b16 %v2503
        %v2648 = vunpack.c.l.b16 %v2504
        %v2649 = vunpack.c.h.b16 %v2504
        %v2650 = vunpack.c.l.b16 %v2505
        %v2651 = vunpack.c.h.b16 %v2505
        %v2652 = vunpack.c.l.b16 %v2506
        %v2653 = vunpack.c.h.b16 %v2506
        %v2654 = vunpack.c.l.b16 %v2507
        %v2655 = vunpack.c.h.b16 %v2507
        %v2656 = vunpack.c.l.b16 %v2508
        %v2657 = vunpack.c.h.b16 %v2508
        %v2658 = vunpack.c.l.b16 %v2509
        %v2659 = vunpack.c.h.b16 %v2509
        %v2660 = vunpack.c.l.b16 %v2510
        %v2661 = vunpack.c.h.b16 %v2510
        %v2662 = vunpack.c.l.b16 %v2511
        %v2663 = vunpack.c.h.b16 %v2511
        %v2664 = vunpack.c.l.b16 %v2512
        %v2665 = vunpack.c.h.b16 %v2512
        %v2666 = vunpack.c.l.b16 %v2513
        %v2667 = vunpack.c.h.b16 %v2513
        %v2668 = vunpack.c.l.b16 %v2514
        %v2669 = vunpack.c.h.b16 %v2514
        %v2670 = vunpack.c.l.b16 %v2515
        %v2671 = vunpack.c.h.b16 %v2515
        %v2672 = vunpack.c.l.b16 %v2516
        %v2673 = vunpack.c.h.b16 %v2516
        %v2674 = vunpack.c.l.b16 %v2517
        %v2675 = vunpack.c.h.b16 %v2517
        %v2676 = vunpack.c.l.b16 %v2518
        %v2677 = vunpack.c.h.b16 %v2518
        %v2678 = vunpack.c.l.b16 %v2519
        %v2679 = vunpack.c.h.b16 %v2519
        %v2680 = vunpack.c.l.b16 %v2520
        %v2681 = vunpack.c.h.b16 %v2520
        %v2682 = vunpack.c.l.b16 %v2521
        %v2683 = vunpack.c.h.b16 %v2521
        %v2684 = vunpack.c.l.b16 %v2522
        %v2685 = vunpack.c.h.b16 %v2522
        %v2686 = vunpack.c.l.b16 %v2523
        %v2687 = vunpack.c.h.b16 %v2523
        %v2688 = vunpack.c.l.b16 %v2524
        %v2689 = vunpack.c.h.b16 %v2524
        %v2690 = vunpack.c.l.b16 %v2525
        %v2691 = vunpack.c.h.b16 %v2525
        %v2692 = vunpack.c.l.b16 %v2526
        %v2693 = vunpack.c.h.b16 %v2526
        %v2694 = vunpack.c.l.b16 %v2527
        %v2695 = vunpack.c.h.b16 %v2527
        %v2696 = vunpack.c.l.b16 %v2528
        %v2697 = vunpack.c.h.b16 %v2528
        %v2698 = vunpack.c.l.b16 %v2529
        %v2699 = vunpack.c.h.b16 %v2529
        %v2700 = vunpack.c.l.b16 %v2530
        %v2701 = vunpack.c.h.b16 %v2530
        %v2702 = vunpack.c.l.b16 %v2531
        %v2703 = vunpack.c.h.b16 %v2531
        %v2704 = vunpack.c.l.b16 %v2532
        %v2705 = vunpack.c.h.b16 %v2532
        %v2706 = vunpack.c.l.b16 %v2533
        %v2707 = vunpack.c.h.b16 %v2533
        %v2708 = vunpack.c.l.b16 %v2534
        %v2709 = vunpack.c.h.b16 %v2534
        %v2710 = vunpack.c.l.b16 %v2535
        %v2711 = vunpack.c.h.b16 %v2535
        %v2712 = vunpack.c.l.b16 %v2536
        %v2713 = vunpack.c.h.b16 %v2536
        %v2714 = vunpack.c.l.b16 %v2537
        %v2715 = vunpack.c.h.b16 %v2537
        %v2716 = vunpack.c.l.b16 %v2538
        %v2717 = vunpack.c.h.b16 %v2538
        %v2718 = vunpack.c.l.b16 %v2539
        %v2719 = vunpack.c.h.b16 %v2539
        %v2720 = vunpack.c.l.b16 %v2540
        %v2721 = vunpack.c.h.b16 %v2540
        %v2722 = vunpack.c.l.b16 %v2541
        %v2723 = vunpack.c.h.b16 %v2541
        %v2724 = vunpack.c.l.b16 %v2542
        %v2725 = vunpack.c.h.b16 %v2542
        %v2726 = vunpack.c.l.b16 %v2543
        %v2727 = vunpack.c.h.b16 %v2543
        %v2728 = vunpack.c.l.b16 %v2544
        %v2729 = vunpack.c.h.b16 %v2544
        %v2730 = vunpack.c.l.b16 %v2545
        %v2731 = vunpack.c.h.b16 %v2545
        %v2732 = vunpack.c.l.b16 %v2546
        %v2733 = vunpack.c.h.b16 %v2546
        %v2734 = vunpack.c.l.b16 %v2547
        %v2735 = vunpack.c.h.b16 %v2547
        %v2736 = vunpack.c.l.b16 %v2548
        %v2737 = vunpack.c.h.b16 %v2548
        %v2738 = vunpack.c.l.b16 %v2549
        %v2739 = vunpack.c.h.b16 %v2549
        %v2740 = vunpack.c.l.b16 %v2550
        %v2741 = vunpack.c.h.b16 %v2550
        %v2742 = vunpack.c.l.b16 %v2551
        %v2743 = vunpack.c.h.b16 %v2551
        %v2744 = vunpack.c.l.b16 %v2552
        %v2745 = vunpack.c.h.b16 %v2552
        %v2746 = vunpack.c.l.b16 %v2553
        %v2747 = vunpack.c.h.b16 %v2553
        %v2748 = vunpack.c.l.b16 %v2554
        %v2749 = vunpack.c.h.b16 %v2554
        %v2750 = vunpack.c.l.b16 %v2555
        %v2751 = vunpack.c.h.b16 %v2555
        %v2752 = vunpack.c.l.b16 %v2556
        %v2753 = vunpack.c.h.b16 %v2556
        %v2754 = vunpack.c.l.b16 %v2557
        %v2755 = vunpack.c.h.b16 %v2557
        %v2756 = vpack.c.b16 %v2630, %v2628
        %v2757 = vpack.c.b16 %v2631, %v2629
        %v2758 = vpack.c.b16 %v2634, %v2632
        %v2759 = vpack.c.b16 %v2635, %v2633
        %v2760 = vpack.c.b16 %v2638, %v2636
        %v2761 = vpack.c.b16 %v2639, %v2637
        %v2762 = vpack.c.b16 %v2642, %v2640
        %v2763 = vpack.c.b16 %v2643, %v2641
        %v2764 = vpack.c.b16 %v2646, %v2644
        %v2765 = vpack.c.b16 %v2647, %v2645
        %v2766 = vpack.c.b16 %v2650, %v2648
        %v2767 = vpack.c.b16 %v2651, %v2649
        %v2768 = vpack.c.b16 %v2654, %v2652
        %v2769 = vpack.c.b16 %v2655, %v2653
        %v2770 = vpack.c.b16 %v2658, %v2656
        %v2771 = vpack.c.b16 %v2659, %v2657
        %v2772 = vpack.c.b16 %v2662, %v2660
        %v2773 = vpack.c.b16 %v2663, %v2661
        %v2774 = vpack.c.b16 %v2666, %v2664
        %v2775 = vpack.c.b16 %v2667, %v2665
        %v2776 = vpack.c.b16 %v2670, %v2668
        %v2777 = vpack.c.b16 %v2671, %v2669
        %v2778 = vpack.c.b16 %v2674, %v2672
        %v2779 = vpack.c.b16 %v2675, %v2673
        %v2780 = vpack.c.b16 %v2678, %v2676
        %v2781 = vpack.c.b16 %v2679, %v2677
        %v2782 = vpack.c.b16 %v2682, %v2680
        %v2783 = vpack.c.b16 %v2683, %v2681
        %v2784 = vpack.c.b16 %v2686, %v2684
        %v2785 = vpack.c.b16 %v2687, %v2685
        %v2786 = vpack.c.b16 %v2690, %v2688
        %v2787 = vpack.c.b16 %v2691, %v2689
        %v2788 = vpack.c.b16 %v2694, %v2692
        %v2789 = vpack.c.b16 %v2695, %v2693
        %v2790 = vpack.c.b16 %v2698, %v2696
        %v2791 = vpack.c.b16 %v2699, %v2697
        %v2792 = vpack.c.b16 %v2702, %v2700
        %v2793 = vpack.c.b16 %v2703, %v2701
        %v2794 = vpack.c.b16 %v2706, %v2704
        %v2795 = vpack.c.b16 %v2707, %v2705
        %v2796 = vpack.c.b16 %v2710, %v2708
        %v2797 = vpack.c.b16 %v2711, %v2709
        %v2798 = vpack.c.b16 %v2714, %v2712
        %v2799 = vpack.c.b16 %v2715, %v2713
        %v2800 = vpack.c.b16 %v2718, %v2716
        %v2801 = vpack.c.b16 %v2719, %v2717
        %v2802 = vpack.c.b16 %v2722, %v2720
        %v2803 = vpack.c.b16 %v2723, %v2721
        %v2804 = vpack.c.b16 %v2726, %v2724
        %v2805 = vpack.c.b16 %v2727, %v2725
        %v2806 = vpack.c.b16 %v2730, %v2728
        %v2807 = vpack.c.b16 %v2731, %v2729
        %v2808 = vpack.c.b16 %v2734, %v2732
        %v2809 = vpack.c.b16 %v2735, %v2733
        %v2810 = vpack.c.b16 %v2738, %v2736
        %v2811 = vpack.c.b16 %v2739, %v2737
        %v2812 = vpack.c.b16 %v2742, %v2740
        %v2813 = vpack.c.b16 %v2743, %v2741
        %v2814 = vpack.c.b16 %v2746, %v2744
        %v2815 = vpack.c.b16 %v2747, %v2745
        %v2816 = vpack.c.b16 %v2750, %v2748
        %v2817 = vpack.c.b16 %v2751, %v2749
        %v2818 = vpack.c.b16 %v2754, %v2752
        %v2819 = vpack.c.b16 %v2755, %v2753
        %2884 = vmatpush.bf16.msra.mxu0 %v2770
        %2885 = vmatpush.bf16.msra.mxu0 %v2768
        %2886 = vmatpush.bf16.msra.mxu0 %v2766
        %2887 = vmatpush.bf16.msra.mxu0 %v2764
        %2888 = vmatpush.bf16.msra.mxu0 %v2762
        %2889 = vmatpush.bf16.msra.mxu0 %v2760
        %2890 = vmatpush.bf16.msra.mxu0 %v2758
        %2891 = vmatpush.bf16.msra.mxu0 %v2756
        %2892 = vmatmul.bf16.gmra.mxu0 %v2490
        %v2893 = vpop.f32.mrf.mxu0
        %v2894 = vadd.f32 %v2560, %v2893
        %v2895 = vpop.f32.mrf.mxu0
        %v2896 = vadd.f32 %v2560, %v2895
        %2897 = vdwg.mxu0
        %2898 = vmatpush.bf16.msra.mxu0 %v2786
        %2899 = vmatpush.bf16.msra.mxu0 %v2784
        %2900 = vmatpush.bf16.msra.mxu0 %v2782
        %2901 = vmatpush.bf16.msra.mxu0 %v2780
        %2902 = vmatpush.bf16.msra.mxu0 %v2778
        %2903 = vmatpush.bf16.msra.mxu0 %v2776
        %2904 = vmatpush.bf16.msra.mxu0 %v2774
        %2905 = vmatpush.bf16.msra.mxu0 %v2772
        %2906 = vmatmul.bf16.gmra.mxu0 %v2491
        %v2907 = vpop.f32.mrf.mxu0
        %v2908 = vadd.f32 %v2894, %v2907
        %v2909 = vpop.f32.mrf.mxu0
        %v2910 = vadd.f32 %v2896, %v2909
        %2911 = vdwg.mxu0
        %2912 = vmatpush.bf16.msra.mxu0 %v2802
        %2913 = vmatpush.bf16.msra.mxu0 %v2800
        %2914 = vmatpush.bf16.msra.mxu0 %v2798
        %2915 = vmatpush.bf16.msra.mxu0 %v2796
        %2916 = vmatpush.bf16.msra.mxu0 %v2794
        %2917 = vmatpush.bf16.msra.mxu0 %v2792
        %2918 = vmatpush.bf16.msra.mxu0 %v2790
        %2919 = vmatpush.bf16.msra.mxu0 %v2788
        %2920 = vmatmul.bf16.gmra.mxu0 %v2492
        %v2921 = vpop.f32.mrf.mxu0
        %v2922 = vadd.f32 %v2908, %v2921
        %v2923 = vpop.f32.mrf.mxu0
        %v2924 = vadd.f32 %v2910, %v2923
        %2925 = vdwg.mxu0
        %2926 = vmatpush.bf16.msra.mxu0 %v2818
        %2927 = vmatpush.bf16.msra.mxu0 %v2816
        %2928 = vmatpush.bf16.msra.mxu0 %v2814
        %2929 = vmatpush.bf16.msra.mxu0 %v2812
        %2930 = vmatpush.bf16.msra.mxu0 %v2810
        %2931 = vmatpush.bf16.msra.mxu0 %v2808
        %2932 = vmatpush.bf16.msra.mxu0 %v2806
        %2933 = vmatpush.bf16.msra.mxu0 %v2804
        %2934 = vmatmul.bf16.gmra.mxu0 %v2493
        %v2935 = vpop.f32.mrf.mxu0
        %v2936 = vadd.f32 %v2922, %v2935
        %v2937 = vpop.f32.mrf.mxu0
        %v2938 = vadd.f32 %v2924, %v2937
        %2939 = vdwg.mxu0
        %2940 = vmatpush.bf16.msra.mxu0 %v2771
        %2941 = vmatpush.bf16.msra.mxu0 %v2769
        %2942 = vmatpush.bf16.msra.mxu0 %v2767
        %2943 = vmatpush.bf16.msra.mxu0 %v2765
        %2944 = vmatpush.bf16.msra.mxu0 %v2763
        %2945 = vmatpush.bf16.msra.mxu0 %v2761
        %2946 = vmatpush.bf16.msra.mxu0 %v2759
        %2947 = vmatpush.bf16.msra.mxu0 %v2757
        %2948 = vmatmul.bf16.gmra.mxu0 %v2490
        %v2949 = vpop.f32.mrf.mxu0
        %v2950 = vadd.f32 %v2561, %v2949
        %v2951 = vpop.f32.mrf.mxu0
        %v2952 = vadd.f32 %v2561, %v2951
        %2953 = vdwg.mxu0
        %2954 = vmatpush.bf16.msra.mxu0 %v2787
        %2955 = vmatpush.bf16.msra.mxu0 %v2785
        %2956 = vmatpush.bf16.msra.mxu0 %v2783
        %2957 = vmatpush.bf16.msra.mxu0 %v2781
        %2958 = vmatpush.bf16.msra.mxu0 %v2779
        %2959 = vmatpush.bf16.msra.mxu0 %v2777
        %2960 = vmatpush.bf16.msra.mxu0 %v2775
        %2961 = vmatpush.bf16.msra.mxu0 %v2773
        %2962 = vmatmul.bf16.gmra.mxu0 %v2491
        %v2963 = vpop.f32.mrf.mxu0
        %v2964 = vadd.f32 %v2950, %v2963
        %v2965 = vpop.f32.mrf.mxu0
        %v2966 = vadd.f32 %v2952, %v2965
        %2967 = vdwg.mxu0
        %2968 = vmatpush.bf16.msra.mxu0 %v2803
        %2969 = vmatpush.bf16.msra.mxu0 %v2801
        %2970 = vmatpush.bf16.msra.mxu0 %v2799
        %2971 = vmatpush.bf16.msra.mxu0 %v2797
        %2972 = vmatpush.bf16.msra.mxu0 %v2795
        %2973 = vmatpush.bf16.msra.mxu0 %v2793
        %2974 = vmatpush.bf16.msra.mxu0 %v2791
        %2975 = vmatpush.bf16.msra.mxu0 %v2789
        %2976 = vmatmul.bf16.gmra.mxu0 %v2492
        %v2977 = vpop.f32.mrf.mxu0
        %v2978 = vadd.f32 %v2964, %v2977
        %v2979 = vpop.f32.mrf.mxu0
        %v2980 = vadd.f32 %v2966, %v2979
        %2981 = vdwg.mxu0
        %2982 = vmatpush.bf16.msra.mxu0 %v2819
        %2983 = vmatpush.bf16.msra.mxu0 %v2817
        %2984 = vmatpush.bf16.msra.mxu0 %v2815
        %2985 = vmatpush.bf16.msra.mxu0 %v2813
        %2986 = vmatpush.bf16.msra.mxu0 %v2811
        %2987 = vmatpush.bf16.msra.mxu0 %v2809
        %2988 = vmatpush.bf16.msra.mxu0 %v2807
        %2989 = vmatpush.bf16.msra.mxu0 %v2805
        %2990 = vmatmul.bf16.gmra.mxu0 %v2493
        %v2991 = vpop.f32.mrf.mxu0
        %v2992 = vadd.f32 %v2978, %v2991
        %v2993 = vpop.f32.mrf.mxu0
        %v2994 = vadd.f32 %v2980, %v2993
        %2995 = vdwg.mxu0
        %v2996 = vadd.f32 %v1970, %v2936
        %v2997 = vadd.f32 %v1971, %v2992
        %v2998 = vadd.f32 %v1972, %v2938
        %v2999 = vadd.f32 %v1973, %v2994
        %v3000 = vadd.f32 %v2996, %v2997
        %3001 = vadd.xlane.f32.xlu0 %v3000
        %v3002 = vpop.xlane.xlu0 %3001
        %v3003 = vadd.f32 %v2998, %v2999
        %3004 = vadd.xlane.f32.xlu0 %v3003
        %v3005 = vpop.xlane.xlu0 %3004
        %v3006 = vmul.f32 %v3002, %v1909
        %v3007 = vmul.f32 %v3005, %v1909
        %v3008 = vsub.f32 %v2996, %v3006
        %v3009 = vsub.f32 %v2997, %v3006
        %v3010 = vsub.f32 %v2998, %v3007
        %v3011 = vsub.f32 %v2999, %v3007
        %v3012 = vmul.f32 %v3008, %v3008
        %v3013 = vmul.f32 %v3009, %v3009
        %v3014 = vmul.f32 %v3010, %v3010
        %v3015 = vmul.f32 %v3011, %v3011
        %v3016 = vadd.f32 %v3012, %v3013
        %3017 = vadd.xlane.f32.xlu0 %v3016
        %v3018 = vpop.xlane.xlu0 %3017
        %v3019 = vadd.f32 %v3014, %v3015
        %3020 = vadd.xlane.f32.xlu0 %v3019
        %v3021 = vpop.xlane.xlu0 %3020
        %v3022 = vmul.f32 %v3018, %v1909
        %v3023 = vmul.f32 %v3021, %v1909
        %v3024 = vadd.f32 %v3022, 1e-05
        %v3025 = vadd.f32 %v3023, 1e-05
        %v3026 = vrsqrt.pop %v3024
        %v3027 = vmul.f32 %v3026, %v3024
        %v3028 = vmul.f32 %v3027, %v3026
        %v3029 = vmul.f32 0.5, %v3028
        %v3030 = vsub.f32 1.5, %v3029
        %v3031 = vmul.f32 %v3026, %v3030
        %vm3032 = vweird.f32 %v3024
        %vm3033 = vweird.f32 %v3026
        %vm3034 = vmor %vm3032, %vm3033
        %v3035 = vsel %vm3034, %v3026, %v3031
        %v3036 = vrsqrt.pop %v3025
        %v3037 = vmul.f32 %v3036, %v3025
        %v3038 = vmul.f32 %v3037, %v3036
        %v3039 = vmul.f32 0.5, %v3038
        %v3040 = vsub.f32 1.5, %v3039
        %v3041 = vmul.f32 %v3036, %v3040
        %vm3042 = vweird.f32 %v3025
        %vm3043 = vweird.f32 %v3036
        %vm3044 = vmor %vm3042, %vm3043
        %v3045 = vsel %vm3044, %v3036, %v3041
        %v3046 = vmul.f32 %v3008, %v3035
        %v3047 = vmul.f32 %v3009, %v3035
        %v3048 = vmul.f32 %v3010, %v3045
        %v3049 = vmul.f32 %v3011, %v3045
        %v3050 = vld [vmem:[%s14] sm:$0x3]
        %v3052 = vperm.slane %v3050, 0
        %v3053 = vperm.slane %v3050, 1
        %v3056 = vmul.f32 %v3046, %v3052
        %v3057 = vmul.f32 %v3047, %v3053
        %v3058 = vmul.f32 %v3048, %v3052
        %v3059 = vmul.f32 %v3049, %v3053
        %v3060 = vld [vmem:[%s15] sm:$0x3]
        %v3062 = vperm.slane %v3060, 0
        %v3063 = vperm.slane %v3060, 1
        %v3066 = vadd.f32 %v3056, %v3062
        %v3067 = vadd.f32 %v3057, %v3063
        %v3068 = vadd.f32 %v3058, %v3062
        %v3069 = vadd.f32 %v3059, %v3063
        %3070 = vst [vmem:[%s711] sm:$0xff] %v3066
        %3071 = vst [vmem:[%s711 + $0x8] sm:$0xff] %v3067
        %3072 = vst [vmem:[%s711 + $0x10] sm:$0xff] %v3068
        %3073 = vst [vmem:[%s711 + $0x18] sm:$0xff] %v3069
        %s3074 = sand.u32 %s394, 1
        %s3075 = scalar_lea.sflag [#allocation4], %s3074
        %s3076 = sand.u32 %s394, 1
        %s3077 = smul.addr %s3076, 32
        %s3078 = scalar_lea.vmem [#allocation19], %s3077
        // Predicated region
        $region125: #{tpu_custom_call.1} parent=83 // pred_check
          %p3079 = pneg %p404
        $region126: #{tpu_custom_call.1} parent=83 // pred_check_branch
          %3081 = sbr.rel (%p3079) target = $region128
        $region127: #{tpu_custom_call.1} parent=83 // pred_region
          %s3082 = smul.u32 2, %s40
          %3084 = vsyncadd %s3075, 0
          %s3085 = smul.addr %s3082, 2
          %s3086 = smul.addr %s3085, 8
          %s3087 = scalar_lea.hbm %s16, %s3086
          %s3088 = sshll.u32 %s3078, 4
          %s3089 = int_to_ptr.vmem [resolvable:$true] %s3088
          %s3090 = sshll.u32 %s3087, 4
          %s3091 = int_to_ptr.hbm [resolvable:$true] %s3090
          %3096 = dma.vmem_to_hbm [thread:$0]  %s3089, 512, %s3091, %s3075, 256, 256, 16
        $region128: #{tpu_custom_call.1} parent=83 // pred_fallthru
          _
      $region84: #{tpu_custom_call.1} parent=5 // pred_fallthru
        _
      %p3097 = scmp.le.s32.totalorder 2, %s35
      // Predicated region
      $region129: #{tpu_custom_call.1} parent=5 // pred_check
        %p3098 = pneg %p3097
      $region130: #{tpu_custom_call.1} parent=5 // pred_check_branch
        %3100 = sbr.rel (%p3098) target = $region132
      $region131: #{tpu_custom_call.1} parent=5 // pred_region
        %s3101 = ssub.s32 %s35, 2
        // Predicated region
        $region133: #{tpu_custom_call.1} parent=131 // pred_check
          %p3102 = pneg %p410
        $region134: #{tpu_custom_call.1} parent=131 // pred_check_branch
          %3104 = sbr.rel (%p3102) target = $region136
        $region135: #{tpu_custom_call.1} parent=131 // pred_region
          %s3105 = sand.u32 %s395, 1
          %s3106 = scalar_lea.sflag [#allocation4], %s3105
          %s3107 = sand.u32 %s395, 1
          %s3108 = smul.addr %s3107, 32
          %s3109 = scalar_lea.vmem [#allocation19], %s3108
          %3111 = dma.done %s3106, 512
        $region136: #{tpu_custom_call.1} parent=131 // pred_fallthru
          _
      $region132: #{tpu_custom_call.1} parent=5 // pred_fallthru
        _
    $region6: #{tpu_custom_call.1} parent=1 // loop_footer
      %s39 = sadd.s32 1, %s35
    $region7: #{tpu_custom_call.1} parent=1 // loop_footer_branch
      %34 = sbr.rel target = $region3
    $region8: #{tpu_custom_call.1} parent=1 // loop_exit
      _
    %3112 = vsyncpa [#allocation3], 1
    %s3113 = scalar_lea.sflag [#allocation3], 1
    %3114 = vsyncpa %s3113, 1
    %3115 = vsyncpa [#allocation6], 1
    %s3116 = scalar_lea.sflag [#allocation6], 1
    %3117 = vsyncpa %s3116, 1
    %3118 = vsyncpa [#allocation9], 1
    %3119 = vsyncpa [#allocation12], 1
    %3120 = vsyncpa [#allocation15], 1
    %3121 = vsyncpa [#allocation18], 1
    %3122 = vsyncpa [#allocation4], 1
    %s3123 = scalar_lea.sflag [#allocation4], 1
    %3124 = vsyncpa %s3123, 1

</llo_original>
